<compile_context>
chip_gen: v5e
topology: v5e:2x2
jax: 0.10.0
libtpu: 0.0.40
codegen_flags: <defaults>
</compile_context>

<pallas_src>
import math
import functools

import jax
import jax.numpy as jnp
from jax import lax
from jax.experimental import pallas as pl
from jax.experimental.pallas import tpu as pltpu

F32 = jnp.float32
BF16 = jnp.bfloat16
NEG_INF = -1e9


def _round_up(x, m):
    return ((x + m - 1) // m) * m


def _vmem_limit_bytes():
    # Stay <= 48 MiB on v7x (64 MiB physical VMEM); use ~100 MiB on v5e/v6e.
    try:
        cap = pltpu.get_tpu_info().vmem_capacity_bytes
        if cap and cap >= 120 * 1024 * 1024:
            return 100 * 1024 * 1024
    except Exception:
        pass
    return 48 * 1024 * 1024


VMEM_LIMIT = _vmem_limit_bytes()


def _pad_rows(x, mp):
    return x if x.shape[0] == mp else jnp.pad(x, ((0, mp - x.shape[0]), (0, 0)))


# --------------------------- general tiled matmul ---------------------------

def _matmul_kernel(x_ref, w_ref, b_ref, o_ref, acc_ref):
    """out = x @ w + b, K-reduction on an f32 VMEM accumulator."""
    @pl.when(pl.program_id(2) == 0)
    def _():
        acc_ref[...] = jnp.zeros_like(acc_ref)

    acc_ref[...] += jnp.dot(x_ref[...].astype(BF16), w_ref[...],
                            preferred_element_type=jnp.float32)

    @pl.when(pl.program_id(2) == pl.num_programs(2) - 1)
    def _():
        o_ref[...] = acc_ref[...] + b_ref[...]


def matmul_tiled(x, w, b, *, tm=256, tn=512, tk=512):
    """x [M,K] @ w [K,N] + b [N] -> [M,N] f32; tiled over M, N, K."""
    M, K = x.shape
    N = w.shape[1]
    tm = min(tm, _round_up(M, 8))
    tn = min(tn, _round_up(N, 128))
    tk = min(tk, _round_up(K, 128))
    Mp, Kp, Np = _round_up(M, tm), _round_up(K, tk), _round_up(N, tn)

    xp = jnp.pad(x, ((0, Mp - M), (0, Kp - K))) if (Mp, Kp) != (M, K) else x
    wp = jnp.pad(w, ((0, Kp - K), (0, Np - N))) if (Kp, Np) != (K, N) else w
    bp = jnp.pad(b, (0, Np - N)) if Np != N else b

    out = pl.pallas_call(
        _matmul_kernel,
        out_shape=jax.ShapeDtypeStruct((Mp, Np), F32),
        grid=(Mp // tm, Np // tn, Kp // tk),
        in_specs=[
            pl.BlockSpec((tm, tk), lambda i, j, k: (i, k)),
            pl.BlockSpec((tk, tn), lambda i, j, k: (k, j)),
            pl.BlockSpec((1, tn), lambda i, j, k: (0, j)),
        ],
        out_specs=pl.BlockSpec((tm, tn), lambda i, j, k: (i, j)),
        scratch_shapes=[pltpu.VMEM((tm, tn), F32)],
        compiler_params=pltpu.CompilerParams(
            dimension_semantics=("parallel", "parallel", "arbitrary"),
            vmem_limit_bytes=VMEM_LIMIT),
    )(xp.astype(BF16), wp.astype(BF16), bp.reshape(1, Np).astype(F32))
    return out[:M, :N]


# ------------------------------ norm helpers ------------------------------

def _norm_stats(x, d, eps, a, g):
    """Tutorial-style Norm: unbiased std (D-1), eps added outside the sqrt."""
    mean = jnp.mean(x, axis=-1, keepdims=True)
    c = x - mean
    var = jnp.sum(c * c, axis=-1, keepdims=True) * (1.0 / (d - 1))
    inv = pl.reciprocal(jnp.sqrt(var) + eps, approx=True)   # EUP slot
    return a * c * inv + g


def _norm_kernel(x_ref, a_ref, g_ref, o_ref, *, d, eps):
    o_ref[...] = _norm_stats(x_ref[...], d, eps, a_ref[...],
                             g_ref[...]).astype(o_ref.dtype)


def layer_norm_rows(x2d, alpha, bias, *, eps=1e-6, tm=1024, out_dtype=F32):
    M, D = x2d.shape
    tm = min(tm, _round_up(M, 8))
    Mp = _round_up(M, tm)
    xp = _pad_rows(x2d, Mp)
    out = pl.pallas_call(
        functools.partial(_norm_kernel, d=D, eps=eps),
        out_shape=jax.ShapeDtypeStruct((Mp, D), out_dtype),
        grid=(Mp // tm,),
        in_specs=[
            pl.BlockSpec((tm, D), lambda i: (i, 0)),
            pl.BlockSpec((1, D), lambda i: (0, 0)),
            pl.BlockSpec((1, D), lambda i: (0, 0)),
        ],
        out_specs=pl.BlockSpec((tm, D), lambda i: (i, 0)),
        compiler_params=pltpu.CompilerParams(
            dimension_semantics=("parallel",), vmem_limit_bytes=VMEM_LIMIT),
    )(xp, alpha.reshape(1, D), bias.reshape(1, D))
    return out[:M]


# --------------------------- fused linear kernels ---------------------------
# TODO(synk): resident-weight blocks below could be single-buffered
# (pipeline_mode=pl.Buffered(1)) to halve their VMEM footprint on v7x.

def _norm_matmul_kernel(x_ref, a_ref, g_ref, w_ref, b_ref, o_ref, *, d, eps):
    """Fused: layer_norm(x) @ W + b (weights resident, M-tiled)."""
    xn = _norm_stats(x_ref[...], d, eps, a_ref[...], g_ref[...])
    y = jnp.dot(xn.astype(BF16), w_ref[...],
                preferred_element_type=jnp.float32) + b_ref[...]
    o_ref[...] = y.astype(o_ref.dtype)


def fused_norm_linear(x2d, alpha, bias, w, b, *, eps=1e-6, tm=256, out_dtype=BF16):
    M, D = x2d.shape
    N = w.shape[1]
    tm = min(tm, _round_up(M, 8))
    Mp = _round_up(M, tm)
    xp = _pad_rows(x2d, Mp)
    out = pl.pallas_call(
        functools.partial(_norm_matmul_kernel, d=D, eps=eps),
        out_shape=jax.ShapeDtypeStruct((Mp, N), out_dtype),
        grid=(Mp // tm,),
        in_specs=[
            pl.BlockSpec((tm, D), lambda i: (i, 0)),
            pl.BlockSpec((1, D), lambda i: (0, 0)),
            pl.BlockSpec((1, D), lambda i: (0, 0)),
            pl.BlockSpec((D, N), lambda i: (0, 0)),
            pl.BlockSpec((1, N), lambda i: (0, 0)),
        ],
        out_specs=pl.BlockSpec((tm, N), lambda i: (i, 0)),
        compiler_params=pltpu.CompilerParams(
            dimension_semantics=("parallel",), vmem_limit_bytes=VMEM_LIMIT),
    )(xp, alpha.reshape(1, D), bias.reshape(1, D),
      w.astype(BF16), b.reshape(1, N).astype(F32))
    return out[:M]


def _linear_kernel(x_ref, w_ref, b_ref, o_ref):
    y = jnp.dot(x_ref[...].astype(BF16), w_ref[...],
                preferred_element_type=jnp.float32) + b_ref[...]
    o_ref[...] = y.astype(o_ref.dtype)


def linear_rows(x2d, w, b, *, tm=256, out_dtype=BF16):
    M, K = x2d.shape
    N = w.shape[1]
    tm = min(tm, _round_up(M, 8))
    Mp = _round_up(M, tm)
    xp = _pad_rows(x2d, Mp)
    out = pl.pallas_call(
        _linear_kernel,
        out_shape=jax.ShapeDtypeStruct((Mp, N), out_dtype),
        grid=(Mp // tm,),
        in_specs=[
            pl.BlockSpec((tm, K), lambda i: (i, 0)),
            pl.BlockSpec((K, N), lambda i: (0, 0)),
            pl.BlockSpec((1, N), lambda i: (0, 0)),
        ],
        out_specs=pl.BlockSpec((tm, N), lambda i: (i, 0)),
        compiler_params=pltpu.CompilerParams(
            dimension_semantics=("parallel",), vmem_limit_bytes=VMEM_LIMIT),
    )(xp, w.astype(BF16), b.reshape(1, N).astype(F32))
    return out[:M]


def _linear_res_kernel(x_ref, w_ref, b_ref, r_ref, o_ref):
    """Fused: x @ W + b + residual (weights resident, M-tiled)."""
    o_ref[...] = (jnp.dot(x_ref[...].astype(BF16), w_ref[...],
                          preferred_element_type=jnp.float32)
                  + b_ref[...] + r_ref[...])


def linear_residual(x2d, w, b, res2d, *, tm=256):
    M, K = x2d.shape
    N = w.shape[1]
    tm = min(tm, _round_up(M, 8))
    Mp = _round_up(M, tm)
    xp = _pad_rows(x2d, Mp)
    rp = _pad_rows(res2d, Mp)
    out = pl.pallas_call(
        _linear_res_kernel,
        out_shape=jax.ShapeDtypeStruct((Mp, N), F32),
        grid=(Mp // tm,),
        in_specs=[
            pl.BlockSpec((tm, K), lambda i: (i, 0)),
            pl.BlockSpec((K, N), lambda i: (0, 0)),
            pl.BlockSpec((1, N), lambda i: (0, 0)),
            pl.BlockSpec((tm, N), lambda i: (i, 0)),
        ],
        out_specs=pl.BlockSpec((tm, N), lambda i: (i, 0)),
        compiler_params=pltpu.CompilerParams(
            dimension_semantics=("parallel",), vmem_limit_bytes=VMEM_LIMIT),
    )(xp, w.astype(BF16), b.reshape(1, N).astype(F32), rp)
    return out[:M]


def _norm_ffn_res_kernel(x_ref, a_ref, g_ref, w1_ref, b1_ref, w2_ref, b2_ref,
                         o_ref, *, d, eps):
    """Fused: out = x + FFN(layer_norm(x)); FFN intermediate kept bf16."""
    x = x_ref[...]
    xn = _norm_stats(x, d, eps, a_ref[...], g_ref[...])
    h = jnp.dot(xn.astype(BF16), w1_ref[...],
                preferred_element_type=jnp.float32) + b1_ref[...]
    h = jnp.maximum(h, 0.0).astype(BF16)          # ReLU, halve the intermediate
    o_ref[...] = x + jnp.dot(h, w2_ref[...],
                             preferred_element_type=jnp.float32) + b2_ref[...]


def norm_ffn_residual(ffp, normp, x, *, eps=1e-6, tm=256):
    B, S, D = x.shape
    M = B * S
    Fd = ffp["l1"]["w"].shape[1]
    x2d = x.reshape(M, D)
    tm = min(tm, _round_up(M, 8))
    Mp = _round_up(M, tm)
    xp = _pad_rows(x2d, Mp)
    out = pl.pallas_call(
        functools.partial(_norm_ffn_res_kernel, d=D, eps=eps),
        out_shape=jax.ShapeDtypeStruct((Mp, D), F32),
        grid=(Mp // tm,),
        in_specs=[
            pl.BlockSpec((tm, D), lambda i: (i, 0)),
            pl.BlockSpec((1, D), lambda i: (0, 0)),
            pl.BlockSpec((1, D), lambda i: (0, 0)),
            pl.BlockSpec((D, Fd), lambda i: (0, 0)),
            pl.BlockSpec((1, Fd), lambda i: (0, 0)),
            pl.BlockSpec((Fd, D), lambda i: (0, 0)),
            pl.BlockSpec((1, D), lambda i: (0, 0)),
        ],
        out_specs=pl.BlockSpec((tm, D), lambda i: (i, 0)),
        compiler_params=pltpu.CompilerParams(
            dimension_semantics=("parallel",), vmem_limit_bytes=VMEM_LIMIT),
    )(xp, normp["alpha"].reshape(1, D), normp["bias"].reshape(1, D),
      ffp["l1"]["w"].astype(BF16), ffp["l1"]["b"].reshape(1, Fd),
      ffp["l2"]["w"].astype(BF16), ffp["l2"]["b"].reshape(1, D))
    return out[:M].reshape(B, S, D)


# --------------------------- flash-style attention ---------------------------

def _flash_attn_kernel(q_ref, k_ref, v_ref, pad_ref, o_ref,
                       m_s, l_s, acc_s, *, causal, tq, tk):
    """One (batch, head, q-tile, kv-tile) step; online softmax over kv tiles.
    1/sqrt(d_k) is already folded into W_q; masks are built in-kernel."""
    ki = pl.program_id(3)

    @pl.when(ki == 0)
    def _():
        m_s[...] = jnp.full_like(m_s, -jnp.inf)
        l_s[...] = jnp.zeros_like(l_s)
        acc_s[...] = jnp.zeros_like(acc_s)

    q = q_ref[...]                # (tq, dk) bf16
    k = k_ref[...]                # (tk, dk) bf16
    v = v_ref[...]                # (tk, dk) bf16

    s = lax.dot_general(q, k, (((1,), (1,)), ((), ())),
                        preferred_element_type=jnp.float32)      # (tq, tk)
    # padding bias (compact (1, tk) mask, 1 = keep) + optional causal mask
    s = s + jnp.where(pad_ref[...] > 0.5, 0.0, NEG_INF)
    if causal:
        q0 = pl.program_id(2) * tq
        k0 = ki * tk
        rows = lax.broadcasted_iota(jnp.int32, (tq, tk), 0) + q0
        cols = lax.broadcasted_iota(jnp.int32, (tq, tk), 1) + k0
        s = jnp.where(rows >= cols, s, NEG_INF)

    m_prev = m_s[...]
    m_new = jnp.maximum(m_prev, jnp.max(s, axis=-1, keepdims=True))
    alpha = jnp.exp(m_prev - m_new)
    p = jnp.exp(s - m_new)
    l_s[...] = alpha * l_s[...] + jnp.sum(p, axis=-1, keepdims=True)
    acc_s[...] = alpha * acc_s[...] + jnp.dot(p.astype(BF16), v,
                                              preferred_element_type=jnp.float32)
    m_s[...] = m_new

    @pl.when(ki == pl.num_programs(3) - 1)
    def _():
        o_ref[...] = (acc_s[...] *
                      pl.reciprocal(l_s[...], approx=True)).astype(o_ref.dtype)


def _attn_tile(S):
    sp = _round_up(S, 8)
    t = min(128, sp)
    return _round_up(sp, t), t


def _run_flash(args, in_specs, B, H, nq, nk, tq, tk, dk, causal):
    return pl.pallas_call(
        functools.partial(_flash_attn_kernel, causal=causal, tq=tq, tk=tk),
        out_shape=jax.ShapeDtypeStruct((B, H, nq * tq, dk), BF16),
        grid=(B, H, nq, nk),
        in_specs=in_specs,
        out_specs=pl.BlockSpec((None, None, tq, dk),
                               lambda b, h, qi, ki: (b, h, qi, 0)),
        scratch_shapes=[pltpu.VMEM((tq, 1), F32),
                        pltpu.VMEM((tq, 1), F32),
                        pltpu.VMEM((tq, dk), F32)],
        compiler_params=pltpu.CompilerParams(
            dimension_semantics=("parallel", "parallel", "parallel", "arbitrary"),
            vmem_limit_bytes=VMEM_LIMIT),
    )(*args)


def flash_self_attention(qkv5, pad, *, causal):
    """qkv5: (3, B, H, S, dk) bf16 fused buffer; pad: (B, 1, S) f32 (1 = keep)."""
    _, B, H, S, dk = qkv5.shape
    Sp, t = _attn_tile(S)
    if Sp != S:
        qkv5 = jnp.pad(qkv5, ((0, 0), (0, 0), (0, 0), (0, Sp - S), (0, 0)))
        pad = jnp.pad(pad, ((0, 0), (0, 0), (0, Sp - S)))
    nq = nk = Sp // t
    in_specs = [
        pl.BlockSpec((None, None, None, t, dk), lambda b, h, qi, ki: (0, b, h, qi, 0)),
        pl.BlockSpec((None, None, None, t, dk), lambda b, h, qi, ki: (1, b, h, ki, 0)),
        pl.BlockSpec((None, None, None, t, dk), lambda b, h, qi, ki: (2, b, h, ki, 0)),
        pl.BlockSpec((None, 1, t), lambda b, h, qi, ki: (b, 0, ki)),
    ]
    out = _run_flash((qkv5, qkv5, qkv5, pad), in_specs, B, H, nq, nk, t, t,
                     dk, causal)
    return out[:, :, :S, :]


def flash_cross_attention(q4, kv5, pad):
    """q4: (B, H, Sq, dk) bf16; kv5: (2, B, H, Sk, dk) bf16; pad: (B, 1, Sk)."""
    B, H, Sq, dk = q4.shape
    Sk = kv5.shape[3]
    Sqp, tq = _attn_tile(Sq)
    Skp, tk = _attn_tile(Sk)
    if Sqp != Sq:
        q4 = jnp.pad(q4, ((0, 0), (0, 0), (0, Sqp - Sq), (0, 0)))
    if Skp != Sk:
        kv5 = jnp.pad(kv5, ((0, 0), (0, 0), (0, 0), (0, Skp - Sk), (0, 0)))
        pad = jnp.pad(pad, ((0, 0), (0, 0), (0, Skp - Sk)))
    nq, nk = Sqp // tq, Skp // tk
    in_specs = [
        pl.BlockSpec((None, None, tq, dk), lambda b, h, qi, ki: (b, h, qi, 0)),
        pl.BlockSpec((None, None, None, tk, dk), lambda b, h, qi, ki: (0, b, h, ki, 0)),
        pl.BlockSpec((None, None, None, tk, dk), lambda b, h, qi, ki: (1, b, h, ki, 0)),
        pl.BlockSpec((None, 1, tk), lambda b, h, qi, ki: (b, 0, ki)),
    ]
    out = _run_flash((q4, kv5, kv5, pad), in_specs, B, H, nq, nk, tq, tk,
                     dk, False)
    return out[:, :, :Sq, :]


# ----------------------------- glue (plain JAX) -----------------------------

def positional_encoding(max_len, d_model):
    pos = jnp.arange(max_len, dtype=F32)[:, None]
    i2 = jnp.arange(0, d_model, 2, dtype=F32)[None, :]
    angle = pos / jnp.power(10000.0, i2 / d_model)
    pe = jnp.zeros((max_len, d_model), F32)
    pe = pe.at[:, 0::2].set(jnp.sin(angle))
    pe = pe.at[:, 1::2].set(jnp.cos(angle))
    return pe


def mha_self(p, normp, x, pad, heads, *, causal):
    """Pre-norm self-attention: fused norm+QKV, flash attention, fused out+res."""
    B, S, D = x.shape
    dk = D // heads
    x2d = x.reshape(B * S, D)
    qkv = fused_norm_linear(x2d, normp["alpha"], normp["bias"],
                            p["wqkv"], p["bqkv"], out_dtype=BF16)     # (B*S, 3D)
    qkv5 = qkv.reshape(B, S, 3, heads, dk).transpose(2, 0, 3, 1, 4)   # (3,B,H,S,dk)
    o4 = flash_self_attention(qkv5, pad, causal=causal)               # (B,H,S,dk)
    o2d = o4.transpose(0, 2, 1, 3).reshape(B * S, D)                  # bf16
    out = linear_residual(o2d, p["o"]["w"], p["o"]["b"], x2d)
    return out.reshape(B, S, D)


def mha_cross(p, normp, x, kv5, pad, heads):
    """Pre-norm cross-attention: Q from norm(x); K/V already projected (kv5)."""
    B, Sq, D = x.shape
    dk = D // heads
    x2d = x.reshape(B * Sq, D)
    q = fused_norm_linear(x2d, normp["alpha"], normp["bias"],
                          p["q"]["w"], p["q"]["b"], out_dtype=BF16)   # (B*Sq, D)
    q4 = q.reshape(B, Sq, heads, dk).transpose(0, 2, 1, 3)            # (B,H,Sq,dk)
    o4 = flash_cross_attention(q4, kv5, pad)
    o2d = o4.transpose(0, 2, 1, 3).reshape(B * Sq, D)
    out = linear_residual(o2d, p["o"]["w"], p["o"]["b"], x2d)
    return out.reshape(B, Sq, D)


def encoder_forward(params, src, src_pad, pe, heads, d_model):
    B, S = src.shape
    # TODO(synk): embedding gather + PE add left to XLA (no clean Pallas win here).
    x = params["src_embed"][src] * math.sqrt(d_model) + pe[None, :S, :]
    # TODO(synk): dropout omitted (inference / eval mode -> identity).
    for lp in params["enc_layers"]:
        x = mha_self(lp["attn"], lp["n1"], x, src_pad, heads, causal=False)
        x = norm_ffn_residual(lp["ff"], lp["n2"], x)
    xn = layer_norm_rows(x.reshape(B * S, d_model),
                         params["enc_norm"]["alpha"], params["enc_norm"]["bias"],
                         out_dtype=BF16)               # bf16: only feeds cross-K/V
    return xn.reshape(B, S, d_model)


def decoder_forward(params, trg, e_out, src_pad, trg_pad, pe, heads, d_model):
    B, S = trg.shape
    dk = d_model // heads
    Bk, Sk, _ = e_out.shape
    e2d = e_out.reshape(Bk * Sk, d_model)              # bf16
    x = params["trg_embed"][trg] * math.sqrt(d_model) + pe[None, :S, :]
    for lp in params["dec_layers"]:
        x = mha_self(lp["attn1"], lp["n1"], x, trg_pad, heads, causal=True)
        kv = linear_rows(e2d, lp["attn2"]["wkv"], lp["attn2"]["bkv"],
                         out_dtype=BF16)               # (Bk*Sk, 2D)
        kv5 = kv.reshape(Bk, Sk, 2, heads, dk).transpose(2, 0, 3, 1, 4)
        x = mha_cross(lp["attn2"], lp["n2"], x, kv5, src_pad, heads)
        x = norm_ffn_residual(lp["ff"], lp["n3"], x)
    return layer_norm_rows(x.reshape(B * S, d_model),
                           params["dec_norm"]["alpha"], params["dec_norm"]["bias"],
                           out_dtype=BF16)             # bf16 LHS for vocab matmul


def transformer_forward(params, src, trg, src_mask, trg_mask, pe, heads, d_model):
    B, Ss = src.shape
    _, St = trg.shape
    # Compact padding masks only; the causal part is generated inside the kernel
    # (no [B, Sq, Sk] f32 mask materialization in HBM).
    src_pad = src_mask.reshape(B, 1, Ss).astype(F32)
    # tutorial trg_mask = trg_pad & no-peek; its last row recovers the pad part.
    trg_pad = trg_mask[:, -1:, :].astype(F32).reshape(B, 1, St)

    e_out = encoder_forward(params, src, src_pad, pe, heads, d_model)
    d2d = decoder_forward(params, trg, e_out, src_pad, trg_pad, pe, heads, d_model)
    logits = matmul_tiled(d2d, params["out"]["w"], params["out"]["b"])
    return logits.reshape(B, St, -1)


# ----------------------------- parameter init -----------------------------

def init_transformer_params(key, src_vocab, trg_vocab, d_model, n_layers, heads, d_ff):
    keys = iter(jax.random.split(key, 2048))

    def lin(d_in, d_out):
        bound = 1.0 / math.sqrt(d_in)
        w = jax.random.uniform(next(keys), (d_in, d_out), F32, -bound, bound)
        b = jax.random.uniform(next(keys), (d_out,), F32, -bound, bound)
        return {"w": w, "b": b}

    def norm(d):
        return {"alpha": jnp.ones((d,), F32), "bias": jnp.zeros((d,), F32)}

    def mha():
        scale = 1.0 / math.sqrt(d_model // heads)
        q, k, v, o = (lin(d_model, d_model), lin(d_model, d_model),
                      lin(d_model, d_model), lin(d_model, d_model))
        # fold 1/sqrt(d_k) into the Q projection (mathematically identical;
        # removes a VPU multiply over every score element in the kernel).
        qw, qb = q["w"] * scale, q["b"] * scale
        return {
            "q": {"w": qw, "b": qb},
            "o": o,
            "wqkv": jnp.concatenate([qw, k["w"], v["w"]], axis=1),
            "bqkv": jnp.concatenate([qb, k["b"], v["b"]], axis=0),
            "wkv": jnp.concatenate([k["w"], v["w"]], axis=1),
            "bkv": jnp.concatenate([k["b"], v["b"]], axis=0),
        }

    def ff():
        return {"l1": lin(d_model, d_ff), "l2": lin(d_ff, d_model)}

    enc_layers = [{"n1": norm(d_model), "attn": mha(),
                   "n2": norm(d_model), "ff": ff()} for _ in range(n_layers)]
    dec_layers = [{"n1": norm(d_model), "attn1": mha(),
                   "n2": norm(d_model), "attn2": mha(),
                   "n3": norm(d_model), "ff": ff()} for _ in range(n_layers)]
    return {
        "src_embed": jax.random.normal(next(keys), (src_vocab, d_model), F32),
        "trg_embed": jax.random.normal(next(keys), (trg_vocab, d_model), F32),
        "enc_layers": enc_layers,
        "enc_norm": norm(d_model),
        "dec_layers": dec_layers,
        "dec_norm": norm(d_model),
        "out": lin(d_model, trg_vocab),
    }


# ----------------------------- demo -----------------------------

if __name__ == "__main__":
    B = 2
    S_SRC = 8
    S_TRG = 8
    SRC_VOCAB = 16
    TRG_VOCAB = 16
    D_MODEL = 32
    N_LAYERS = 2
    HEADS = 4
    D_FF = 64  # small d_ff for the synthetic demo (tutorial default is 2048)

    root = jax.random.PRNGKey(0)
    k_src, k_trg, k_par = jax.random.split(root, 3)

    src = jax.random.randint(k_src, (B, S_SRC), 1, SRC_VOCAB)
    trg = jax.random.randint(k_trg, (B, S_TRG), 1, TRG_VOCAB)

    # src_mask: (B, 1, S_src) padding mask (all ones here);
    # trg_mask: (B, S_trg, S_trg) = no-peek causal mask (& pad, all-ones pad here).
    src_mask = jnp.ones((B, 1, S_SRC), F32)
    nopeak = jnp.tril(jnp.ones((S_TRG, S_TRG), F32))
    trg_mask = jnp.broadcast_to(nopeak[None], (B, S_TRG, S_TRG))

    params = init_transformer_params(
        k_par, SRC_VOCAB, TRG_VOCAB, D_MODEL, N_LAYERS, HEADS, D_FF)
    pe = positional_encoding(max(S_SRC, S_TRG), D_MODEL)

    fwd = jax.jit(functools.partial(transformer_forward,
                                    heads=HEADS, d_model=D_MODEL))
    out = fwd(params, src, trg, src_mask, trg_mask, pe)
    out = jax.block_until_ready(out)

    assert out.shape == (B, S_TRG, TRG_VOCAB), out.shape
    assert bool(jnp.all(jnp.isfinite(out)))
    print("KERNEL_OK")
</pallas_src>

<mosaic_0001>
module attributes {stable_mosaic.version = 11 : i64} {
  func.func @_norm_matmul_kernel(%arg0: i32, %arg1: memref<16x32xf32, #tpu.memory_space<vmem>>, %arg2: memref<1x32xf32, #tpu.memory_space<vmem>>, %arg3: memref<1x32xf32, #tpu.memory_space<vmem>>, %arg4: memref<32x96xbf16, #tpu.memory_space<vmem>>, %arg5: memref<1x96xf32, #tpu.memory_space<vmem>>, %arg6: memref<16x96xbf16, #tpu.memory_space<vmem>>) attributes {dimension_semantics = [#tpu.dimension_semantics<parallel>], iteration_bounds = array<i64: 1>, scalar_prefetch = 0 : i64, scratch_operands = 0 : i64, tpu.core_type = #tpu.core_type<tc>, window_params = [{transform_indices = @transform_0, window_bounds = array<i64: 16, 32>}, {pipeline_mode = #tpu.pipeline_mode<synchronous>, transform_indices = @transform_1, window_bounds = array<i64: 1, 32>}, {pipeline_mode = #tpu.pipeline_mode<synchronous>, transform_indices = @transform_2, window_bounds = array<i64: 1, 32>}, {pipeline_mode = #tpu.pipeline_mode<synchronous>, transform_indices = @transform_3, window_bounds = array<i64: 32, 96>}, {pipeline_mode = #tpu.pipeline_mode<synchronous>, transform_indices = @transform_4, window_bounds = array<i64: 1, 96>}, {transform_indices = @transform_5, window_bounds = array<i64: 16, 96>}]} {
    %c0 = arith.constant 0 : index
    %c0_0 = arith.constant 0 : index
    %0 = vector.load %arg1[%c0, %c0_0] : memref<16x32xf32, #tpu.memory_space<vmem>>, vector<16x32xf32>
    %c0_1 = arith.constant 0 : index
    %c0_2 = arith.constant 0 : index
    %1 = vector.load %arg2[%c0_1, %c0_2] : memref<1x32xf32, #tpu.memory_space<vmem>>, vector<1x32xf32>
    %c0_3 = arith.constant 0 : index
    %c0_4 = arith.constant 0 : index
    %2 = vector.load %arg3[%c0_3, %c0_4] : memref<1x32xf32, #tpu.memory_space<vmem>>, vector<1x32xf32>
    %cst = arith.constant dense<0.000000e+00> : vector<16xf32>
    %3 = vector.multi_reduction <add>, %0, %cst [1] : vector<16x32xf32> to vector<16xf32>
    %4 = vector.shape_cast %3 : vector<16xf32> to vector<16x1xf32>
    %cst_5 = arith.constant 3.200000e+01 : f32
    %5 = vector.broadcast %cst_5 : f32 to vector<16x1xf32>
    %6 = arith.divf %4, %5 : vector<16x1xf32>
    %7 = vector.broadcast %6 : vector<16x1xf32> to vector<16x32xf32>
    %8 = arith.subf %0, %7 : vector<16x32xf32>
    %9 = arith.mulf %8, %8 : vector<16x32xf32>
    %cst_6 = arith.constant dense<0.000000e+00> : vector<16xf32>
    %10 = vector.multi_reduction <add>, %9, %cst_6 [1] : vector<16x32xf32> to vector<16xf32>
    %11 = vector.shape_cast %10 : vector<16xf32> to vector<16x1xf32>
    %cst_7 = arith.constant 0.0322580636 : f32
    %12 = vector.broadcast %cst_7 : f32 to vector<16x1xf32>
    %13 = arith.mulf %11, %12 : vector<16x1xf32>
    %14 = math.sqrt %13 : vector<16x1xf32>
    %cst_8 = arith.constant 9.99999997E-7 : f32
    %15 = vector.broadcast %cst_8 : f32 to vector<16x1xf32>
    %16 = arith.addf %14, %15 : vector<16x1xf32>
    %17 = tpu.reciprocal %16 {approx = true} : vector<16x1xf32> -> vector<16x1xf32>
    %18 = vector.broadcast %1 : vector<1x32xf32> to vector<16x32xf32>
    %19 = arith.mulf %18, %8 : vector<16x32xf32>
    %20 = vector.broadcast %17 : vector<16x1xf32> to vector<16x32xf32>
    %21 = arith.mulf %19, %20 : vector<16x32xf32>
    %22 = vector.broadcast %2 : vector<1x32xf32> to vector<16x32xf32>
    %23 = arith.addf %21, %22 : vector<16x32xf32>
    %24 = arith.truncf %23 : vector<16x32xf32> to vector<16x32xbf16>
    %c0_9 = arith.constant 0 : index
    %c0_10 = arith.constant 0 : index
    %25 = vector.load %arg4[%c0_9, %c0_10] : memref<32x96xbf16, #tpu.memory_space<vmem>>, vector<32x96xbf16>
    %cst_11 = arith.constant dense<0.000000e+00> : vector<16x96xf32>
    %26 = tpu.matmul %24, %25, %cst_11 {dimension_numbers = #tpu.dot_dimension_numbers<[1], [0], [0], [1], [0, 0, 1, 1], [], []>} : vector<16x32xbf16>, vector<32x96xbf16>, vector<16x96xf32> -> vector<16x96xf32>
    %c0_12 = arith.constant 0 : index
    %c0_13 = arith.constant 0 : index
    %27 = vector.load %arg5[%c0_12, %c0_13] : memref<1x96xf32, #tpu.memory_space<vmem>>, vector<1x96xf32>
    %28 = vector.broadcast %27 : vector<1x96xf32> to vector<16x96xf32>
    %29 = arith.addf %26, %28 : vector<16x96xf32>
    %30 = arith.truncf %29 : vector<16x96xf32> to vector<16x96xbf16>
    %c0_14 = arith.constant 0 : index
    %c0_15 = arith.constant 0 : index
    %31 = vector.load %arg6[%c0_14, %c0_15] : memref<16x96xbf16, #tpu.memory_space<vmem>>, vector<16x96xbf16>
    tpu.vector_store %arg6[%c0_14, %c0_15], %30 {strides = array<i32>} : memref<16x96xbf16, #tpu.memory_space<vmem>>, vector<16x96xbf16>,
    return
  }
  func.func @transform_0(%arg0: i32) -> (i32, i32) {
    %c0_i32 = arith.constant 0 : i32
    %c0_i32_0 = arith.constant 0 : i32
    return %arg0, %c0_i32 : i32, i32
  }
  func.func @transform_1(%arg0: i32) -> (i32, i32) {
    %c0_i32 = arith.constant 0 : i32
    %c0_i32_0 = arith.constant 0 : i32
    %c0_i32_1 = arith.constant 0 : i32
    return %c0_i32, %c0_i32_0 : i32, i32
  }
  func.func @transform_2(%arg0: i32) -> (i32, i32) {
    %c0_i32 = arith.constant 0 : i32
    %c0_i32_0 = arith.constant 0 : i32
    %c0_i32_1 = arith.constant 0 : i32
    return %c0_i32, %c0_i32_0 : i32, i32
  }
  func.func @transform_3(%arg0: i32) -> (i32, i32) {
    %c0_i32 = arith.constant 0 : i32
    %c0_i32_0 = arith.constant 0 : i32
    %c0_i32_1 = arith.constant 0 : i32
    return %c0_i32, %c0_i32_0 : i32, i32
  }
  func.func @transform_4(%arg0: i32) -> (i32, i32) {
    %c0_i32 = arith.constant 0 : i32
    %c0_i32_0 = arith.constant 0 : i32
    %c0_i32_1 = arith.constant 0 : i32
    return %c0_i32, %c0_i32_0 : i32, i32
  }
  func.func @transform_5(%arg0: i32) -> (i32, i32) {
    %c0_i32 = arith.constant 0 : i32
    %c0_i32_0 = arith.constant 0 : i32
    return %arg0, %c0_i32 : i32, i32
  }
}

module attributes {stable_mosaic.version = 11 : i64} {
  func.func @_linear_res_kernel(%arg0: i32, %arg1: memref<16x32xbf16, #tpu.memory_space<vmem>>, %arg2: memref<32x32xbf16, #tpu.memory_space<vmem>>, %arg3: memref<1x32xf32, #tpu.memory_space<vmem>>, %arg4: memref<16x32xf32, #tpu.memory_space<vmem>>, %arg5: memref<16x32xf32, #tpu.memory_space<vmem>>) attributes {dimension_semantics = [#tpu.dimension_semantics<parallel>], iteration_bounds = array<i64: 1>, scalar_prefetch = 0 : i64, scratch_operands = 0 : i64, tpu.core_type = #tpu.core_type<tc>, window_params = [{transform_indices = @transform_0, window_bounds = array<i64: 16, 32>}, {pipeline_mode = #tpu.pipeline_mode<synchronous>, transform_indices = @transform_1, window_bounds = array<i64: 32, 32>}, {pipeline_mode = #tpu.pipeline_mode<synchronous>, transform_indices = @transform_2, window_bounds = array<i64: 1, 32>}, {transform_indices = @transform_3, window_bounds = array<i64: 16, 32>}, {transform_indices = @transform_4, window_bounds = array<i64: 16, 32>}]} {
    %c0 = arith.constant 0 : index
    %c0_0 = arith.constant 0 : index
    %0 = vector.load %arg1[%c0, %c0_0] : memref<16x32xbf16, #tpu.memory_space<vmem>>, vector<16x32xbf16>
    %c0_1 = arith.constant 0 : index
    %c0_2 = arith.constant 0 : index
    %1 = vector.load %arg2[%c0_1, %c0_2] : memref<32x32xbf16, #tpu.memory_space<vmem>>, vector<32x32xbf16>
    %cst = arith.constant dense<0.000000e+00> : vector<16x32xf32>
    %2 = tpu.matmul %0, %1, %cst {dimension_numbers = #tpu.dot_dimension_numbers<[1], [0], [0], [1], [0, 0, 1, 1], [], []>} : vector<16x32xbf16>, vector<32x32xbf16>, vector<16x32xf32> -> vector<16x32xf32>
    %c0_3 = arith.constant 0 : index
    %c0_4 = arith.constant 0 : index
    %3 = vector.load %arg3[%c0_3, %c0_4] : memref<1x32xf32, #tpu.memory_space<vmem>>, vector<1x32xf32>
    %4 = vector.broadcast %3 : vector<1x32xf32> to vector<16x32xf32>
    %5 = arith.addf %2, %4 : vector<16x32xf32>
    %c0_5 = arith.constant 0 : index
    %c0_6 = arith.constant 0 : index
    %6 = vector.load %arg4[%c0_5, %c0_6] : memref<16x32xf32, #tpu.memory_space<vmem>>, vector<16x32xf32>
    %7 = arith.addf %5, %6 : vector<16x32xf32>
    %c0_7 = arith.constant 0 : index
    %c0_8 = arith.constant 0 : index
    %8 = vector.load %arg5[%c0_7, %c0_8] : memref<16x32xf32, #tpu.memory_space<vmem>>, vector<16x32xf32>
    tpu.vector_store %arg5[%c0_7, %c0_8], %7 {strides = array<i32>} : memref<16x32xf32, #tpu.memory_space<vmem>>, vector<16x32xf32>,
    return
  }
  func.func @transform_0(%arg0: i32) -> (i32, i32) {
    %c0_i32 = arith.constant 0 : i32
    %c0_i32_0 = arith.constant 0 : i32
    return %arg0, %c0_i32 : i32, i32
  }
  func.func @transform_1(%arg0: i32) -> (i32, i32) {
    %c0_i32 = arith.constant 0 : i32
    %c0_i32_0 = arith.constant 0 : i32
    %c0_i32_1 = arith.constant 0 : i32
    return %c0_i32, %c0_i32_0 : i32, i32
  }
  func.func @transform_2(%arg0: i32) -> (i32, i32) {
    %c0_i32 = arith.constant 0 : i32
    %c0_i32_0 = arith.constant 0 : i32
    %c0_i32_1 = arith.constant 0 : i32
    return %c0_i32, %c0_i32_0 : i32, i32
  }
  func.func @transform_3(%arg0: i32) -> (i32, i32) {
    %c0_i32 = arith.constant 0 : i32
    %c0_i32_0 = arith.constant 0 : i32
    return %arg0, %c0_i32 : i32, i32
  }
  func.func @transform_4(%arg0: i32) -> (i32, i32) {
    %c0_i32 = arith.constant 0 : i32
    %c0_i32_0 = arith.constant 0 : i32
    return %arg0, %c0_i32 : i32, i32
  }
}

module attributes {stable_mosaic.version = 11 : i64} {
  func.func @_flash_attn_kernel(%arg0: i32, %arg1: i32, %arg2: i32, %arg3: i32, %arg4: memref<1x1x1x8x8xbf16, #tpu.memory_space<vmem>>, %arg5: memref<1x1x1x8x8xbf16, #tpu.memory_space<vmem>>, %arg6: memref<1x1x1x8x8xbf16, #tpu.memory_space<vmem>>, %arg7: memref<1x1x8xf32, #tpu.memory_space<vmem>>, %arg8: memref<1x1x8x8xbf16, #tpu.memory_space<vmem>>, %arg9: memref<8x1xf32, #tpu.memory_space<vmem>>, %arg10: memref<8x1xf32, #tpu.memory_space<vmem>>, %arg11: memref<8x8xf32, #tpu.memory_space<vmem>>) attributes {dimension_semantics = [#tpu.dimension_semantics<parallel>, #tpu.dimension_semantics<parallel>, #tpu.dimension_semantics<parallel>, #tpu.dimension_semantics<arbitrary>], iteration_bounds = array<i64: 2, 4, 1, 1>, scalar_prefetch = 0 : i64, scratch_operands = 3 : i64, tpu.core_type = #tpu.core_type<tc>, window_params = [{transform_indices = @transform_0, window_bounds = array<i64: 1, 1, 1, 8, 8>}, {transform_indices = @transform_1, window_bounds = array<i64: 1, 1, 1, 8, 8>}, {transform_indices = @transform_2, window_bounds = array<i64: 1, 1, 1, 8, 8>}, {transform_indices = @transform_3, window_bounds = array<i64: 1, 1, 8>}, {transform_indices = @transform_4, window_bounds = array<i64: 1, 1, 8, 8>}]} {
    %c0_i32 = arith.constant 0 : i32
    %0 = arith.cmpi eq, %arg3, %c0_i32 : i32
    %1 = arith.extui %0 : i1 to i32
    %c0_i32_0 = arith.constant 0 : i32
    %2 = arith.cmpi ne, %1, %c0_i32_0 : i32
    scf.if %2 {
      %cst_40 = arith.constant 0xFF800000 : f32
      %56 = vector.broadcast %cst_40 : f32 to vector<8x1xf32>
      %c0_41 = arith.constant 0 : index
      %c0_42 = arith.constant 0 : index
      %57 = vector.load %arg9[%c0_41, %c0_42] : memref<8x1xf32, #tpu.memory_space<vmem>>, vector<8x1xf32>
      tpu.vector_store %arg9[%c0_41, %c0_42], %56 {strides = array<i32>} : memref<8x1xf32, #tpu.memory_space<vmem>>, vector<8x1xf32>,
      %cst_43 = arith.constant 0.000000e+00 : f32
      %58 = vector.broadcast %cst_43 : f32 to vector<8x1xf32>
      %c0_44 = arith.constant 0 : index
      %c0_45 = arith.constant 0 : index
      %59 = vector.load %arg10[%c0_44, %c0_45] : memref<8x1xf32, #tpu.memory_space<vmem>>, vector<8x1xf32>
      tpu.vector_store %arg10[%c0_44, %c0_45], %58 {strides = array<i32>} : memref<8x1xf32, #tpu.memory_space<vmem>>, vector<8x1xf32>,
      %cst_46 = arith.constant 0.000000e+00 : f32
      %60 = vector.broadcast %cst_46 : f32 to vector<8x8xf32>
      %c0_47 = arith.constant 0 : index
      %c0_48 = arith.constant 0 : index
      %61 = vector.load %arg11[%c0_47, %c0_48] : memref<8x8xf32, #tpu.memory_space<vmem>>, vector<8x8xf32>
      tpu.vector_store %arg11[%c0_47, %c0_48], %60 {strides = array<i32>} : memref<8x8xf32, #tpu.memory_space<vmem>>, vector<8x8xf32>,
    } else {
    }
    %c0 = arith.constant 0 : index
    %c0_1 = arith.constant 0 : index
    %c0_2 = arith.constant 0 : index
    %c0_3 = arith.constant 0 : index
    %c0_4 = arith.constant 0 : index
    %3 = vector.load %arg4[%c0, %c0_1, %c0_2, %c0_3, %c0_4] : memref<1x1x1x8x8xbf16, #tpu.memory_space<vmem>>, vector<1x1x1x8x8xbf16>
    %4 = vector.shape_cast %3 : vector<1x1x1x8x8xbf16> to vector<8x8xbf16>
    %c0_5 = arith.constant 0 : index
    %c0_6 = arith.constant 0 : index
    %c0_7 = arith.constant 0 : index
    %c0_8 = arith.constant 0 : index
    %c0_9 = arith.constant 0 : index
    %5 = vector.load %arg5[%c0_5, %c0_6, %c0_7, %c0_8, %c0_9] : memref<1x1x1x8x8xbf16, #tpu.memory_space<vmem>>, vector<1x1x1x8x8xbf16>
    %6 = vector.shape_cast %5 : vector<1x1x1x8x8xbf16> to vector<8x8xbf16>
    %c0_10 = arith.constant 0 : index
    %c0_11 = arith.constant 0 : index
    %c0_12 = arith.constant 0 : index
    %c0_13 = arith.constant 0 : index
    %c0_14 = arith.constant 0 : index
    %7 = vector.load %arg6[%c0_10, %c0_11, %c0_12, %c0_13, %c0_14] : memref<1x1x1x8x8xbf16, #tpu.memory_space<vmem>>, vector<1x1x1x8x8xbf16>
    %8 = vector.shape_cast %7 : vector<1x1x1x8x8xbf16> to vector<8x8xbf16>
    %cst = arith.constant dense<0.000000e+00> : vector<8x8xf32>
    %9 = tpu.matmul %4, %6, %cst {dimension_numbers = #tpu.dot_dimension_numbers<[1], [1], [0], [0], [0, 0, 1, 0], [], []>} : vector<8x8xbf16>, vector<8x8xbf16>, vector<8x8xf32> -> vector<8x8xf32>
    %c0_15 = arith.constant 0 : index
    %c0_16 = arith.constant 0 : index
    %c0_17 = arith.constant 0 : index
    %10 = vector.load %arg7[%c0_15, %c0_16, %c0_17] : memref<1x1x8xf32, #tpu.memory_space<vmem>>, vector<1x1x8xf32>
    %11 = vector.shape_cast %10 : vector<1x1x8xf32> to vector<1x8xf32>
    %cst_18 = arith.constant 5.000000e-01 : f32
    %12 = vector.broadcast %cst_18 : f32 to vector<1x8xf32>
    %13 = arith.cmpf ogt, %11, %12 : vector<1x8xf32>
    %cst_19 = arith.constant 0.000000e+00 : f32
    %cst_20 = arith.constant -1.000000e+09 : f32
    %14 = vector.broadcast %cst_19 : f32 to vector<1x8xf32>
    %15 = vector.broadcast %cst_20 : f32 to vector<1x8xf32>
    %16 = arith.select %13, %14, %15 : vector<1x8xi1>, vector<1x8xf32>
    %17 = vector.broadcast %16 : vector<1x8xf32> to vector<8x8xf32>
    %18 = arith.addf %9, %17 : vector<8x8xf32>
    %c8_i32 = arith.constant 8 : i32
    %19 = arith.muli %arg2, %c8_i32 : i32
    %c8_i32_21 = arith.constant 8 : i32
    %20 = arith.muli %arg3, %c8_i32_21 : i32
    %21 = tpu.iota {dimensions = array<i32: 0>} : vector<8x8xi32>
    %22 = vector.broadcast %19 : i32 to vector<8x8xi32>
    %23 = arith.addi %21, %22 : vector<8x8xi32>
    %24 = tpu.iota {dimensions = array<i32: 1>} : vector<8x8xi32>
    %25 = vector.broadcast %20 : i32 to vector<8x8xi32>
    %26 = arith.addi %24, %25 : vector<8x8xi32>
    %27 = arith.cmpi sge, %23, %26 : vector<8x8xi32>
    %cst_22 = arith.constant -1.000000e+09 : f32
    %28 = vector.broadcast %cst_22 : f32 to vector<8x8xf32>
    %29 = arith.select %27, %18, %28 : vector<8x8xi1>, vector<8x8xf32>
    %c0_23 = arith.constant 0 : index
    %c0_24 = arith.constant 0 : index
    %30 = vector.load %arg9[%c0_23, %c0_24] : memref<8x1xf32, #tpu.memory_space<vmem>>, vector<8x1xf32>
    %cst_25 = arith.constant dense<0xFF800000> : vector<8xf32>
    %31 = vector.multi_reduction <maximumf>, %29, %cst_25 [1] : vector<8x8xf32> to vector<8xf32>
    %32 = vector.shape_cast %31 : vector<8xf32> to vector<8x1xf32>
    %33 = arith.maximumf %30, %32 : vector<8x1xf32>
    %34 = arith.subf %30, %33 : vector<8x1xf32>
    %35 = math.exp %34 : vector<8x1xf32>
    %36 = vector.broadcast %33 : vector<8x1xf32> to vector<8x8xf32>
    %37 = arith.subf %29, %36 : vector<8x8xf32>
    %38 = math.exp %37 : vector<8x8xf32>
    %c0_26 = arith.constant 0 : index
    %c0_27 = arith.constant 0 : index
    %39 = vector.load %arg10[%c0_26, %c0_27] : memref<8x1xf32, #tpu.memory_space<vmem>>, vector<8x1xf32>
    %40 = arith.mulf %35, %39 : vector<8x1xf32>
    %cst_28 = arith.constant dense<0.000000e+00> : vector<8xf32>
    %41 = vector.multi_reduction <add>, %38, %cst_28 [1] : vector<8x8xf32> to vector<8xf32>
    %42 = vector.shape_cast %41 : vector<8xf32> to vector<8x1xf32>
    %43 = arith.addf %40, %42 : vector<8x1xf32>
    %c0_29 = arith.constant 0 : index
    %c0_30 = arith.constant 0 : index
    %44 = vector.load %arg10[%c0_29, %c0_30] : memref<8x1xf32, #tpu.memory_space<vmem>>, vector<8x1xf32>
    tpu.vector_store %arg10[%c0_29, %c0_30], %43 {strides = array<i32>} : memref<8x1xf32, #tpu.memory_space<vmem>>, vector<8x1xf32>,
    %c0_31 = arith.constant 0 : index
    %c0_32 = arith.constant 0 : index
    %45 = vector.load %arg11[%c0_31, %c0_32] : memref<8x8xf32, #tpu.memory_space<vmem>>, vector<8x8xf32>
    %46 = vector.broadcast %35 : vector<8x1xf32> to vector<8x8xf32>
    %47 = arith.mulf %46, %45 : vector<8x8xf32>
    %48 = arith.truncf %38 : vector<8x8xf32> to vector<8x8xbf16>
    %cst_33 = arith.constant dense<0.000000e+00> : vector<8x8xf32>
    %49 = tpu.matmul %48, %8, %cst_33 {dimension_numbers = #tpu.dot_dimension_numbers<[1], [0], [0], [1], [0, 0, 1, 1], [], []>} : vector<8x8xbf16>, vector<8x8xbf16>, vector<8x8xf32> -> vector<8x8xf32>
    %50 = arith.addf %47, %49 : vector<8x8xf32>
    %c0_34 = arith.constant 0 : index
    %c0_35 = arith.constant 0 : index
    %51 = vector.load %arg11[%c0_34, %c0_35] : memref<8x8xf32, #tpu.memory_space<vmem>>, vector<8x8xf32>
    tpu.vector_store %arg11[%c0_34, %c0_35], %50 {strides = array<i32>} : memref<8x8xf32, #tpu.memory_space<vmem>>, vector<8x8xf32>,
    %c0_36 = arith.constant 0 : index
    %c0_37 = arith.constant 0 : index
    %52 = vector.load %arg9[%c0_36, %c0_37] : memref<8x1xf32, #tpu.memory_space<vmem>>, vector<8x1xf32>
    tpu.vector_store %arg9[%c0_36, %c0_37], %33 {strides = array<i32>} : memref<8x1xf32, #tpu.memory_space<vmem>>, vector<8x1xf32>,
    %c0_i32_38 = arith.constant 0 : i32
    %53 = arith.cmpi eq, %arg3, %c0_i32_38 : i32
    %54 = arith.extui %53 : i1 to i32
    %c0_i32_39 = arith.constant 0 : i32
    %55 = arith.cmpi ne, %54, %c0_i32_39 : i32
    scf.if %55 {
      %c0_40 = arith.constant 0 : index
      %c0_41 = arith.constant 0 : index
      %56 = vector.load %arg11[%c0_40, %c0_41] : memref<8x8xf32, #tpu.memory_space<vmem>>, vector<8x8xf32>
      %c0_42 = arith.constant 0 : index
      %c0_43 = arith.constant 0 : index
      %57 = vector.load %arg10[%c0_42, %c0_43] : memref<8x1xf32, #tpu.memory_space<vmem>>, vector<8x1xf32>
      %58 = tpu.reciprocal %57 {approx = true} : vector<8x1xf32> -> vector<8x1xf32>
      %59 = vector.broadcast %58 : vector<8x1xf32> to vector<8x8xf32>
      %60 = arith.mulf %56, %59 : vector<8x8xf32>
      %61 = arith.truncf %60 : vector<8x8xf32> to vector<8x8xbf16>
      %c0_44 = arith.constant 0 : index
      %c0_45 = arith.constant 0 : index
      %c0_46 = arith.constant 0 : index
      %c0_47 = arith.constant 0 : index
      %62 = vector.load %arg8[%c0_44, %c0_45, %c0_46, %c0_47] : memref<1x1x8x8xbf16, #tpu.memory_space<vmem>>, vector<1x1x8x8xbf16>
      %63 = vector.shape_cast %62 : vector<1x1x8x8xbf16> to vector<8x8xbf16>
      %64 = vector.shape_cast %61 : vector<8x8xbf16> to vector<1x1x8x8xbf16>
      tpu.vector_store %arg8[%c0_44, %c0_45, %c0_46, %c0_47], %64 {strides = array<i32>} : memref<1x1x8x8xbf16, #tpu.memory_space<vmem>>, vector<1x1x8x8xbf16>,
    } else {
    }
    return
  }
  func.func @transform_0(%arg0: i32, %arg1: i32, %arg2: i32, %arg3: i32) -> (i32, i32, i32, i32, i32) {
    %c0_i32 = arith.constant 0 : i32
    %c0_i32_0 = arith.constant 0 : i32
    %c0_i32_1 = arith.constant 0 : i32
    return %c0_i32, %arg0, %arg1, %arg2, %c0_i32_0 : i32, i32, i32, i32, i32
  }
  func.func @transform_1(%arg0: i32, %arg1: i32, %arg2: i32, %arg3: i32) -> (i32, i32, i32, i32, i32) {
    %c1_i32 = arith.constant 1 : i32
    %c0_i32 = arith.constant 0 : i32
    %c0_i32_0 = arith.constant 0 : i32
    return %c1_i32, %arg0, %arg1, %arg3, %c0_i32 : i32, i32, i32, i32, i32
  }
  func.func @transform_2(%arg0: i32, %arg1: i32, %arg2: i32, %arg3: i32) -> (i32, i32, i32, i32, i32) {
    %c2_i32 = arith.constant 2 : i32
    %c0_i32 = arith.constant 0 : i32
    %c0_i32_0 = arith.constant 0 : i32
    return %c2_i32, %arg0, %arg1, %arg3, %c0_i32 : i32, i32, i32, i32, i32
  }
  func.func @transform_3(%arg0: i32, %arg1: i32, %arg2: i32, %arg3: i32) -> (i32, i32, i32) {
    %c0_i32 = arith.constant 0 : i32
    %c0_i32_0 = arith.constant 0 : i32
    return %arg0, %c0_i32, %arg3 : i32, i32, i32
  }
  func.func @transform_4(%arg0: i32, %arg1: i32, %arg2: i32, %arg3: i32) -> (i32, i32, i32, i32) {
    %c0_i32 = arith.constant 0 : i32
    %c0_i32_0 = arith.constant 0 : i32
    return %arg0, %arg1, %arg2, %c0_i32 : i32, i32, i32, i32
  }
}

module attributes {stable_mosaic.version = 11 : i64} {
  func.func @_norm_matmul_kernel(%arg0: i32, %arg1: memref<16x32xf32, #tpu.memory_space<vmem>>, %arg2: memref<1x32xf32, #tpu.memory_space<vmem>>, %arg3: memref<1x32xf32, #tpu.memory_space<vmem>>, %arg4: memref<32x32xbf16, #tpu.memory_space<vmem>>, %arg5: memref<1x32xf32, #tpu.memory_space<vmem>>, %arg6: memref<16x32xbf16, #tpu.memory_space<vmem>>) attributes {dimension_semantics = [#tpu.dimension_semantics<parallel>], iteration_bounds = array<i64: 1>, scalar_prefetch = 0 : i64, scratch_operands = 0 : i64, tpu.core_type = #tpu.core_type<tc>, window_params = [{transform_indices = @transform_0, window_bounds = array<i64: 16, 32>}, {pipeline_mode = #tpu.pipeline_mode<synchronous>, transform_indices = @transform_1, window_bounds = array<i64: 1, 32>}, {pipeline_mode = #tpu.pipeline_mode<synchronous>, transform_indices = @transform_2, window_bounds = array<i64: 1, 32>}, {pipeline_mode = #tpu.pipeline_mode<synchronous>, transform_indices = @transform_3, window_bounds = array<i64: 32, 32>}, {pipeline_mode = #tpu.pipeline_mode<synchronous>, transform_indices = @transform_4, window_bounds = array<i64: 1, 32>}, {transform_indices = @transform_5, window_bounds = array<i64: 16, 32>}]} {
    %c0 = arith.constant 0 : index
    %c0_0 = arith.constant 0 : index
    %0 = vector.load %arg1[%c0, %c0_0] : memref<16x32xf32, #tpu.memory_space<vmem>>, vector<16x32xf32>
    %c0_1 = arith.constant 0 : index
    %c0_2 = arith.constant 0 : index
    %1 = vector.load %arg2[%c0_1, %c0_2] : memref<1x32xf32, #tpu.memory_space<vmem>>, vector<1x32xf32>
    %c0_3 = arith.constant 0 : index
    %c0_4 = arith.constant 0 : index
    %2 = vector.load %arg3[%c0_3, %c0_4] : memref<1x32xf32, #tpu.memory_space<vmem>>, vector<1x32xf32>
    %cst = arith.constant dense<0.000000e+00> : vector<16xf32>
    %3 = vector.multi_reduction <add>, %0, %cst [1] : vector<16x32xf32> to vector<16xf32>
    %4 = vector.shape_cast %3 : vector<16xf32> to vector<16x1xf32>
    %cst_5 = arith.constant 3.200000e+01 : f32
    %5 = vector.broadcast %cst_5 : f32 to vector<16x1xf32>
    %6 = arith.divf %4, %5 : vector<16x1xf32>
    %7 = vector.broadcast %6 : vector<16x1xf32> to vector<16x32xf32>
    %8 = arith.subf %0, %7 : vector<16x32xf32>
    %9 = arith.mulf %8, %8 : vector<16x32xf32>
    %cst_6 = arith.constant dense<0.000000e+00> : vector<16xf32>
    %10 = vector.multi_reduction <add>, %9, %cst_6 [1] : vector<16x32xf32> to vector<16xf32>
    %11 = vector.shape_cast %10 : vector<16xf32> to vector<16x1xf32>
    %cst_7 = arith.constant 0.0322580636 : f32
    %12 = vector.broadcast %cst_7 : f32 to vector<16x1xf32>
    %13 = arith.mulf %11, %12 : vector<16x1xf32>
    %14 = math.sqrt %13 : vector<16x1xf32>
    %cst_8 = arith.constant 9.99999997E-7 : f32
    %15 = vector.broadcast %cst_8 : f32 to vector<16x1xf32>
    %16 = arith.addf %14, %15 : vector<16x1xf32>
    %17 = tpu.reciprocal %16 {approx = true} : vector<16x1xf32> -> vector<16x1xf32>
    %18 = vector.broadcast %1 : vector<1x32xf32> to vector<16x32xf32>
    %19 = arith.mulf %18, %8 : vector<16x32xf32>
    %20 = vector.broadcast %17 : vector<16x1xf32> to vector<16x32xf32>
    %21 = arith.mulf %19, %20 : vector<16x32xf32>
    %22 = vector.broadcast %2 : vector<1x32xf32> to vector<16x32xf32>
    %23 = arith.addf %21, %22 : vector<16x32xf32>
    %24 = arith.truncf %23 : vector<16x32xf32> to vector<16x32xbf16>
    %c0_9 = arith.constant 0 : index
    %c0_10 = arith.constant 0 : index
    %25 = vector.load %arg4[%c0_9, %c0_10] : memref<32x32xbf16, #tpu.memory_space<vmem>>, vector<32x32xbf16>
    %cst_11 = arith.constant dense<0.000000e+00> : vector<16x32xf32>
    %26 = tpu.matmul %24, %25, %cst_11 {dimension_numbers = #tpu.dot_dimension_numbers<[1], [0], [0], [1], [0, 0, 1, 1], [], []>} : vector<16x32xbf16>, vector<32x32xbf16>, vector<16x32xf32> -> vector<16x32xf32>
    %c0_12 = arith.constant 0 : index
    %c0_13 = arith.constant 0 : index
    %27 = vector.load %arg5[%c0_12, %c0_13] : memref<1x32xf32, #tpu.memory_space<vmem>>, vector<1x32xf32>
    %28 = vector.broadcast %27 : vector<1x32xf32> to vector<16x32xf32>
    %29 = arith.addf %26, %28 : vector<16x32xf32>
    %30 = arith.truncf %29 : vector<16x32xf32> to vector<16x32xbf16>
    %c0_14 = arith.constant 0 : index
    %c0_15 = arith.constant 0 : index
    %31 = vector.load %arg6[%c0_14, %c0_15] : memref<16x32xbf16, #tpu.memory_space<vmem>>, vector<16x32xbf16>
    tpu.vector_store %arg6[%c0_14, %c0_15], %30 {strides = array<i32>} : memref<16x32xbf16, #tpu.memory_space<vmem>>, vector<16x32xbf16>,
    return
  }
  func.func @transform_0(%arg0: i32) -> (i32, i32) {
    %c0_i32 = arith.constant 0 : i32
    %c0_i32_0 = arith.constant 0 : i32
    return %arg0, %c0_i32 : i32, i32
  }
  func.func @transform_1(%arg0: i32) -> (i32, i32) {
    %c0_i32 = arith.constant 0 : i32
    %c0_i32_0 = arith.constant 0 : i32
    %c0_i32_1 = arith.constant 0 : i32
    return %c0_i32, %c0_i32_0 : i32, i32
  }
  func.func @transform_2(%arg0: i32) -> (i32, i32) {
    %c0_i32 = arith.constant 0 : i32
    %c0_i32_0 = arith.constant 0 : i32
    %c0_i32_1 = arith.constant 0 : i32
    return %c0_i32, %c0_i32_0 : i32, i32
  }
  func.func @transform_3(%arg0: i32) -> (i32, i32) {
    %c0_i32 = arith.constant 0 : i32
    %c0_i32_0 = arith.constant 0 : i32
    %c0_i32_1 = arith.constant 0 : i32
    return %c0_i32, %c0_i32_0 : i32, i32
  }
  func.func @transform_4(%arg0: i32) -> (i32, i32) {
    %c0_i32 = arith.constant 0 : i32
    %c0_i32_0 = arith.constant 0 : i32
    %c0_i32_1 = arith.constant 0 : i32
    return %c0_i32, %c0_i32_0 : i32, i32
  }
  func.func @transform_5(%arg0: i32) -> (i32, i32) {
    %c0_i32 = arith.constant 0 : i32
    %c0_i32_0 = arith.constant 0 : i32
    return %arg0, %c0_i32 : i32, i32
  }
}

module attributes {stable_mosaic.version = 11 : i64} {
  func.func @_flash_attn_kernel(%arg0: i32, %arg1: i32, %arg2: i32, %arg3: i32, %arg4: memref<1x1x1x8x8xbf16, #tpu.memory_space<vmem>>, %arg5: memref<1x1x1x8x8xbf16, #tpu.memory_space<vmem>>, %arg6: memref<1x1x1x8x8xbf16, #tpu.memory_space<vmem>>, %arg7: memref<1x1x8xf32, #tpu.memory_space<vmem>>, %arg8: memref<1x1x8x8xbf16, #tpu.memory_space<vmem>>, %arg9: memref<8x1xf32, #tpu.memory_space<vmem>>, %arg10: memref<8x1xf32, #tpu.memory_space<vmem>>, %arg11: memref<8x8xf32, #tpu.memory_space<vmem>>) attributes {dimension_semantics = [#tpu.dimension_semantics<parallel>, #tpu.dimension_semantics<parallel>, #tpu.dimension_semantics<parallel>, #tpu.dimension_semantics<arbitrary>], iteration_bounds = array<i64: 2, 4, 1, 1>, scalar_prefetch = 0 : i64, scratch_operands = 3 : i64, tpu.core_type = #tpu.core_type<tc>, window_params = [{transform_indices = @transform_0, window_bounds = array<i64: 1, 1, 1, 8, 8>}, {transform_indices = @transform_1, window_bounds = array<i64: 1, 1, 1, 8, 8>}, {transform_indices = @transform_2, window_bounds = array<i64: 1, 1, 1, 8, 8>}, {transform_indices = @transform_3, window_bounds = array<i64: 1, 1, 8>}, {transform_indices = @transform_4, window_bounds = array<i64: 1, 1, 8, 8>}]} {
    %c0_i32 = arith.constant 0 : i32
    %0 = arith.cmpi eq, %arg3, %c0_i32 : i32
    %1 = arith.extui %0 : i1 to i32
    %c0_i32_0 = arith.constant 0 : i32
    %2 = arith.cmpi ne, %1, %c0_i32_0 : i32
    scf.if %2 {
      %cst_38 = arith.constant 0xFF800000 : f32
      %45 = vector.broadcast %cst_38 : f32 to vector<8x1xf32>
      %c0_39 = arith.constant 0 : index
      %c0_40 = arith.constant 0 : index
      %46 = vector.load %arg9[%c0_39, %c0_40] : memref<8x1xf32, #tpu.memory_space<vmem>>, vector<8x1xf32>
      tpu.vector_store %arg9[%c0_39, %c0_40], %45 {strides = array<i32>} : memref<8x1xf32, #tpu.memory_space<vmem>>, vector<8x1xf32>,
      %cst_41 = arith.constant 0.000000e+00 : f32
      %47 = vector.broadcast %cst_41 : f32 to vector<8x1xf32>
      %c0_42 = arith.constant 0 : index
      %c0_43 = arith.constant 0 : index
      %48 = vector.load %arg10[%c0_42, %c0_43] : memref<8x1xf32, #tpu.memory_space<vmem>>, vector<8x1xf32>
      tpu.vector_store %arg10[%c0_42, %c0_43], %47 {strides = array<i32>} : memref<8x1xf32, #tpu.memory_space<vmem>>, vector<8x1xf32>,
      %cst_44 = arith.constant 0.000000e+00 : f32
      %49 = vector.broadcast %cst_44 : f32 to vector<8x8xf32>
      %c0_45 = arith.constant 0 : index
      %c0_46 = arith.constant 0 : index
      %50 = vector.load %arg11[%c0_45, %c0_46] : memref<8x8xf32, #tpu.memory_space<vmem>>, vector<8x8xf32>
      tpu.vector_store %arg11[%c0_45, %c0_46], %49 {strides = array<i32>} : memref<8x8xf32, #tpu.memory_space<vmem>>, vector<8x8xf32>,
    } else {
    }
    %c0 = arith.constant 0 : index
    %c0_1 = arith.constant 0 : index
    %c0_2 = arith.constant 0 : index
    %c0_3 = arith.constant 0 : index
    %c0_4 = arith.constant 0 : index
    %3 = vector.load %arg4[%c0, %c0_1, %c0_2, %c0_3, %c0_4] : memref<1x1x1x8x8xbf16, #tpu.memory_space<vmem>>, vector<1x1x1x8x8xbf16>
    %4 = vector.shape_cast %3 : vector<1x1x1x8x8xbf16> to vector<8x8xbf16>
    %c0_5 = arith.constant 0 : index
    %c0_6 = arith.constant 0 : index
    %c0_7 = arith.constant 0 : index
    %c0_8 = arith.constant 0 : index
    %c0_9 = arith.constant 0 : index
    %5 = vector.load %arg5[%c0_5, %c0_6, %c0_7, %c0_8, %c0_9] : memref<1x1x1x8x8xbf16, #tpu.memory_space<vmem>>, vector<1x1x1x8x8xbf16>
    %6 = vector.shape_cast %5 : vector<1x1x1x8x8xbf16> to vector<8x8xbf16>
    %c0_10 = arith.constant 0 : index
    %c0_11 = arith.constant 0 : index
    %c0_12 = arith.constant 0 : index
    %c0_13 = arith.constant 0 : index
    %c0_14 = arith.constant 0 : index
    %7 = vector.load %arg6[%c0_10, %c0_11, %c0_12, %c0_13, %c0_14] : memref<1x1x1x8x8xbf16, #tpu.memory_space<vmem>>, vector<1x1x1x8x8xbf16>
    %8 = vector.shape_cast %7 : vector<1x1x1x8x8xbf16> to vector<8x8xbf16>
    %cst = arith.constant dense<0.000000e+00> : vector<8x8xf32>
    %9 = tpu.matmul %4, %6, %cst {dimension_numbers = #tpu.dot_dimension_numbers<[1], [1], [0], [0], [0, 0, 1, 0], [], []>} : vector<8x8xbf16>, vector<8x8xbf16>, vector<8x8xf32> -> vector<8x8xf32>
    %c0_15 = arith.constant 0 : index
    %c0_16 = arith.constant 0 : index
    %c0_17 = arith.constant 0 : index
    %10 = vector.load %arg7[%c0_15, %c0_16, %c0_17] : memref<1x1x8xf32, #tpu.memory_space<vmem>>, vector<1x1x8xf32>
    %11 = vector.shape_cast %10 : vector<1x1x8xf32> to vector<1x8xf32>
    %cst_18 = arith.constant 5.000000e-01 : f32
    %12 = vector.broadcast %cst_18 : f32 to vector<1x8xf32>
    %13 = arith.cmpf ogt, %11, %12 : vector<1x8xf32>
    %cst_19 = arith.constant 0.000000e+00 : f32
    %cst_20 = arith.constant -1.000000e+09 : f32
    %14 = vector.broadcast %cst_19 : f32 to vector<1x8xf32>
    %15 = vector.broadcast %cst_20 : f32 to vector<1x8xf32>
    %16 = arith.select %13, %14, %15 : vector<1x8xi1>, vector<1x8xf32>
    %17 = vector.broadcast %16 : vector<1x8xf32> to vector<8x8xf32>
    %18 = arith.addf %9, %17 : vector<8x8xf32>
    %c0_21 = arith.constant 0 : index
    %c0_22 = arith.constant 0 : index
    %19 = vector.load %arg9[%c0_21, %c0_22] : memref<8x1xf32, #tpu.memory_space<vmem>>, vector<8x1xf32>
    %cst_23 = arith.constant dense<0xFF800000> : vector<8xf32>
    %20 = vector.multi_reduction <maximumf>, %18, %cst_23 [1] : vector<8x8xf32> to vector<8xf32>
    %21 = vector.shape_cast %20 : vector<8xf32> to vector<8x1xf32>
    %22 = arith.maximumf %19, %21 : vector<8x1xf32>
    %23 = arith.subf %19, %22 : vector<8x1xf32>
    %24 = math.exp %23 : vector<8x1xf32>
    %25 = vector.broadcast %22 : vector<8x1xf32> to vector<8x8xf32>
    %26 = arith.subf %18, %25 : vector<8x8xf32>
    %27 = math.exp %26 : vector<8x8xf32>
    %c0_24 = arith.constant 0 : index
    %c0_25 = arith.constant 0 : index
    %28 = vector.load %arg10[%c0_24, %c0_25] : memref<8x1xf32, #tpu.memory_space<vmem>>, vector<8x1xf32>
    %29 = arith.mulf %24, %28 : vector<8x1xf32>
    %cst_26 = arith.constant dense<0.000000e+00> : vector<8xf32>
    %30 = vector.multi_reduction <add>, %27, %cst_26 [1] : vector<8x8xf32> to vector<8xf32>
    %31 = vector.shape_cast %30 : vector<8xf32> to vector<8x1xf32>
    %32 = arith.addf %29, %31 : vector<8x1xf32>
    %c0_27 = arith.constant 0 : index
    %c0_28 = arith.constant 0 : index
    %33 = vector.load %arg10[%c0_27, %c0_28] : memref<8x1xf32, #tpu.memory_space<vmem>>, vector<8x1xf32>
    tpu.vector_store %arg10[%c0_27, %c0_28], %32 {strides = array<i32>} : memref<8x1xf32, #tpu.memory_space<vmem>>, vector<8x1xf32>,
    %c0_29 = arith.constant 0 : index
    %c0_30 = arith.constant 0 : index
    %34 = vector.load %arg11[%c0_29, %c0_30] : memref<8x8xf32, #tpu.memory_space<vmem>>, vector<8x8xf32>
    %35 = vector.broadcast %24 : vector<8x1xf32> to vector<8x8xf32>
    %36 = arith.mulf %35, %34 : vector<8x8xf32>
    %37 = arith.truncf %27 : vector<8x8xf32> to vector<8x8xbf16>
    %cst_31 = arith.constant dense<0.000000e+00> : vector<8x8xf32>
    %38 = tpu.matmul %37, %8, %cst_31 {dimension_numbers = #tpu.dot_dimension_numbers<[1], [0], [0], [1], [0, 0, 1, 1], [], []>} : vector<8x8xbf16>, vector<8x8xbf16>, vector<8x8xf32> -> vector<8x8xf32>
    %39 = arith.addf %36, %38 : vector<8x8xf32>
    %c0_32 = arith.constant 0 : index
    %c0_33 = arith.constant 0 : index
    %40 = vector.load %arg11[%c0_32, %c0_33] : memref<8x8xf32, #tpu.memory_space<vmem>>, vector<8x8xf32>
    tpu.vector_store %arg11[%c0_32, %c0_33], %39 {strides = array<i32>} : memref<8x8xf32, #tpu.memory_space<vmem>>, vector<8x8xf32>,
    %c0_34 = arith.constant 0 : index
    %c0_35 = arith.constant 0 : index
    %41 = vector.load %arg9[%c0_34, %c0_35] : memref<8x1xf32, #tpu.memory_space<vmem>>, vector<8x1xf32>
    tpu.vector_store %arg9[%c0_34, %c0_35], %22 {strides = array<i32>} : memref<8x1xf32, #tpu.memory_space<vmem>>, vector<8x1xf32>,
    %c0_i32_36 = arith.constant 0 : i32
    %42 = arith.cmpi eq, %arg3, %c0_i32_36 : i32
    %43 = arith.extui %42 : i1 to i32
    %c0_i32_37 = arith.constant 0 : i32
    %44 = arith.cmpi ne, %43, %c0_i32_37 : i32
    scf.if %44 {
      %c0_38 = arith.constant 0 : index
      %c0_39 = arith.constant 0 : index
      %45 = vector.load %arg11[%c0_38, %c0_39] : memref<8x8xf32, #tpu.memory_space<vmem>>, vector<8x8xf32>
      %c0_40 = arith.constant 0 : index
      %c0_41 = arith.constant 0 : index
      %46 = vector.load %arg10[%c0_40, %c0_41] : memref<8x1xf32, #tpu.memory_space<vmem>>, vector<8x1xf32>
      %47 = tpu.reciprocal %46 {approx = true} : vector<8x1xf32> -> vector<8x1xf32>
      %48 = vector.broadcast %47 : vector<8x1xf32> to vector<8x8xf32>
      %49 = arith.mulf %45, %48 : vector<8x8xf32>
      %50 = arith.truncf %49 : vector<8x8xf32> to vector<8x8xbf16>
      %c0_42 = arith.constant 0 : index
      %c0_43 = arith.constant 0 : index
      %c0_44 = arith.constant 0 : index
      %c0_45 = arith.constant 0 : index
      %51 = vector.load %arg8[%c0_42, %c0_43, %c0_44, %c0_45] : memref<1x1x8x8xbf16, #tpu.memory_space<vmem>>, vector<1x1x8x8xbf16>
      %52 = vector.shape_cast %51 : vector<1x1x8x8xbf16> to vector<8x8xbf16>
      %53 = vector.shape_cast %50 : vector<8x8xbf16> to vector<1x1x8x8xbf16>
      tpu.vector_store %arg8[%c0_42, %c0_43, %c0_44, %c0_45], %53 {strides = array<i32>} : memref<1x1x8x8xbf16, #tpu.memory_space<vmem>>, vector<1x1x8x8xbf16>,
    } else {
    }
    return
  }
  func.func @transform_0(%arg0: i32, %arg1: i32, %arg2: i32, %arg3: i32) -> (i32, i32, i32, i32, i32) {
    %c0_i32 = arith.constant 0 : i32
    %c0_i32_0 = arith.constant 0 : i32
    %c0_i32_1 = arith.constant 0 : i32
    return %c0_i32, %arg0, %arg1, %arg2, %c0_i32_0 : i32, i32, i32, i32, i32
  }
  func.func @transform_1(%arg0: i32, %arg1: i32, %arg2: i32, %arg3: i32) -> (i32, i32, i32, i32, i32) {
    %c1_i32 = arith.constant 1 : i32
    %c0_i32 = arith.constant 0 : i32
    %c0_i32_0 = arith.constant 0 : i32
    return %c1_i32, %arg0, %arg1, %arg3, %c0_i32 : i32, i32, i32, i32, i32
  }
  func.func @transform_2(%arg0: i32, %arg1: i32, %arg2: i32, %arg3: i32) -> (i32, i32, i32, i32, i32) {
    %c2_i32 = arith.constant 2 : i32
    %c0_i32 = arith.constant 0 : i32
    %c0_i32_0 = arith.constant 0 : i32
    return %c2_i32, %arg0, %arg1, %arg3, %c0_i32 : i32, i32, i32, i32, i32
  }
  func.func @transform_3(%arg0: i32, %arg1: i32, %arg2: i32, %arg3: i32) -> (i32, i32, i32) {
    %c0_i32 = arith.constant 0 : i32
    %c0_i32_0 = arith.constant 0 : i32
    return %arg0, %c0_i32, %arg3 : i32, i32, i32
  }
  func.func @transform_4(%arg0: i32, %arg1: i32, %arg2: i32, %arg3: i32) -> (i32, i32, i32, i32) {
    %c0_i32 = arith.constant 0 : i32
    %c0_i32_0 = arith.constant 0 : i32
    return %arg0, %arg1, %arg2, %c0_i32 : i32, i32, i32, i32
  }
}

module attributes {stable_mosaic.version = 11 : i64} {
  func.func @_norm_ffn_res_kernel(%arg0: i32, %arg1: memref<16x32xf32, #tpu.memory_space<vmem>>, %arg2: memref<1x32xf32, #tpu.memory_space<vmem>>, %arg3: memref<1x32xf32, #tpu.memory_space<vmem>>, %arg4: memref<32x64xbf16, #tpu.memory_space<vmem>>, %arg5: memref<1x64xf32, #tpu.memory_space<vmem>>, %arg6: memref<64x32xbf16, #tpu.memory_space<vmem>>, %arg7: memref<1x32xf32, #tpu.memory_space<vmem>>, %arg8: memref<16x32xf32, #tpu.memory_space<vmem>>) attributes {dimension_semantics = [#tpu.dimension_semantics<parallel>], iteration_bounds = array<i64: 1>, scalar_prefetch = 0 : i64, scratch_operands = 0 : i64, tpu.core_type = #tpu.core_type<tc>, window_params = [{transform_indices = @transform_0, window_bounds = array<i64: 16, 32>}, {pipeline_mode = #tpu.pipeline_mode<synchronous>, transform_indices = @transform_1, window_bounds = array<i64: 1, 32>}, {pipeline_mode = #tpu.pipeline_mode<synchronous>, transform_indices = @transform_2, window_bounds = array<i64: 1, 32>}, {pipeline_mode = #tpu.pipeline_mode<synchronous>, transform_indices = @transform_3, window_bounds = array<i64: 32, 64>}, {pipeline_mode = #tpu.pipeline_mode<synchronous>, transform_indices = @transform_4, window_bounds = array<i64: 1, 64>}, {pipeline_mode = #tpu.pipeline_mode<synchronous>, transform_indices = @transform_5, window_bounds = array<i64: 64, 32>}, {pipeline_mode = #tpu.pipeline_mode<synchronous>, transform_indices = @transform_6, window_bounds = array<i64: 1, 32>}, {transform_indices = @transform_7, window_bounds = array<i64: 16, 32>}]} {
    %c0 = arith.constant 0 : index
    %c0_0 = arith.constant 0 : index
    %0 = vector.load %arg1[%c0, %c0_0] : memref<16x32xf32, #tpu.memory_space<vmem>>, vector<16x32xf32>
    %c0_1 = arith.constant 0 : index
    %c0_2 = arith.constant 0 : index
    %1 = vector.load %arg2[%c0_1, %c0_2] : memref<1x32xf32, #tpu.memory_space<vmem>>, vector<1x32xf32>
    %c0_3 = arith.constant 0 : index
    %c0_4 = arith.constant 0 : index
    %2 = vector.load %arg3[%c0_3, %c0_4] : memref<1x32xf32, #tpu.memory_space<vmem>>, vector<1x32xf32>
    %cst = arith.constant dense<0.000000e+00> : vector<16xf32>
    %3 = vector.multi_reduction <add>, %0, %cst [1] : vector<16x32xf32> to vector<16xf32>
    %4 = vector.shape_cast %3 : vector<16xf32> to vector<16x1xf32>
    %cst_5 = arith.constant 3.200000e+01 : f32
    %5 = vector.broadcast %cst_5 : f32 to vector<16x1xf32>
    %6 = arith.divf %4, %5 : vector<16x1xf32>
    %7 = vector.broadcast %6 : vector<16x1xf32> to vector<16x32xf32>
    %8 = arith.subf %0, %7 : vector<16x32xf32>
    %9 = arith.mulf %8, %8 : vector<16x32xf32>
    %cst_6 = arith.constant dense<0.000000e+00> : vector<16xf32>
    %10 = vector.multi_reduction <add>, %9, %cst_6 [1] : vector<16x32xf32> to vector<16xf32>
    %11 = vector.shape_cast %10 : vector<16xf32> to vector<16x1xf32>
    %cst_7 = arith.constant 0.0322580636 : f32
    %12 = vector.broadcast %cst_7 : f32 to vector<16x1xf32>
    %13 = arith.mulf %11, %12 : vector<16x1xf32>
    %14 = math.sqrt %13 : vector<16x1xf32>
    %cst_8 = arith.constant 9.99999997E-7 : f32
    %15 = vector.broadcast %cst_8 : f32 to vector<16x1xf32>
    %16 = arith.addf %14, %15 : vector<16x1xf32>
    %17 = tpu.reciprocal %16 {approx = true} : vector<16x1xf32> -> vector<16x1xf32>
    %18 = vector.broadcast %1 : vector<1x32xf32> to vector<16x32xf32>
    %19 = arith.mulf %18, %8 : vector<16x32xf32>
    %20 = vector.broadcast %17 : vector<16x1xf32> to vector<16x32xf32>
    %21 = arith.mulf %19, %20 : vector<16x32xf32>
    %22 = vector.broadcast %2 : vector<1x32xf32> to vector<16x32xf32>
    %23 = arith.addf %21, %22 : vector<16x32xf32>
    %24 = arith.truncf %23 : vector<16x32xf32> to vector<16x32xbf16>
    %c0_9 = arith.constant 0 : index
    %c0_10 = arith.constant 0 : index
    %25 = vector.load %arg4[%c0_9, %c0_10] : memref<32x64xbf16, #tpu.memory_space<vmem>>, vector<32x64xbf16>
    %cst_11 = arith.constant dense<0.000000e+00> : vector<16x64xf32>
    %26 = tpu.matmul %24, %25, %cst_11 {dimension_numbers = #tpu.dot_dimension_numbers<[1], [0], [0], [1], [0, 0, 1, 1], [], []>} : vector<16x32xbf16>, vector<32x64xbf16>, vector<16x64xf32> -> vector<16x64xf32>
    %c0_12 = arith.constant 0 : index
    %c0_13 = arith.constant 0 : index
    %27 = vector.load %arg5[%c0_12, %c0_13] : memref<1x64xf32, #tpu.memory_space<vmem>>, vector<1x64xf32>
    %28 = vector.broadcast %27 : vector<1x64xf32> to vector<16x64xf32>
    %29 = arith.addf %26, %28 : vector<16x64xf32>
    %cst_14 = arith.constant 0.000000e+00 : f32
    %30 = vector.broadcast %cst_14 : f32 to vector<16x64xf32>
    %31 = arith.maximumf %29, %30 : vector<16x64xf32>
    %32 = arith.truncf %31 : vector<16x64xf32> to vector<16x64xbf16>
    %c0_15 = arith.constant 0 : index
    %c0_16 = arith.constant 0 : index
    %33 = vector.load %arg6[%c0_15, %c0_16] : memref<64x32xbf16, #tpu.memory_space<vmem>>, vector<64x32xbf16>
    %cst_17 = arith.constant dense<0.000000e+00> : vector<16x32xf32>
    %34 = tpu.matmul %32, %33, %cst_17 {dimension_numbers = #tpu.dot_dimension_numbers<[1], [0], [0], [1], [0, 0, 1, 1], [], []>} : vector<16x64xbf16>, vector<64x32xbf16>, vector<16x32xf32> -> vector<16x32xf32>
    %35 = arith.addf %0, %34 : vector<16x32xf32>
    %c0_18 = arith.constant 0 : index
    %c0_19 = arith.constant 0 : index
    %36 = vector.load %arg7[%c0_18, %c0_19] : memref<1x32xf32, #tpu.memory_space<vmem>>, vector<1x32xf32>
    %37 = vector.broadcast %36 : vector<1x32xf32> to vector<16x32xf32>
    %38 = arith.addf %35, %37 : vector<16x32xf32>
    %c0_20 = arith.constant 0 : index
    %c0_21 = arith.constant 0 : index
    %39 = vector.load %arg8[%c0_20, %c0_21] : memref<16x32xf32, #tpu.memory_space<vmem>>, vector<16x32xf32>
    tpu.vector_store %arg8[%c0_20, %c0_21], %38 {strides = array<i32>} : memref<16x32xf32, #tpu.memory_space<vmem>>, vector<16x32xf32>,
    return
  }
  func.func @transform_0(%arg0: i32) -> (i32, i32) {
    %c0_i32 = arith.constant 0 : i32
    %c0_i32_0 = arith.constant 0 : i32
    return %arg0, %c0_i32 : i32, i32
  }
  func.func @transform_1(%arg0: i32) -> (i32, i32) {
    %c0_i32 = arith.constant 0 : i32
    %c0_i32_0 = arith.constant 0 : i32
    %c0_i32_1 = arith.constant 0 : i32
    return %c0_i32, %c0_i32_0 : i32, i32
  }
  func.func @transform_2(%arg0: i32) -> (i32, i32) {
    %c0_i32 = arith.constant 0 : i32
    %c0_i32_0 = arith.constant 0 : i32
    %c0_i32_1 = arith.constant 0 : i32
    return %c0_i32, %c0_i32_0 : i32, i32
  }
  func.func @transform_3(%arg0: i32) -> (i32, i32) {
    %c0_i32 = arith.constant 0 : i32
    %c0_i32_0 = arith.constant 0 : i32
    %c0_i32_1 = arith.constant 0 : i32
    return %c0_i32, %c0_i32_0 : i32, i32
  }
  func.func @transform_4(%arg0: i32) -> (i32, i32) {
    %c0_i32 = arith.constant 0 : i32
    %c0_i32_0 = arith.constant 0 : i32
    %c0_i32_1 = arith.constant 0 : i32
    return %c0_i32, %c0_i32_0 : i32, i32
  }
  func.func @transform_5(%arg0: i32) -> (i32, i32) {
    %c0_i32 = arith.constant 0 : i32
    %c0_i32_0 = arith.constant 0 : i32
    %c0_i32_1 = arith.constant 0 : i32
    return %c0_i32, %c0_i32_0 : i32, i32
  }
  func.func @transform_6(%arg0: i32) -> (i32, i32) {
    %c0_i32 = arith.constant 0 : i32
    %c0_i32_0 = arith.constant 0 : i32
    %c0_i32_1 = arith.constant 0 : i32
    return %c0_i32, %c0_i32_0 : i32, i32
  }
  func.func @transform_7(%arg0: i32) -> (i32, i32) {
    %c0_i32 = arith.constant 0 : i32
    %c0_i32_0 = arith.constant 0 : i32
    return %arg0, %c0_i32 : i32, i32
  }
}

module attributes {stable_mosaic.version = 11 : i64} {
  func.func @_linear_kernel(%arg0: i32, %arg1: memref<16x32xbf16, #tpu.memory_space<vmem>>, %arg2: memref<32x64xbf16, #tpu.memory_space<vmem>>, %arg3: memref<1x64xf32, #tpu.memory_space<vmem>>, %arg4: memref<16x64xbf16, #tpu.memory_space<vmem>>) attributes {dimension_semantics = [#tpu.dimension_semantics<parallel>], iteration_bounds = array<i64: 1>, scalar_prefetch = 0 : i64, scratch_operands = 0 : i64, tpu.core_type = #tpu.core_type<tc>, window_params = [{transform_indices = @transform_0, window_bounds = array<i64: 16, 32>}, {pipeline_mode = #tpu.pipeline_mode<synchronous>, transform_indices = @transform_1, window_bounds = array<i64: 32, 64>}, {pipeline_mode = #tpu.pipeline_mode<synchronous>, transform_indices = @transform_2, window_bounds = array<i64: 1, 64>}, {transform_indices = @transform_3, window_bounds = array<i64: 16, 64>}]} {
    %c0 = arith.constant 0 : index
    %c0_0 = arith.constant 0 : index
    %0 = vector.load %arg1[%c0, %c0_0] : memref<16x32xbf16, #tpu.memory_space<vmem>>, vector<16x32xbf16>
    %c0_1 = arith.constant 0 : index
    %c0_2 = arith.constant 0 : index
    %1 = vector.load %arg2[%c0_1, %c0_2] : memref<32x64xbf16, #tpu.memory_space<vmem>>, vector<32x64xbf16>
    %cst = arith.constant dense<0.000000e+00> : vector<16x64xf32>
    %2 = tpu.matmul %0, %1, %cst {dimension_numbers = #tpu.dot_dimension_numbers<[1], [0], [0], [1], [0, 0, 1, 1], [], []>} : vector<16x32xbf16>, vector<32x64xbf16>, vector<16x64xf32> -> vector<16x64xf32>
    %c0_3 = arith.constant 0 : index
    %c0_4 = arith.constant 0 : index
    %3 = vector.load %arg3[%c0_3, %c0_4] : memref<1x64xf32, #tpu.memory_space<vmem>>, vector<1x64xf32>
    %4 = vector.broadcast %3 : vector<1x64xf32> to vector<16x64xf32>
    %5 = arith.addf %2, %4 : vector<16x64xf32>
    %6 = arith.truncf %5 : vector<16x64xf32> to vector<16x64xbf16>
    %c0_5 = arith.constant 0 : index
    %c0_6 = arith.constant 0 : index
    %7 = vector.load %arg4[%c0_5, %c0_6] : memref<16x64xbf16, #tpu.memory_space<vmem>>, vector<16x64xbf16>
    tpu.vector_store %arg4[%c0_5, %c0_6], %6 {strides = array<i32>} : memref<16x64xbf16, #tpu.memory_space<vmem>>, vector<16x64xbf16>,
    return
  }
  func.func @transform_0(%arg0: i32) -> (i32, i32) {
    %c0_i32 = arith.constant 0 : i32
    %c0_i32_0 = arith.constant 0 : i32
    return %arg0, %c0_i32 : i32, i32
  }
  func.func @transform_1(%arg0: i32) -> (i32, i32) {
    %c0_i32 = arith.constant 0 : i32
    %c0_i32_0 = arith.constant 0 : i32
    %c0_i32_1 = arith.constant 0 : i32
    return %c0_i32, %c0_i32_0 : i32, i32
  }
  func.func @transform_2(%arg0: i32) -> (i32, i32) {
    %c0_i32 = arith.constant 0 : i32
    %c0_i32_0 = arith.constant 0 : i32
    %c0_i32_1 = arith.constant 0 : i32
    return %c0_i32, %c0_i32_0 : i32, i32
  }
  func.func @transform_3(%arg0: i32) -> (i32, i32) {
    %c0_i32 = arith.constant 0 : i32
    %c0_i32_0 = arith.constant 0 : i32
    return %arg0, %c0_i32 : i32, i32
  }
}

module attributes {stable_mosaic.version = 11 : i64} {
  func.func @_norm_kernel(%arg0: i32, %arg1: memref<16x32xf32, #tpu.memory_space<vmem>>, %arg2: memref<1x32xf32, #tpu.memory_space<vmem>>, %arg3: memref<1x32xf32, #tpu.memory_space<vmem>>, %arg4: memref<16x32xbf16, #tpu.memory_space<vmem>>) attributes {dimension_semantics = [#tpu.dimension_semantics<parallel>], iteration_bounds = array<i64: 1>, scalar_prefetch = 0 : i64, scratch_operands = 0 : i64, tpu.core_type = #tpu.core_type<tc>, window_params = [{transform_indices = @transform_0, window_bounds = array<i64: 16, 32>}, {pipeline_mode = #tpu.pipeline_mode<synchronous>, transform_indices = @transform_1, window_bounds = array<i64: 1, 32>}, {pipeline_mode = #tpu.pipeline_mode<synchronous>, transform_indices = @transform_2, window_bounds = array<i64: 1, 32>}, {transform_indices = @transform_3, window_bounds = array<i64: 16, 32>}]} {
    %c0 = arith.constant 0 : index
    %c0_0 = arith.constant 0 : index
    %0 = vector.load %arg1[%c0, %c0_0] : memref<16x32xf32, #tpu.memory_space<vmem>>, vector<16x32xf32>
    %c0_1 = arith.constant 0 : index
    %c0_2 = arith.constant 0 : index
    %1 = vector.load %arg2[%c0_1, %c0_2] : memref<1x32xf32, #tpu.memory_space<vmem>>, vector<1x32xf32>
    %c0_3 = arith.constant 0 : index
    %c0_4 = arith.constant 0 : index
    %2 = vector.load %arg3[%c0_3, %c0_4] : memref<1x32xf32, #tpu.memory_space<vmem>>, vector<1x32xf32>
    %cst = arith.constant dense<0.000000e+00> : vector<16xf32>
    %3 = vector.multi_reduction <add>, %0, %cst [1] : vector<16x32xf32> to vector<16xf32>
    %4 = vector.shape_cast %3 : vector<16xf32> to vector<16x1xf32>
    %cst_5 = arith.constant 3.200000e+01 : f32
    %5 = vector.broadcast %cst_5 : f32 to vector<16x1xf32>
    %6 = arith.divf %4, %5 : vector<16x1xf32>
    %7 = vector.broadcast %6 : vector<16x1xf32> to vector<16x32xf32>
    %8 = arith.subf %0, %7 : vector<16x32xf32>
    %9 = arith.mulf %8, %8 : vector<16x32xf32>
    %cst_6 = arith.constant dense<0.000000e+00> : vector<16xf32>
    %10 = vector.multi_reduction <add>, %9, %cst_6 [1] : vector<16x32xf32> to vector<16xf32>
    %11 = vector.shape_cast %10 : vector<16xf32> to vector<16x1xf32>
    %cst_7 = arith.constant 0.0322580636 : f32
    %12 = vector.broadcast %cst_7 : f32 to vector<16x1xf32>
    %13 = arith.mulf %11, %12 : vector<16x1xf32>
    %14 = math.sqrt %13 : vector<16x1xf32>
    %cst_8 = arith.constant 9.99999997E-7 : f32
    %15 = vector.broadcast %cst_8 : f32 to vector<16x1xf32>
    %16 = arith.addf %14, %15 : vector<16x1xf32>
    %17 = tpu.reciprocal %16 {approx = true} : vector<16x1xf32> -> vector<16x1xf32>
    %18 = vector.broadcast %1 : vector<1x32xf32> to vector<16x32xf32>
    %19 = arith.mulf %18, %8 : vector<16x32xf32>
    %20 = vector.broadcast %17 : vector<16x1xf32> to vector<16x32xf32>
    %21 = arith.mulf %19, %20 : vector<16x32xf32>
    %22 = vector.broadcast %2 : vector<1x32xf32> to vector<16x32xf32>
    %23 = arith.addf %21, %22 : vector<16x32xf32>
    %24 = arith.truncf %23 : vector<16x32xf32> to vector<16x32xbf16>
    %c0_9 = arith.constant 0 : index
    %c0_10 = arith.constant 0 : index
    %25 = vector.load %arg4[%c0_9, %c0_10] : memref<16x32xbf16, #tpu.memory_space<vmem>>, vector<16x32xbf16>
    tpu.vector_store %arg4[%c0_9, %c0_10], %24 {strides = array<i32>} : memref<16x32xbf16, #tpu.memory_space<vmem>>, vector<16x32xbf16>,
    return
  }
  func.func @transform_0(%arg0: i32) -> (i32, i32) {
    %c0_i32 = arith.constant 0 : i32
    %c0_i32_0 = arith.constant 0 : i32
    return %arg0, %c0_i32 : i32, i32
  }
  func.func @transform_1(%arg0: i32) -> (i32, i32) {
    %c0_i32 = arith.constant 0 : i32
    %c0_i32_0 = arith.constant 0 : i32
    %c0_i32_1 = arith.constant 0 : i32
    return %c0_i32, %c0_i32_0 : i32, i32
  }
  func.func @transform_2(%arg0: i32) -> (i32, i32) {
    %c0_i32 = arith.constant 0 : i32
    %c0_i32_0 = arith.constant 0 : i32
    %c0_i32_1 = arith.constant 0 : i32
    return %c0_i32, %c0_i32_0 : i32, i32
  }
  func.func @transform_3(%arg0: i32) -> (i32, i32) {
    %c0_i32 = arith.constant 0 : i32
    %c0_i32_0 = arith.constant 0 : i32
    return %arg0, %c0_i32 : i32, i32
  }
}

module attributes {stable_mosaic.version = 11 : i64} {
  func.func @_flash_attn_kernel(%arg0: i32, %arg1: i32, %arg2: i32, %arg3: i32, %arg4: memref<1x1x8x8xbf16, #tpu.memory_space<vmem>>, %arg5: memref<1x1x1x8x8xbf16, #tpu.memory_space<vmem>>, %arg6: memref<1x1x1x8x8xbf16, #tpu.memory_space<vmem>>, %arg7: memref<1x1x8xf32, #tpu.memory_space<vmem>>, %arg8: memref<1x1x8x8xbf16, #tpu.memory_space<vmem>>, %arg9: memref<8x1xf32, #tpu.memory_space<vmem>>, %arg10: memref<8x1xf32, #tpu.memory_space<vmem>>, %arg11: memref<8x8xf32, #tpu.memory_space<vmem>>) attributes {dimension_semantics = [#tpu.dimension_semantics<parallel>, #tpu.dimension_semantics<parallel>, #tpu.dimension_semantics<parallel>, #tpu.dimension_semantics<arbitrary>], iteration_bounds = array<i64: 2, 4, 1, 1>, scalar_prefetch = 0 : i64, scratch_operands = 3 : i64, tpu.core_type = #tpu.core_type<tc>, window_params = [{transform_indices = @transform_0, window_bounds = array<i64: 1, 1, 8, 8>}, {transform_indices = @transform_1, window_bounds = array<i64: 1, 1, 1, 8, 8>}, {transform_indices = @transform_2, window_bounds = array<i64: 1, 1, 1, 8, 8>}, {transform_indices = @transform_3, window_bounds = array<i64: 1, 1, 8>}, {transform_indices = @transform_4, window_bounds = array<i64: 1, 1, 8, 8>}]} {
    %c0_i32 = arith.constant 0 : i32
    %0 = arith.cmpi eq, %arg3, %c0_i32 : i32
    %1 = arith.extui %0 : i1 to i32
    %c0_i32_0 = arith.constant 0 : i32
    %2 = arith.cmpi ne, %1, %c0_i32_0 : i32
    scf.if %2 {
      %cst_37 = arith.constant 0xFF800000 : f32
      %45 = vector.broadcast %cst_37 : f32 to vector<8x1xf32>
      %c0_38 = arith.constant 0 : index
      %c0_39 = arith.constant 0 : index
      %46 = vector.load %arg9[%c0_38, %c0_39] : memref<8x1xf32, #tpu.memory_space<vmem>>, vector<8x1xf32>
      tpu.vector_store %arg9[%c0_38, %c0_39], %45 {strides = array<i32>} : memref<8x1xf32, #tpu.memory_space<vmem>>, vector<8x1xf32>,
      %cst_40 = arith.constant 0.000000e+00 : f32
      %47 = vector.broadcast %cst_40 : f32 to vector<8x1xf32>
      %c0_41 = arith.constant 0 : index
      %c0_42 = arith.constant 0 : index
      %48 = vector.load %arg10[%c0_41, %c0_42] : memref<8x1xf32, #tpu.memory_space<vmem>>, vector<8x1xf32>
      tpu.vector_store %arg10[%c0_41, %c0_42], %47 {strides = array<i32>} : memref<8x1xf32, #tpu.memory_space<vmem>>, vector<8x1xf32>,
      %cst_43 = arith.constant 0.000000e+00 : f32
      %49 = vector.broadcast %cst_43 : f32 to vector<8x8xf32>
      %c0_44 = arith.constant 0 : index
      %c0_45 = arith.constant 0 : index
      %50 = vector.load %arg11[%c0_44, %c0_45] : memref<8x8xf32, #tpu.memory_space<vmem>>, vector<8x8xf32>
      tpu.vector_store %arg11[%c0_44, %c0_45], %49 {strides = array<i32>} : memref<8x8xf32, #tpu.memory_space<vmem>>, vector<8x8xf32>,
    } else {
    }
    %c0 = arith.constant 0 : index
    %c0_1 = arith.constant 0 : index
    %c0_2 = arith.constant 0 : index
    %c0_3 = arith.constant 0 : index
    %3 = vector.load %arg4[%c0, %c0_1, %c0_2, %c0_3] : memref<1x1x8x8xbf16, #tpu.memory_space<vmem>>, vector<1x1x8x8xbf16>
    %4 = vector.shape_cast %3 : vector<1x1x8x8xbf16> to vector<8x8xbf16>
    %c0_4 = arith.constant 0 : index
    %c0_5 = arith.constant 0 : index
    %c0_6 = arith.constant 0 : index
    %c0_7 = arith.constant 0 : index
    %c0_8 = arith.constant 0 : index
    %5 = vector.load %arg5[%c0_4, %c0_5, %c0_6, %c0_7, %c0_8] : memref<1x1x1x8x8xbf16, #tpu.memory_space<vmem>>, vector<1x1x1x8x8xbf16>
    %6 = vector.shape_cast %5 : vector<1x1x1x8x8xbf16> to vector<8x8xbf16>
    %c0_9 = arith.constant 0 : index
    %c0_10 = arith.constant 0 : index
    %c0_11 = arith.constant 0 : index
    %c0_12 = arith.constant 0 : index
    %c0_13 = arith.constant 0 : index
    %7 = vector.load %arg6[%c0_9, %c0_10, %c0_11, %c0_12, %c0_13] : memref<1x1x1x8x8xbf16, #tpu.memory_space<vmem>>, vector<1x1x1x8x8xbf16>
    %8 = vector.shape_cast %7 : vector<1x1x1x8x8xbf16> to vector<8x8xbf16>
    %cst = arith.constant dense<0.000000e+00> : vector<8x8xf32>
    %9 = tpu.matmul %4, %6, %cst {dimension_numbers = #tpu.dot_dimension_numbers<[1], [1], [0], [0], [0, 0, 1, 0], [], []>} : vector<8x8xbf16>, vector<8x8xbf16>, vector<8x8xf32> -> vector<8x8xf32>
    %c0_14 = arith.constant 0 : index
    %c0_15 = arith.constant 0 : index
    %c0_16 = arith.constant 0 : index
    %10 = vector.load %arg7[%c0_14, %c0_15, %c0_16] : memref<1x1x8xf32, #tpu.memory_space<vmem>>, vector<1x1x8xf32>
    %11 = vector.shape_cast %10 : vector<1x1x8xf32> to vector<1x8xf32>
    %cst_17 = arith.constant 5.000000e-01 : f32
    %12 = vector.broadcast %cst_17 : f32 to vector<1x8xf32>
    %13 = arith.cmpf ogt, %11, %12 : vector<1x8xf32>
    %cst_18 = arith.constant 0.000000e+00 : f32
    %cst_19 = arith.constant -1.000000e+09 : f32
    %14 = vector.broadcast %cst_18 : f32 to vector<1x8xf32>
    %15 = vector.broadcast %cst_19 : f32 to vector<1x8xf32>
    %16 = arith.select %13, %14, %15 : vector<1x8xi1>, vector<1x8xf32>
    %17 = vector.broadcast %16 : vector<1x8xf32> to vector<8x8xf32>
    %18 = arith.addf %9, %17 : vector<8x8xf32>
    %c0_20 = arith.constant 0 : index
    %c0_21 = arith.constant 0 : index
    %19 = vector.load %arg9[%c0_20, %c0_21] : memref<8x1xf32, #tpu.memory_space<vmem>>, vector<8x1xf32>
    %cst_22 = arith.constant dense<0xFF800000> : vector<8xf32>
    %20 = vector.multi_reduction <maximumf>, %18, %cst_22 [1] : vector<8x8xf32> to vector<8xf32>
    %21 = vector.shape_cast %20 : vector<8xf32> to vector<8x1xf32>
    %22 = arith.maximumf %19, %21 : vector<8x1xf32>
    %23 = arith.subf %19, %22 : vector<8x1xf32>
    %24 = math.exp %23 : vector<8x1xf32>
    %25 = vector.broadcast %22 : vector<8x1xf32> to vector<8x8xf32>
    %26 = arith.subf %18, %25 : vector<8x8xf32>
    %27 = math.exp %26 : vector<8x8xf32>
    %c0_23 = arith.constant 0 : index
    %c0_24 = arith.constant 0 : index
    %28 = vector.load %arg10[%c0_23, %c0_24] : memref<8x1xf32, #tpu.memory_space<vmem>>, vector<8x1xf32>
    %29 = arith.mulf %24, %28 : vector<8x1xf32>
    %cst_25 = arith.constant dense<0.000000e+00> : vector<8xf32>
    %30 = vector.multi_reduction <add>, %27, %cst_25 [1] : vector<8x8xf32> to vector<8xf32>
    %31 = vector.shape_cast %30 : vector<8xf32> to vector<8x1xf32>
    %32 = arith.addf %29, %31 : vector<8x1xf32>
    %c0_26 = arith.constant 0 : index
    %c0_27 = arith.constant 0 : index
    %33 = vector.load %arg10[%c0_26, %c0_27] : memref<8x1xf32, #tpu.memory_space<vmem>>, vector<8x1xf32>
    tpu.vector_store %arg10[%c0_26, %c0_27], %32 {strides = array<i32>} : memref<8x1xf32, #tpu.memory_space<vmem>>, vector<8x1xf32>,
    %c0_28 = arith.constant 0 : index
    %c0_29 = arith.constant 0 : index
    %34 = vector.load %arg11[%c0_28, %c0_29] : memref<8x8xf32, #tpu.memory_space<vmem>>, vector<8x8xf32>
    %35 = vector.broadcast %24 : vector<8x1xf32> to vector<8x8xf32>
    %36 = arith.mulf %35, %34 : vector<8x8xf32>
    %37 = arith.truncf %27 : vector<8x8xf32> to vector<8x8xbf16>
    %cst_30 = arith.constant dense<0.000000e+00> : vector<8x8xf32>
    %38 = tpu.matmul %37, %8, %cst_30 {dimension_numbers = #tpu.dot_dimension_numbers<[1], [0], [0], [1], [0, 0, 1, 1], [], []>} : vector<8x8xbf16>, vector<8x8xbf16>, vector<8x8xf32> -> vector<8x8xf32>
    %39 = arith.addf %36, %38 : vector<8x8xf32>
    %c0_31 = arith.constant 0 : index
    %c0_32 = arith.constant 0 : index
    %40 = vector.load %arg11[%c0_31, %c0_32] : memref<8x8xf32, #tpu.memory_space<vmem>>, vector<8x8xf32>
    tpu.vector_store %arg11[%c0_31, %c0_32], %39 {strides = array<i32>} : memref<8x8xf32, #tpu.memory_space<vmem>>, vector<8x8xf32>,
    %c0_33 = arith.constant 0 : index
    %c0_34 = arith.constant 0 : index
    %41 = vector.load %arg9[%c0_33, %c0_34] : memref<8x1xf32, #tpu.memory_space<vmem>>, vector<8x1xf32>
    tpu.vector_store %arg9[%c0_33, %c0_34], %22 {strides = array<i32>} : memref<8x1xf32, #tpu.memory_space<vmem>>, vector<8x1xf32>,
    %c0_i32_35 = arith.constant 0 : i32
    %42 = arith.cmpi eq, %arg3, %c0_i32_35 : i32
    %43 = arith.extui %42 : i1 to i32
    %c0_i32_36 = arith.constant 0 : i32
    %44 = arith.cmpi ne, %43, %c0_i32_36 : i32
    scf.if %44 {
      %c0_37 = arith.constant 0 : index
      %c0_38 = arith.constant 0 : index
      %45 = vector.load %arg11[%c0_37, %c0_38] : memref<8x8xf32, #tpu.memory_space<vmem>>, vector<8x8xf32>
      %c0_39 = arith.constant 0 : index
      %c0_40 = arith.constant 0 : index
      %46 = vector.load %arg10[%c0_39, %c0_40] : memref<8x1xf32, #tpu.memory_space<vmem>>, vector<8x1xf32>
      %47 = tpu.reciprocal %46 {approx = true} : vector<8x1xf32> -> vector<8x1xf32>
      %48 = vector.broadcast %47 : vector<8x1xf32> to vector<8x8xf32>
      %49 = arith.mulf %45, %48 : vector<8x8xf32>
      %50 = arith.truncf %49 : vector<8x8xf32> to vector<8x8xbf16>
      %c0_41 = arith.constant 0 : index
      %c0_42 = arith.constant 0 : index
      %c0_43 = arith.constant 0 : index
      %c0_44 = arith.constant 0 : index
      %51 = vector.load %arg8[%c0_41, %c0_42, %c0_43, %c0_44] : memref<1x1x8x8xbf16, #tpu.memory_space<vmem>>, vector<1x1x8x8xbf16>
      %52 = vector.shape_cast %51 : vector<1x1x8x8xbf16> to vector<8x8xbf16>
      %53 = vector.shape_cast %50 : vector<8x8xbf16> to vector<1x1x8x8xbf16>
      tpu.vector_store %arg8[%c0_41, %c0_42, %c0_43, %c0_44], %53 {strides = array<i32>} : memref<1x1x8x8xbf16, #tpu.memory_space<vmem>>, vector<1x1x8x8xbf16>,
    } else {
    }
    return
  }
  func.func @transform_0(%arg0: i32, %arg1: i32, %arg2: i32, %arg3: i32) -> (i32, i32, i32, i32) {
    %c0_i32 = arith.constant 0 : i32
    %c0_i32_0 = arith.constant 0 : i32
    return %arg0, %arg1, %arg2, %c0_i32 : i32, i32, i32, i32
  }
  func.func @transform_1(%arg0: i32, %arg1: i32, %arg2: i32, %arg3: i32) -> (i32, i32, i32, i32, i32) {
    %c0_i32 = arith.constant 0 : i32
    %c0_i32_0 = arith.constant 0 : i32
    %c0_i32_1 = arith.constant 0 : i32
    return %c0_i32, %arg0, %arg1, %arg3, %c0_i32_0 : i32, i32, i32, i32, i32
  }
  func.func @transform_2(%arg0: i32, %arg1: i32, %arg2: i32, %arg3: i32) -> (i32, i32, i32, i32, i32) {
    %c1_i32 = arith.constant 1 : i32
    %c0_i32 = arith.constant 0 : i32
    %c0_i32_0 = arith.constant 0 : i32
    return %c1_i32, %arg0, %arg1, %arg3, %c0_i32 : i32, i32, i32, i32, i32
  }
  func.func @transform_3(%arg0: i32, %arg1: i32, %arg2: i32, %arg3: i32) -> (i32, i32, i32) {
    %c0_i32 = arith.constant 0 : i32
    %c0_i32_0 = arith.constant 0 : i32
    return %arg0, %c0_i32, %arg3 : i32, i32, i32
  }
  func.func @transform_4(%arg0: i32, %arg1: i32, %arg2: i32, %arg3: i32) -> (i32, i32, i32, i32) {
    %c0_i32 = arith.constant 0 : i32
    %c0_i32_0 = arith.constant 0 : i32
    return %arg0, %arg1, %arg2, %c0_i32 : i32, i32, i32, i32
  }
}

module attributes {stable_mosaic.version = 11 : i64} {
  func.func @_matmul_kernel(%arg0: i32, %arg1: i32, %arg2: i32, %arg3: memref<16x128xbf16, #tpu.memory_space<vmem>>, %arg4: memref<128x128xbf16, #tpu.memory_space<vmem>>, %arg5: memref<1x128xf32, #tpu.memory_space<vmem>>, %arg6: memref<16x128xf32, #tpu.memory_space<vmem>>, %arg7: memref<16x128xf32, #tpu.memory_space<vmem>>) attributes {dimension_semantics = [#tpu.dimension_semantics<parallel>, #tpu.dimension_semantics<parallel>, #tpu.dimension_semantics<arbitrary>], iteration_bounds = array<i64: 1, 1, 1>, scalar_prefetch = 0 : i64, scratch_operands = 1 : i64, tpu.core_type = #tpu.core_type<tc>, window_params = [{transform_indices = @transform_0, window_bounds = array<i64: 16, 128>}, {transform_indices = @transform_1, window_bounds = array<i64: 128, 128>}, {transform_indices = @transform_2, window_bounds = array<i64: 1, 128>}, {transform_indices = @transform_3, window_bounds = array<i64: 16, 128>}]} {
    %c0_i32 = arith.constant 0 : i32
    %0 = arith.cmpi eq, %arg2, %c0_i32 : i32
    %1 = arith.extui %0 : i1 to i32
    %c0_i32_0 = arith.constant 0 : i32
    %2 = arith.cmpi ne, %1, %c0_i32_0 : i32
    scf.if %2 {
      %cst_10 = arith.constant 0.000000e+00 : f32
      %12 = vector.broadcast %cst_10 : f32 to vector<16x128xf32>
      %c0_11 = arith.constant 0 : index
      %c0_12 = arith.constant 0 : index
      %13 = vector.load %arg7[%c0_11, %c0_12] : memref<16x128xf32, #tpu.memory_space<vmem>>, vector<16x128xf32>
      tpu.vector_store %arg7[%c0_11, %c0_12], %12 {strides = array<i32>} : memref<16x128xf32, #tpu.memory_space<vmem>>, vector<16x128xf32>,
    } else {
    }
    %c0 = arith.constant 0 : index
    %c0_1 = arith.constant 0 : index
    %3 = vector.load %arg7[%c0, %c0_1] : memref<16x128xf32, #tpu.memory_space<vmem>>, vector<16x128xf32>
    %c0_2 = arith.constant 0 : index
    %c0_3 = arith.constant 0 : index
    %4 = vector.load %arg3[%c0_2, %c0_3] : memref<16x128xbf16, #tpu.memory_space<vmem>>, vector<16x128xbf16>
    %c0_4 = arith.constant 0 : index
    %c0_5 = arith.constant 0 : index
    %5 = vector.load %arg4[%c0_4, %c0_5] : memref<128x128xbf16, #tpu.memory_space<vmem>>, vector<128x128xbf16>
    %cst = arith.constant dense<0.000000e+00> : vector<16x128xf32>
    %6 = tpu.matmul %4, %5, %cst {dimension_numbers = #tpu.dot_dimension_numbers<[1], [0], [0], [1], [0, 0, 1, 1], [], []>} : vector<16x128xbf16>, vector<128x128xbf16>, vector<16x128xf32> -> vector<16x128xf32>
    %7 = arith.addf %3, %6 : vector<16x128xf32>
    %c0_6 = arith.constant 0 : index
    %c0_7 = arith.constant 0 : index
    %8 = vector.load %arg7[%c0_6, %c0_7] : memref<16x128xf32, #tpu.memory_space<vmem>>, vector<16x128xf32>
    tpu.vector_store %arg7[%c0_6, %c0_7], %7 {strides = array<i32>} : memref<16x128xf32, #tpu.memory_space<vmem>>, vector<16x128xf32>,
    %c0_i32_8 = arith.constant 0 : i32
    %9 = arith.cmpi eq, %arg2, %c0_i32_8 : i32
    %10 = arith.extui %9 : i1 to i32
    %c0_i32_9 = arith.constant 0 : i32
    %11 = arith.cmpi ne, %10, %c0_i32_9 : i32
    scf.if %11 {
      %c0_10 = arith.constant 0 : index
      %c0_11 = arith.constant 0 : index
      %12 = vector.load %arg7[%c0_10, %c0_11] : memref<16x128xf32, #tpu.memory_space<vmem>>, vector<16x128xf32>
      %c0_12 = arith.constant 0 : index
      %c0_13 = arith.constant 0 : index
      %13 = vector.load %arg5[%c0_12, %c0_13] : memref<1x128xf32, #tpu.memory_space<vmem>>, vector<1x128xf32>
      %14 = vector.broadcast %13 : vector<1x128xf32> to vector<16x128xf32>
      %15 = arith.addf %12, %14 : vector<16x128xf32>
      %c0_14 = arith.constant 0 : index
      %c0_15 = arith.constant 0 : index
      %16 = vector.load %arg6[%c0_14, %c0_15] : memref<16x128xf32, #tpu.memory_space<vmem>>, vector<16x128xf32>
      tpu.vector_store %arg6[%c0_14, %c0_15], %15 {strides = array<i32>} : memref<16x128xf32, #tpu.memory_space<vmem>>, vector<16x128xf32>,
    } else {
    }
    return
  }
  func.func @transform_0(%arg0: i32, %arg1: i32, %arg2: i32) -> (i32, i32) {
    %c0_i32 = arith.constant 0 : i32
    return %arg0, %arg2 : i32, i32
  }
  func.func @transform_1(%arg0: i32, %arg1: i32, %arg2: i32) -> (i32, i32) {
    %c0_i32 = arith.constant 0 : i32
    return %arg2, %arg1 : i32, i32
  }
  func.func @transform_2(%arg0: i32, %arg1: i32, %arg2: i32) -> (i32, i32) {
    %c0_i32 = arith.constant 0 : i32
    %c0_i32_0 = arith.constant 0 : i32
    return %c0_i32, %arg1 : i32, i32
  }
  func.func @transform_3(%arg0: i32, %arg1: i32, %arg2: i32) -> (i32, i32) {
    %c0_i32 = arith.constant 0 : i32
    return %arg0, %arg1 : i32, i32
  }
}

</mosaic_0001>

<llo_original>
// kernel: transformer_forward.36
$region0: #{transformer_forward.36}
  #allocation0 [shape = 'u32[]', space=smem, size = 0x4, offset = 0x4, fixed_abs, tag = 'smem constant byte address 0x4 - core index']
  #allocation1 [shape = 'u32[72,128]{1,0:T(1,128)}', space=vmem, size = 0x9000, scoped, tag = 'internal scratch']
  %s0 = inlined_call_operand.vmem [shape: f32[16,32], index: 0, kind: input, shape index: {}]
  %s1 = inlined_call_operand.vmem [shape: f32[1,32], index: 1, kind: input, shape index: {}]
  %s2 = inlined_call_operand.vmem [shape: f32[1,32], index: 2, kind: input, shape index: {}]
  %s3 = inlined_call_operand.vmem [shape: bf16[32,96], index: 3, kind: input, shape index: {}]
  %s4 = inlined_call_operand.vmem [shape: f32[1,96], index: 4, kind: input, shape index: {}]
  %s5 = inlined_call_operand.vmem [shape: bf16[16,96], index: 5, kind: output, shape index: {}]
  %s6 = sld [smem:[#allocation0]]
  $region30: #{transformer_forward.36} parent=0
    _
  %s8 = ssub.s32 1, %s6
  %s9 = scalar_select 0, %s8, %s6
  // Predicated region
  $region2: #{transformer_forward.36} parent=0 // pred_check
    _
  $region3: #{transformer_forward.36} parent=0 // pred_check_branch
    %11 = sbr.rel (0) target = $region5
  $region4: #{transformer_forward.36} parent=0 // pred_region
    _
  $region5: #{transformer_forward.36} parent=0 // pred_fallthru
    _
  // Predicated region
  $region6: #{transformer_forward.36} parent=0 // pred_check
    _
  $region7: #{transformer_forward.36} parent=0 // pred_check_branch
    %13 = sbr.rel (0) target = $region9
  $region8: #{transformer_forward.36} parent=0 // pred_region
    _
  $region9: #{transformer_forward.36} parent=0 // pred_fallthru
    _
  // Predicated region
  $region10: #{transformer_forward.36} parent=0 // pred_check
    _
  $region11: #{transformer_forward.36} parent=0 // pred_check_branch
    %15 = sbr.rel (0) target = $region13
  $region12: #{transformer_forward.36} parent=0 // pred_region
    _
  $region13: #{transformer_forward.36} parent=0 // pred_fallthru
    _
  // Predicated region
  $region14: #{transformer_forward.36} parent=0 // pred_check
    _
  $region15: #{transformer_forward.36} parent=0 // pred_check_branch
    %17 = sbr.rel (0) target = $region17
  $region16: #{transformer_forward.36} parent=0 // pred_region
    _
  $region17: #{transformer_forward.36} parent=0 // pred_fallthru
    _
  // Predicated region
  $region18: #{transformer_forward.36} parent=0 // pred_check
    _
  $region19: #{transformer_forward.36} parent=0 // pred_check_branch
    %19 = sbr.rel (0) target = $region21
  $region20: #{transformer_forward.36} parent=0 // pred_region
    _
  $region21: #{transformer_forward.36} parent=0 // pred_fallthru
    _
  %v21 = vld [vmem:[%s0] sm:$0xff]
  %v22 = vld [vmem:[%s0 + $0x8] sm:$0xff]
  %v23 = vld [vmem:[%s1] sm:$0x1]
  %v24 = vld [vmem:[%s2] sm:$0x1]
  %vm25 = vcmask 261120
  %v26 = vsel %vm25, %v21, 0.0
  %27 = vadd.xlane.f32.xlu0 %v26
  %v28 = vpop.xlane.xlu0 %27
  %v29 = vsel %vm25, %v22, 0.0
  %30 = vadd.xlane.f32.xlu0 %v29
  %v31 = vpop.xlane.xlu0 %30
  %v32 = vrcp.pop 32.0
  %v33 = vmul.f32 32.0, %v32
  %v34 = vsub.f32 1.0, %v33
  %v35 = vmul.f32 %v32, %v34
  %v36 = vadd.f32 %v32, %v35
  %vm37 = vweird.f32 %v32
  %v38 = vsel %vm37, %v32, %v36
  %v39 = vmul.f32 %v28, %v38
  %v40 = vmul.f32 %v31, %v38
  %v41 = vsub.f32 %v21, %v39
  %v42 = vsub.f32 %v22, %v40
  %v43 = vmul.f32 %v41, %v41
  %v44 = vmul.f32 %v42, %v42
  %v45 = vsel %vm25, %v43, 0.0
  %46 = vadd.xlane.f32.xlu0 %v45
  %v47 = vpop.xlane.xlu0 %46
  %v48 = vsel %vm25, %v44, 0.0
  %49 = vadd.xlane.f32.xlu0 %v48
  %v50 = vpop.xlane.xlu0 %49
  %v51 = vmul.f32 %v47, 0.032258064
  %v52 = vmul.f32 %v50, 0.032258064
  %v53 = vrsqrt.pop %v51
  %v54 = vmul.f32 %v53, %v51
  %v55 = vmul.f32 %v54, %v53
  %v56 = vmul.f32 0.5, %v55
  %v57 = vsub.f32 1.5, %v56
  %v58 = vmul.f32 %v53, %v57
  %v59 = vmul.f32 %v51, %v58
  %vm60 = vcmp.eq.f32.partialorder %v51, inf
  %v61 = vsel %vm60, %v51, %v59
  %vm62 = vcmp.eq.f32.partialorder %v51, 0.0
  %v63 = vand.u32 %v51, 2147483648
  %v64 = vsel %vm62, %v63, %v61
  %v65 = vrsqrt.pop %v52
  %v66 = vmul.f32 %v65, %v52
  %v67 = vmul.f32 %v66, %v65
  %v68 = vmul.f32 0.5, %v67
  %v69 = vsub.f32 1.5, %v68
  %v70 = vmul.f32 %v65, %v69
  %v71 = vmul.f32 %v52, %v70
  %vm72 = vcmp.eq.f32.partialorder %v52, inf
  %v73 = vsel %vm72, %v52, %v71
  %vm74 = vcmp.eq.f32.partialorder %v52, 0.0
  %v75 = vand.u32 %v52, 2147483648
  %v76 = vsel %vm74, %v75, %v73
  %v77 = vadd.f32 %v64, 1e-06
  %v78 = vadd.f32 %v76, 1e-06
  %v79 = vrcp.pop %v77
  %v80 = vrcp.pop %v78
  %v82 = vperm.slane %v23, 0
  %v84 = vmul.f32 %v82, %v41
  %v85 = vmul.f32 %v82, %v42
  %v86 = vmul.f32 %v84, %v79
  %v87 = vmul.f32 %v85, %v80
  %v89 = vperm.slane %v24, 0
  %v91 = vadd.f32 %v86, %v89
  %v92 = vadd.f32 %v87, %v89
  %v93 = vpack.c.bf16 %v92, %v91
  %v94 = vld [vmem:[%s3] sm:$0xf]
  %v95 = vld [vmem:[%s3 + $0x4] sm:$0xf]
  %v96 = vld [vmem:[%s3 + $0x8] sm:$0xf]
  %v97 = vld [vmem:[%s3 + $0xc] sm:$0xf]
  %v98 = vld [vmem:[%s4] sm:$0x1]
  %v100 = vperm.slane %v98, 0
  %v106 = vunpack.c.l.b16 %v94
  %v107 = vunpack.c.l.b16 %v95
  %v108 = vunpack.c.l.b16 %v96
  %v109 = vunpack.c.l.b16 %v97
  %v110 = vpack.c.b16 %v107, %v106
  %v111 = vpack.c.b16 %v109, %v108
  %v115 = vsel %vm25, %v93, 0
  %117 = vmatpush.bf16.msra.mxu0 0
  %118 = vmatpush.bf16.msra.mxu0 0
  %119 = vmatpush.bf16.msra.mxu0 0
  %120 = vmatpush.bf16.msra.mxu0 0
  %121 = vmatpush.bf16.msra.mxu0 0
  %122 = vmatpush.bf16.msra.mxu0 0
  %123 = vmatpush.bf16.msra.mxu0 %v111
  %124 = vmatpush.bf16.msra.mxu0 %v110
  %125 = vmatmul.bf16.gmra.mxu0 %v115
  %v126 = vpop.f32.mrf.mxu0
  %v127 = vadd.f32 %v100, %v126
  %v128 = vpop.f32.mrf.mxu0
  %v129 = vadd.f32 %v100, %v128
  %130 = vdwg.mxu0
  %v131 = vpack.c.bf16 %v127, %v127
  %v132 = vpack.c.bf16 %v129, %v129
  %vm133 = vcmask 781312
  %134 = vst.msk [vmem:[%s5] sm:$0xf] %vm133, %v131
  %135 = vst.msk [vmem:[%s5 + $0x4] sm:$0xf] %vm133, %v132
  // Predicated region
  $region22: #{transformer_forward.36} parent=0 // pred_check
    _
  $region23: #{transformer_forward.36} parent=0 // pred_check_branch
    %137 = sbr.rel (0) target = $region25
  $region24: #{transformer_forward.36} parent=0 // pred_region
    _
  $region25: #{transformer_forward.36} parent=0 // pred_fallthru
    _
  // Predicated region
  $region26: #{transformer_forward.36} parent=0 // pred_check
    _
  $region27: #{transformer_forward.36} parent=0 // pred_check_branch
    %139 = sbr.rel (0) target = $region29
  $region28: #{transformer_forward.36} parent=0 // pred_region
    _
  $region29: #{transformer_forward.36} parent=0 // pred_fallthru
    _

// kernel: transformer_forward.38
$region0: #{transformer_forward.38}
  #allocation0 [shape = 'u32[]', space=smem, size = 0x4, offset = 0x4, fixed_abs, tag = 'smem constant byte address 0x4 - core index']
  #allocation1 [shape = 'u32[72,128]{1,0:T(1,128)}', space=vmem, size = 0x9000, scoped, tag = 'internal scratch']
  %s0 = inlined_call_operand.vmem [shape: bf16[16,32], index: 0, kind: input, shape index: {}]
  %s1 = inlined_call_operand.vmem [shape: bf16[32,32], index: 1, kind: input, shape index: {}]
  %s2 = inlined_call_operand.vmem [shape: f32[1,32], index: 2, kind: input, shape index: {}]
  %s3 = inlined_call_operand.vmem [shape: f32[16,32], index: 3, kind: input, shape index: {}]
  %s4 = inlined_call_operand.vmem [shape: f32[16,32], index: 4, kind: output, shape index: {}]
  %s5 = sld [smem:[#allocation0]]
  $region26: #{transformer_forward.38} parent=0
    _
  %s7 = ssub.s32 1, %s5
  %s8 = scalar_select 0, %s7, %s5
  // Predicated region
  $region2: #{transformer_forward.38} parent=0 // pred_check
    _
  $region3: #{transformer_forward.38} parent=0 // pred_check_branch
    %10 = sbr.rel (0) target = $region5
  $region4: #{transformer_forward.38} parent=0 // pred_region
    _
  $region5: #{transformer_forward.38} parent=0 // pred_fallthru
    _
  // Predicated region
  $region6: #{transformer_forward.38} parent=0 // pred_check
    _
  $region7: #{transformer_forward.38} parent=0 // pred_check_branch
    %12 = sbr.rel (0) target = $region9
  $region8: #{transformer_forward.38} parent=0 // pred_region
    _
  $region9: #{transformer_forward.38} parent=0 // pred_fallthru
    _
  // Predicated region
  $region10: #{transformer_forward.38} parent=0 // pred_check
    _
  $region11: #{transformer_forward.38} parent=0 // pred_check_branch
    %14 = sbr.rel (0) target = $region13
  $region12: #{transformer_forward.38} parent=0 // pred_region
    _
  $region13: #{transformer_forward.38} parent=0 // pred_fallthru
    _
  // Predicated region
  $region14: #{transformer_forward.38} parent=0 // pred_check
    _
  $region15: #{transformer_forward.38} parent=0 // pred_check_branch
    %16 = sbr.rel (0) target = $region17
  $region16: #{transformer_forward.38} parent=0 // pred_region
    _
  $region17: #{transformer_forward.38} parent=0 // pred_fallthru
    _
  %v18 = vld [vmem:[%s0] sm:$0xf]
  %v19 = vld [vmem:[%s0 + $0x4] sm:$0xf]
  %v20 = vld [vmem:[%s1] sm:$0xf]
  %v21 = vld [vmem:[%s1 + $0x4] sm:$0xf]
  %v22 = vld [vmem:[%s1 + $0x8] sm:$0xf]
  %v23 = vld [vmem:[%s1 + $0xc] sm:$0xf]
  %v24 = vld [vmem:[%s2] sm:$0x1]
  %v26 = vperm.slane %v24, 0
  %v30 = vunpack.c.l.b16 %v18
  %v31 = vunpack.c.l.b16 %v19
  %v32 = vpack.c.b16 %v31, %v30
  %v37 = vunpack.c.l.b16 %v20
  %v38 = vunpack.c.l.b16 %v21
  %v39 = vunpack.c.l.b16 %v22
  %v40 = vunpack.c.l.b16 %v23
  %v41 = vpack.c.b16 %v38, %v37
  %v42 = vpack.c.b16 %v40, %v39
  %vm45 = vcmask 261120
  %v47 = vsel %vm45, %v32, 0
  %49 = vmatpush.bf16.msra.mxu0 0
  %50 = vmatpush.bf16.msra.mxu0 0
  %51 = vmatpush.bf16.msra.mxu0 0
  %52 = vmatpush.bf16.msra.mxu0 0
  %53 = vmatpush.bf16.msra.mxu0 0
  %54 = vmatpush.bf16.msra.mxu0 0
  %55 = vmatpush.bf16.msra.mxu0 %v42
  %56 = vmatpush.bf16.msra.mxu0 %v41
  %57 = vmatmul.bf16.gmra.mxu0 %v47
  %v58 = vpop.f32.mrf.mxu0
  %v59 = vadd.f32 %v26, %v58
  %v60 = vpop.f32.mrf.mxu0
  %v61 = vadd.f32 %v26, %v60
  %62 = vdwg.mxu0
  %v63 = vld [vmem:[%s3] sm:$0xff]
  %v64 = vld [vmem:[%s3 + $0x8] sm:$0xff]
  %v65 = vadd.f32 %v59, %v63
  %v66 = vadd.f32 %v61, %v64
  %67 = vst.msk [vmem:[%s4] sm:$0xff] %vm45, %v65
  %68 = vst.msk [vmem:[%s4 + $0x8] sm:$0xff] %vm45, %v66
  // Predicated region
  $region18: #{transformer_forward.38} parent=0 // pred_check
    _
  $region19: #{transformer_forward.38} parent=0 // pred_check_branch
    %70 = sbr.rel (0) target = $region21
  $region20: #{transformer_forward.38} parent=0 // pred_region
    _
  $region21: #{transformer_forward.38} parent=0 // pred_fallthru
    _
  // Predicated region
  $region22: #{transformer_forward.38} parent=0 // pred_check
    _
  $region23: #{transformer_forward.38} parent=0 // pred_check_branch
    %72 = sbr.rel (0) target = $region25
  $region24: #{transformer_forward.38} parent=0 // pred_region
    _
  $region25: #{transformer_forward.38} parent=0 // pred_fallthru
    _

// kernel: transformer_forward.37
$region0: #{transformer_forward.37}
  #allocation0 [shape = 'u32[]', space=smem, size = 0x4, offset = 0x4, fixed_abs, tag = 'smem constant byte address 0x4 - core index']
  #allocation1 [shape = 'u32[72,128]{1,0:T(1,128)}', space=vmem, size = 0x9000, scoped, tag = 'internal scratch']
  #allocation2 [shape = 'f32[8,1]{1,0:T(8,128)}', space=vmem, size = 0x1000, scoped, tag = 'scratch operand']
  #allocation3 [shape = 'f32[8,1]{1,0:T(8,128)}', space=vmem, size = 0x1000, scoped, tag = 'scratch operand']
  #allocation4 [shape = 'f32[8,8]{1,0:T(8,128)}', space=vmem, size = 0x1000, scoped, tag = 'scratch operand']
  %s0 = inlined_call_operand.vmem [shape: bf16[3,2,4,8,8], index: 0, kind: input, shape index: {}, may-alias: {0,1,2}]
  %s1 = inlined_call_operand.vmem [shape: bf16[3,2,4,8,8], index: 1, kind: input, shape index: {}, may-alias: {0,1,2}]
  %s2 = inlined_call_operand.vmem [shape: bf16[3,2,4,8,8], index: 2, kind: input, shape index: {}, may-alias: {0,1,2}]
  %s3 = inlined_call_operand.vmem [shape: f32[2,1,8], index: 3, kind: input, shape index: {}]
  %s4 = inlined_call_operand.vmem [shape: bf16[2,4,8,8], index: 4, kind: output, shape index: {}]
  %s5 = sld [smem:[#allocation0]]
  $region57: #{transformer_forward.37} parent=0
    _
  %s7 = ssub.s32 1, %s5
  %s8 = scalar_select 0, %s7, %s5
  loop: start=0, step=1, limit=10
  $region2: #{transformer_forward.37} parent=0 // loop_pre_header
    _
  $region3: #{transformer_forward.37} parent=0 // loop_header
    %s10 = sphi 0, %s14
    %p11 = scmp.ge.s32.totalorder %s10, 10
    %s17 = sphi 0, %s43
    %s18 = sphi 0, %s39
    %s19 = sphi 0, %s35
    %s20 = sphi 0, %s31
    %s21 = sphi 0, %s17
    %s22 = sphi 0, %s18
    %s23 = sphi 0, %s19
    %s24 = sphi 0, %s20
    %s25 = sphi 0, %s21
    %s26 = sphi 0, %s22
    %s27 = sphi 0, %s23
    %s28 = sphi 0, %s24
    %s50 = sphi 0, %s52
    %s53 = sphi 0, %s50
    %s54 = sphi 0, %s53
    %s70 = sphi 0, %s54
    %s80 = sphi 0, %s82
    %s83 = sphi 0, %s80
    %s84 = sphi 0, %s83
    %s100 = sphi 0, %s84
    %s110 = sphi 0, %s112
    %s113 = sphi 0, %s110
    %s114 = sphi 0, %s113
    %s130 = sphi 0, %s114
    %s138 = sphi 0, %s140
    %s141 = sphi 0, %s138
    %s142 = sphi 0, %s141
    %s158 = sphi 0, %s142
    %s168 = sphi 0, %s170
    %s171 = sphi 0, %s168
    %s172 = sphi 0, %s171
    %s188 = sphi 0, %s172
  $region4: #{transformer_forward.37} parent=0 // loop_header_branch
    %13 = sbr.rel (%p11) target = $region8
  $region5: #{transformer_forward.37} parent=0 // loop_body
    %s15 = ssub.s32 %s10, 1
    %s16 = ssub.s32 %s10, 2
    %s29 = sadd.s32 1, %s20
    %p30 = scmp.ge.s32.totalorder %s29, 1
    %s31 = scalar_select %p30, 0, %s29
    %s32 = sadd.s32 1, %s19
    %s33 = scalar_select %p30, %s32, %s19
    %p34 = scmp.ge.s32.totalorder %s33, 1
    %s35 = scalar_select %p34, 0, %s33
    %s36 = sadd.s32 1, %s18
    %s37 = scalar_select %p34, %s36, %s18
    %p38 = scmp.ge.s32.totalorder %s37, 4
    %s39 = scalar_select %p38, 0, %s37
    %s40 = sadd.s32 1, %s17
    %s41 = scalar_select %p38, %s40, %s17
    %p42 = scmp.ge.s32.totalorder %s41, 2
    %s43 = scalar_select %p42, 0, %s41
    %s44 = ssub.s32 %s17, %s43
    %s45 = ssub.s32 %s18, %s39
    %s46 = sor.u32 %s44, %s45
    %s47 = ssub.s32 %s19, %s35
    %s48 = sor.u32 %s46, %s47
    %p49 = scmp.eq.s32.totalorder %s48, 0
    %s51 = sadd.s32 %s50, 1
    %s52 = scalar_select %p49, %s50, %s51
    %p55 = pneg %p49
    %p56 = scmp.eq.s32.totalorder %s10, 7
    %p57 = por %p55, %p56
    %p58 = scmp.ne.s32.totalorder %s50, %s53
    %p59 = scmp.eq.s32.totalorder %s10, 0
    %p60 = por %p58, %p59
    %p61 = scmp.ne.s32.totalorder %s50, %s53
    %p62 = scmp.eq.s32.totalorder %s15, 7
    %p63 = por %p61, %p62
    %p64 = scmp.ne.s32.totalorder %s53, %s54
    %p65 = scmp.eq.s32.totalorder %s15, 0
    %p66 = por %p64, %p65
    %p67 = scmp.ne.s32.totalorder %s53, %s54
    %p68 = scmp.eq.s32.totalorder %s16, 7
    %p69 = por %p67, %p68
    %p71 = scmp.ne.s32.totalorder %s54, %s70
    %p72 = scmp.eq.s32.totalorder %s16, 0
    %p73 = por %p71, %p72
    %s74 = ssub.s32 %s17, %s43
    %s75 = ssub.s32 %s18, %s39
    %s76 = sor.u32 %s74, %s75
    %s77 = ssub.s32 %s20, %s31
    %s78 = sor.u32 %s76, %s77
    %p79 = scmp.eq.s32.totalorder %s78, 0
    %s81 = sadd.s32 %s80, 1
    %s82 = scalar_select %p79, %s80, %s81
    %p85 = pneg %p79
    %p86 = scmp.eq.s32.totalorder %s10, 7
    %p87 = por %p85, %p86
    %p88 = scmp.ne.s32.totalorder %s80, %s83
    %p89 = scmp.eq.s32.totalorder %s10, 0
    %p90 = por %p88, %p89
    %p91 = scmp.ne.s32.totalorder %s80, %s83
    %p92 = scmp.eq.s32.totalorder %s15, 7
    %p93 = por %p91, %p92
    %p94 = scmp.ne.s32.totalorder %s83, %s84
    %p95 = scmp.eq.s32.totalorder %s15, 0
    %p96 = por %p94, %p95
    %p97 = scmp.ne.s32.totalorder %s83, %s84
    %p98 = scmp.eq.s32.totalorder %s16, 7
    %p99 = por %p97, %p98
    %p101 = scmp.ne.s32.totalorder %s84, %s100
    %p102 = scmp.eq.s32.totalorder %s16, 0
    %p103 = por %p101, %p102
    %s104 = ssub.s32 %s17, %s43
    %s105 = ssub.s32 %s18, %s39
    %s106 = sor.u32 %s104, %s105
    %s107 = ssub.s32 %s20, %s31
    %s108 = sor.u32 %s106, %s107
    %p109 = scmp.eq.s32.totalorder %s108, 0
    %s111 = sadd.s32 %s110, 1
    %s112 = scalar_select %p109, %s110, %s111
    %p115 = pneg %p109
    %p116 = scmp.eq.s32.totalorder %s10, 7
    %p117 = por %p115, %p116
    %p118 = scmp.ne.s32.totalorder %s110, %s113
    %p119 = scmp.eq.s32.totalorder %s10, 0
    %p120 = por %p118, %p119
    %p121 = scmp.ne.s32.totalorder %s110, %s113
    %p122 = scmp.eq.s32.totalorder %s15, 7
    %p123 = por %p121, %p122
    %p124 = scmp.ne.s32.totalorder %s113, %s114
    %p125 = scmp.eq.s32.totalorder %s15, 0
    %p126 = por %p124, %p125
    %p127 = scmp.ne.s32.totalorder %s113, %s114
    %p128 = scmp.eq.s32.totalorder %s16, 7
    %p129 = por %p127, %p128
    %p131 = scmp.ne.s32.totalorder %s114, %s130
    %p132 = scmp.eq.s32.totalorder %s16, 0
    %p133 = por %p131, %p132
    %s134 = ssub.s32 %s17, %s43
    %s135 = ssub.s32 %s20, %s31
    %s136 = sor.u32 %s134, %s135
    %p137 = scmp.eq.s32.totalorder %s136, 0
    %s139 = sadd.s32 %s138, 1
    %s140 = scalar_select %p137, %s138, %s139
    %p143 = pneg %p137
    %p144 = scmp.eq.s32.totalorder %s10, 7
    %p145 = por %p143, %p144
    %p146 = scmp.ne.s32.totalorder %s138, %s141
    %p147 = scmp.eq.s32.totalorder %s10, 0
    %p148 = por %p146, %p147
    %p149 = scmp.ne.s32.totalorder %s138, %s141
    %p150 = scmp.eq.s32.totalorder %s15, 7
    %p151 = por %p149, %p150
    %p152 = scmp.ne.s32.totalorder %s141, %s142
    %p153 = scmp.eq.s32.totalorder %s15, 0
    %p154 = por %p152, %p153
    %p155 = scmp.ne.s32.totalorder %s141, %s142
    %p156 = scmp.eq.s32.totalorder %s16, 7
    %p157 = por %p155, %p156
    %p159 = scmp.ne.s32.totalorder %s142, %s158
    %p160 = scmp.eq.s32.totalorder %s16, 0
    %p161 = por %p159, %p160
    %s162 = ssub.s32 %s17, %s43
    %s163 = ssub.s32 %s18, %s39
    %s164 = sor.u32 %s162, %s163
    %s165 = ssub.s32 %s19, %s35
    %s166 = sor.u32 %s164, %s165
    %p167 = scmp.eq.s32.totalorder %s166, 0
    %s169 = sadd.s32 %s168, 1
    %s170 = scalar_select %p167, %s168, %s169
    %p173 = pneg %p167
    %p174 = scmp.eq.s32.totalorder %s10, 7
    %p175 = por %p173, %p174
    %p176 = scmp.ne.s32.totalorder %s168, %s171
    %p177 = scmp.eq.s32.totalorder %s10, 0
    %p178 = por %p176, %p177
    %p179 = scmp.ne.s32.totalorder %s168, %s171
    %p180 = scmp.eq.s32.totalorder %s15, 7
    %p181 = por %p179, %p180
    %p182 = scmp.ne.s32.totalorder %s171, %s172
    %p183 = scmp.eq.s32.totalorder %s15, 0
    %p184 = por %p182, %p183
    %p185 = scmp.ne.s32.totalorder %s171, %s172
    %p186 = scmp.eq.s32.totalorder %s16, 7
    %p187 = por %p185, %p186
    %p189 = scmp.ne.s32.totalorder %s172, %s188
    %p190 = scmp.eq.s32.totalorder %s16, 0
    %p191 = por %p189, %p190
    %p192 = scmp.le.s32.totalorder 1, %s10
    %p193 = scmp.lt.s32.totalorder %s10, 9
    %p194 = pnand %p192, %p193
    %p195 = pneg %p194
    // Predicated region
    $region9: #{transformer_forward.37} parent=5 // pred_check
      _
    $region10: #{transformer_forward.37} parent=5 // pred_check_branch
      %197 = sbr.rel (%p194) target = $region12
    $region11: #{transformer_forward.37} parent=5 // pred_region
      %s198 = ssub.s32 %s10, 1
    $region12: #{transformer_forward.37} parent=5 // pred_fallthru
      _
    %p199 = scmp.lt.s32.totalorder %s10, 8
    // Predicated region
    $region13: #{transformer_forward.37} parent=5 // pred_check
      %p200 = pneg %p199
    $region14: #{transformer_forward.37} parent=5 // pred_check_branch
      %202 = sbr.rel (%p200) target = $region16
    $region15: #{transformer_forward.37} parent=5 // pred_region
      // Predicated region
      $region17: #{transformer_forward.37} parent=15 // pred_check
        %p203 = pneg %p60
      $region18: #{transformer_forward.37} parent=15 // pred_check_branch
        %205 = sbr.rel (%p203) target = $region20
      $region19: #{transformer_forward.37} parent=15 // pred_region
        %p206 = scmp.lt.s32.totalorder %s17, 1
        %s207 = scalar_select %p206, %s17, 1
        %p208 = scmp.lt.s32.totalorder %s18, 3
        %s209 = scalar_select %p208, %s18, 3
        %p210 = scmp.lt.s32.totalorder %s19, 0
        %s211 = scalar_select %p210, %s19, 0
        %s212 = sadd.s32 %s211, %s209
        %s213 = smul.addr %s207, 4
        %s214 = sadd.s32 %s212, %s213
        %s215 = smul.addr %s214, 4
        %s216 = scalar_lea.vmem %s0, %s215
      $region20: #{transformer_forward.37} parent=15 // pred_fallthru
        _
      // Predicated region
      $region21: #{transformer_forward.37} parent=15 // pred_check
        %p217 = pneg %p90
      $region22: #{transformer_forward.37} parent=15 // pred_check_branch
        %219 = sbr.rel (%p217) target = $region24
      $region23: #{transformer_forward.37} parent=15 // pred_region
        %p220 = scmp.lt.s32.totalorder %s17, 1
        %s221 = scalar_select %p220, %s17, 1
        %p222 = scmp.lt.s32.totalorder %s18, 3
        %s223 = scalar_select %p222, %s18, 3
        %p224 = scmp.lt.s32.totalorder %s20, 0
        %s225 = scalar_select %p224, %s20, 0
        %s226 = sadd.s32 %s225, %s223
        %s227 = smul.addr %s221, 4
        %s228 = sadd.s32 %s226, %s227
        %s229 = sadd.s32 %s228, 8
        %s230 = smul.addr %s229, 4
        %s231 = scalar_lea.vmem %s1, %s230
      $region24: #{transformer_forward.37} parent=15 // pred_fallthru
        _
      // Predicated region
      $region25: #{transformer_forward.37} parent=15 // pred_check
        %p232 = pneg %p120
      $region26: #{transformer_forward.37} parent=15 // pred_check_branch
        %234 = sbr.rel (%p232) target = $region28
      $region27: #{transformer_forward.37} parent=15 // pred_region
        %p235 = scmp.lt.s32.totalorder %s17, 1
        %s236 = scalar_select %p235, %s17, 1
        %p237 = scmp.lt.s32.totalorder %s18, 3
        %s238 = scalar_select %p237, %s18, 3
        %p239 = scmp.lt.s32.totalorder %s20, 0
        %s240 = scalar_select %p239, %s20, 0
        %s241 = sadd.s32 %s240, %s238
        %s242 = smul.addr %s236, 4
        %s243 = sadd.s32 %s241, %s242
        %s244 = sadd.s32 %s243, 16
        %s245 = smul.addr %s244, 4
        %s246 = scalar_lea.vmem %s2, %s245
      $region28: #{transformer_forward.37} parent=15 // pred_fallthru
        _
      // Predicated region
      $region29: #{transformer_forward.37} parent=15 // pred_check
        %p247 = pneg %p148
      $region30: #{transformer_forward.37} parent=15 // pred_check_branch
        %249 = sbr.rel (%p247) target = $region32
      $region31: #{transformer_forward.37} parent=15 // pred_region
        %p250 = scmp.lt.s32.totalorder %s17, 1
        %s251 = scalar_select %p250, %s17, 1
        %p252 = scmp.lt.s32.totalorder %s20, 0
        %s253 = scalar_select %p252, %s20, 0
        %s254 = sadd.s32 %s253, %s251
        %s255 = scalar_lea.vmem %s3, %s254
      $region32: #{transformer_forward.37} parent=15 // pred_fallthru
        _
    $region16: #{transformer_forward.37} parent=5 // pred_fallthru
      _
    %p256 = scmp.le.s32.totalorder 1, %s10
    %p257 = scmp.lt.s32.totalorder %s10, 9
    %p258 = pnand %p256, %p257
    %p259 = pneg %p258
    // Predicated region
    $region33: #{transformer_forward.37} parent=5 // pred_check
      _
    $region34: #{transformer_forward.37} parent=5 // pred_check_branch
      %261 = sbr.rel (%p258) target = $region36
    $region35: #{transformer_forward.37} parent=5 // pred_region
      %s262 = ssub.s32 %s10, 1
      %p263 = scmp.lt.s32.totalorder %s21, 1
      %s264 = scalar_select %p263, %s21, 1
      %p265 = scmp.lt.s32.totalorder %s22, 3
      %s266 = scalar_select %p265, %s22, 3
      %p267 = scmp.lt.s32.totalorder %s23, 0
      %s268 = scalar_select %p267, %s23, 0
      %s269 = sadd.s32 %s268, %s266
      %s270 = smul.addr %s264, 4
      %s271 = sadd.s32 %s269, %s270
      %s272 = smul.addr %s271, 4
      %s273 = scalar_lea.vmem %s0, %s272
      %p274 = pneg %p66
      %p275 = pneg %p63
      %p276 = scmp.lt.s32.totalorder %s21, 1
      %s277 = scalar_select %p276, %s21, 1
      %p278 = scmp.lt.s32.totalorder %s22, 3
      %s279 = scalar_select %p278, %s22, 3
      %p280 = scmp.lt.s32.totalorder %s24, 0
      %s281 = scalar_select %p280, %s24, 0
      %s282 = sadd.s32 %s281, %s279
      %s283 = smul.addr %s277, 4
      %s284 = sadd.s32 %s282, %s283
      %s285 = sadd.s32 %s284, 8
      %s286 = smul.addr %s285, 4
      %s287 = scalar_lea.vmem %s1, %s286
      %p288 = pneg %p96
      %p289 = pneg %p93
      %p290 = scmp.lt.s32.totalorder %s21, 1
      %s291 = scalar_select %p290, %s21, 1
      %p292 = scmp.lt.s32.totalorder %s22, 3
      %s293 = scalar_select %p292, %s22, 3
      %p294 = scmp.lt.s32.totalorder %s24, 0
      %s295 = scalar_select %p294, %s24, 0
      %s296 = sadd.s32 %s295, %s293
      %s297 = smul.addr %s291, 4
      %s298 = sadd.s32 %s296, %s297
      %s299 = sadd.s32 %s298, 16
      %s300 = smul.addr %s299, 4
      %s301 = scalar_lea.vmem %s2, %s300
      %p302 = pneg %p126
      %p303 = pneg %p123
      %p304 = scmp.lt.s32.totalorder %s21, 1
      %s305 = scalar_select %p304, %s21, 1
      %p306 = scmp.lt.s32.totalorder %s24, 0
      %s307 = scalar_select %p306, %s24, 0
      %s308 = sadd.s32 %s307, %s305
      %s309 = scalar_lea.vmem %s3, %s308
      %p310 = pneg %p154
      %p311 = pneg %p151
      %p312 = pneg %p184
      %p313 = pneg %p181
      %p314 = scmp.lt.s32.totalorder %s21, 1
      %s315 = scalar_select %p314, %s21, 1
      %p316 = scmp.lt.s32.totalorder %s22, 3
      %s317 = scalar_select %p316, %s22, 3
      %p318 = scmp.lt.s32.totalorder %s23, 0
      %s319 = scalar_select %p318, %s23, 0
      %s320 = sadd.s32 %s319, %s317
      %s321 = smul.addr %s315, 4
      %s322 = sadd.s32 %s320, %s321
      %s323 = smul.addr %s322, 4
      %s324 = scalar_lea.vmem %s4, %s323
      %p325 = scmp.lt.s32.totalorder %s21, 1
      %s326 = scalar_select %p325, %s21, 1
      %p327 = scmp.lt.s32.totalorder %s22, 3
      %s328 = scalar_select %p327, %s22, 3
      %p329 = scmp.lt.s32.totalorder %s23, 0
      %s330 = scalar_select %p329, %s23, 0
      %s331 = sadd.s32 %s330, %s328
      %s332 = smul.addr %s326, 4
      %s333 = sadd.s32 %s331, %s332
      %s334 = smul.addr %s333, 4
      %s335 = scalar_lea.vmem %s0, %s334
      %p336 = scmp.lt.s32.totalorder %s21, 1
      %s337 = scalar_select %p336, %s21, 1
      %p338 = scmp.lt.s32.totalorder %s22, 3
      %s339 = scalar_select %p338, %s22, 3
      %p340 = scmp.lt.s32.totalorder %s24, 0
      %s341 = scalar_select %p340, %s24, 0
      %s342 = sadd.s32 %s341, %s339
      %s343 = smul.addr %s337, 4
      %s344 = sadd.s32 %s342, %s343
      %s345 = sadd.s32 %s344, 8
      %s346 = smul.addr %s345, 4
      %s347 = scalar_lea.vmem %s1, %s346
      %p348 = scmp.lt.s32.totalorder %s21, 1
      %s349 = scalar_select %p348, %s21, 1
      %p350 = scmp.lt.s32.totalorder %s22, 3
      %s351 = scalar_select %p350, %s22, 3
      %p352 = scmp.lt.s32.totalorder %s24, 0
      %s353 = scalar_select %p352, %s24, 0
      %s354 = sadd.s32 %s353, %s351
      %s355 = smul.addr %s349, 4
      %s356 = sadd.s32 %s354, %s355
      %s357 = sadd.s32 %s356, 16
      %s358 = smul.addr %s357, 4
      %s359 = scalar_lea.vmem %s2, %s358
      %p360 = scmp.lt.s32.totalorder %s21, 1
      %s361 = scalar_select %p360, %s21, 1
      %p362 = scmp.lt.s32.totalorder %s24, 0
      %s363 = scalar_select %p362, %s24, 0
      %s364 = sadd.s32 %s363, %s361
      %s365 = scalar_lea.vmem %s3, %s364
      %p366 = scmp.lt.s32.totalorder %s21, 1
      %s367 = scalar_select %p366, %s21, 1
      %p368 = scmp.lt.s32.totalorder %s22, 3
      %s369 = scalar_select %p368, %s22, 3
      %p370 = scmp.lt.s32.totalorder %s23, 0
      %s371 = scalar_select %p370, %s23, 0
      %s372 = sadd.s32 %s371, %s369
      %s373 = smul.addr %s367, 4
      %s374 = sadd.s32 %s372, %s373
      %s375 = smul.addr %s374, 4
      %s376 = scalar_lea.vmem %s4, %s375
      %p378 = scmp.eq.s32.totalorder %s24, 0
      // Predicated region
      $region37: #{transformer_forward.37} parent=35 // pred_check
        %p379 = pneg %p378
      $region38: #{transformer_forward.37} parent=35 // pred_check_branch
        %381 = sbr.rel (%p379) target = $region40
      $region39: #{transformer_forward.37} parent=35 // pred_region
        %vm382 = vcmask 7168
        %383 = vst.msk [vmem:[#allocation2] sm:$0xff] %vm382, -inf
        %384 = vst.msk [vmem:[#allocation3] sm:$0xff] %vm382, 0.0
        %vm385 = vcmask 64512
        %386 = vst.msk [vmem:[#allocation4] sm:$0xff] %vm385, 0.0
      $region40: #{transformer_forward.37} parent=35 // pred_fallthru
        _
      %v387 = vld [vmem:[%s335] sm:$0xf]
      %v388 = vld [vmem:[%s347] sm:$0xf]
      %v389 = vld [vmem:[%s359] sm:$0xf]
      %v390 = vld [vmem:[%s365] sm:$0x1]
      %vm391 = vcmp.gt.f32.partialorder %v390, 0.5
      %v392 = vsel %vm391, 0.0, -1e+09
      %v394 = vperm.slane %v392, 0
      %vm396 = vcmask 64512
      %v398 = vsel %vm396, %v387, 0
      %v401 = vsel %vm396, %v388, 0
      %403 = vmatpush.bf16.xpose.msra.mxu0 0
      %404 = vmatpush.bf16.xpose.msra.mxu0 0
      %405 = vmatpush.bf16.xpose.msra.mxu0 0
      %406 = vmatpush.bf16.xpose.msra.mxu0 0
      %407 = vmatpush.bf16.xpose.msra.mxu0 0
      %408 = vmatpush.bf16.xpose.msra.mxu0 0
      %409 = vmatpush.bf16.xpose.msra.mxu0 0
      %410 = vmatpush.bf16.xpose.msra.mxu0 %v401
      %411 = vmatmul.bf16.gmra.mxu0 %v398
      %v412 = vpop.f32.mrf.mxu0
      %v413 = vadd.f32 %v394, %v412
      %v414 = vpop.f32.mrf.mxu0
      %415 = vdwg.mxu0
      %s416 = smul.u32 %s23, 8
      %s417 = smul.u32 %s24, 8
      %v418 = vlaneseq
      %v419 = vshrl.u32 %v418, 7
      %v420 = vstv %s416
      %v421 = vadd.s32 %v419, %v420
      %v422 = vlaneseq
      %v423 = vand.u32 %v422, 127
      %v424 = vstv %s417
      %v425 = vadd.s32 %v423, %v424
      %vm426 = vcmp.ge.s32.totalorder %v421, %v425
      %v427 = vsel %vm426, %v413, -1e+09
      %v428 = vld [vmem:[#allocation2] sm:$0xff]
      %v429 = vsel %vm396, %v427, -inf
      %430 = vmax.xlane.f32.xlu0 %v429
      %v431 = vpop.xlane.xlu0 %430
      %v432 = vmax.f32 %v428, %v431
      %v433 = vsub.f32 %v428, %v432
      %v434 = vmul.f32 %v433, 1.442695
      %v435 = vpow.pop %v434
      %437 = vset.pattern.permute.xlu0 0
      %438 = vperm.xlu0 %437, %v432
      %v439 = vpop.permute.xlu0 %438
      %v441 = vsub.f32 %v427, %v439
      %v442 = vmul.f32 %v441, 1.442695
      %v443 = vpow.pop %v442
      %v444 = vld [vmem:[#allocation3] sm:$0xff]
      %v445 = vmul.f32 %v435, %v444
      %v446 = vsel %vm396, %v443, 0.0
      %447 = vadd.xlane.f32.xlu0 %v446
      %v448 = vpop.xlane.xlu0 %447
      %v449 = vadd.f32 %v445, %v448
      %vm450 = vcmask 7168
      %451 = vst.msk [vmem:[#allocation3] sm:$0xff] %vm450, %v449
      %v452 = vld [vmem:[#allocation4] sm:$0xff]
      %454 = vset.pattern.permute.xlu0 0
      %455 = vperm.xlu0 %454, %v435
      %v456 = vpop.permute.xlu0 %455
      %v458 = vmul.f32 %v456, %v452
      %v459 = vpack.c.bf16 %v443, %v443
      %v461 = vsel %vm396, %v459, 0
      %vm463 = vcmask 1043456
      %v465 = vsel %vm463, %v389, 0
      %467 = vmatpush.bf16.msra.mxu0 0
      %468 = vmatpush.bf16.msra.mxu0 0
      %469 = vmatpush.bf16.msra.mxu0 0
      %470 = vmatpush.bf16.msra.mxu0 0
      %471 = vmatpush.bf16.msra.mxu0 0
      %472 = vmatpush.bf16.msra.mxu0 0
      %473 = vmatpush.bf16.msra.mxu0 0
      %474 = vmatpush.bf16.msra.mxu0 %v465
      %475 = vmatmul.bf16.gmra.mxu0 %v461
      %v476 = vpop.f32.mrf.mxu0
      %v477 = vadd.f32 0.0, %v476
      %v478 = vpop.f32.mrf.mxu0
      %479 = vdwg.mxu0
      %v480 = vadd.f32 %v458, %v477
      %481 = vst.msk [vmem:[#allocation4] sm:$0xff] %vm396, %v480
      %482 = vst.msk [vmem:[#allocation2] sm:$0xff] %vm450, %v432
      // Predicated region
      $region41: #{transformer_forward.37} parent=35 // pred_check
        %p483 = pneg %p378
      $region42: #{transformer_forward.37} parent=35 // pred_check_branch
        %485 = sbr.rel (%p483) target = $region44
      $region43: #{transformer_forward.37} parent=35 // pred_region
        %v486 = vld [vmem:[#allocation4] sm:$0xff]
        %v487 = vld [vmem:[#allocation3] sm:$0xff]
        %v488 = vrcp.pop %v487
        %490 = vset.pattern.permute.xlu0 0
        %491 = vperm.xlu0 %490, %v488
        %v492 = vpop.permute.xlu0 %491
        %v494 = vmul.f32 %v486, %v492
        %v495 = vpack.c.bf16 %v494, %v494
        %vm496 = vcmask 60416
        %497 = vst.msk [vmem:[%s376] sm:$0xf] %vm496, %v495
      $region44: #{transformer_forward.37} parent=35 // pred_fallthru
        _
      %p498 = scmp.lt.s32.totalorder %s21, 1
      %s499 = scalar_select %p498, %s21, 1
      %p500 = scmp.lt.s32.totalorder %s22, 3
      %s501 = scalar_select %p500, %s22, 3
      %p502 = scmp.lt.s32.totalorder %s23, 0
      %s503 = scalar_select %p502, %s23, 0
      %s504 = sadd.s32 %s503, %s501
      %s505 = smul.addr %s499, 4
      %s506 = sadd.s32 %s504, %s505
      %s507 = smul.addr %s506, 4
      %s508 = scalar_lea.vmem %s4, %s507
      // Predicated region
      $region45: #{transformer_forward.37} parent=35 // pred_check
        %p509 = pneg %p181
      $region46: #{transformer_forward.37} parent=35 // pred_check_branch
        %511 = sbr.rel (%p509) target = $region48
      $region47: #{transformer_forward.37} parent=35 // pred_region
        _
      $region48: #{transformer_forward.37} parent=35 // pred_fallthru
        _
    $region36: #{transformer_forward.37} parent=5 // pred_fallthru
      _
    %p512 = scmp.le.s32.totalorder 2, %s10
    // Predicated region
    $region49: #{transformer_forward.37} parent=5 // pred_check
      %p513 = pneg %p512
    $region50: #{transformer_forward.37} parent=5 // pred_check_branch
      %515 = sbr.rel (%p513) target = $region52
    $region51: #{transformer_forward.37} parent=5 // pred_region
      %s516 = ssub.s32 %s10, 2
      // Predicated region
      $region53: #{transformer_forward.37} parent=51 // pred_check
        %p517 = pneg %p187
      $region54: #{transformer_forward.37} parent=51 // pred_check_branch
        %519 = sbr.rel (%p517) target = $region56
      $region55: #{transformer_forward.37} parent=51 // pred_region
        %p520 = scmp.lt.s32.totalorder %s25, 1
        %s521 = scalar_select %p520, %s25, 1
        %p522 = scmp.lt.s32.totalorder %s26, 3
        %s523 = scalar_select %p522, %s26, 3
        %p524 = scmp.lt.s32.totalorder %s27, 0
        %s525 = scalar_select %p524, %s27, 0
        %s526 = sadd.s32 %s525, %s523
        %s527 = smul.addr %s521, 4
        %s528 = sadd.s32 %s526, %s527
        %s529 = smul.addr %s528, 4
        %s530 = scalar_lea.vmem %s4, %s529
      $region56: #{transformer_forward.37} parent=51 // pred_fallthru
        _
    $region52: #{transformer_forward.37} parent=5 // pred_fallthru
      _
  $region6: #{transformer_forward.37} parent=0 // loop_footer
    %s14 = sadd.s32 1, %s10
  $region7: #{transformer_forward.37} parent=0 // loop_footer_branch
    %9 = sbr.rel target = $region3
  $region8: #{transformer_forward.37} parent=0 // loop_exit
    _

// kernel: transformer_forward.40
$region0: #{transformer_forward.40}
  #allocation0 [shape = 'u32[]', space=smem, size = 0x4, offset = 0x4, fixed_abs, tag = 'smem constant byte address 0x4 - core index']
  #allocation1 [shape = 'u32[72,128]{1,0:T(1,128)}', space=vmem, size = 0x9000, scoped, tag = 'internal scratch']
  %s0 = inlined_call_operand.vmem [shape: f32[16,32], index: 0, kind: input, shape index: {}]
  %s1 = inlined_call_operand.vmem [shape: f32[1,32], index: 1, kind: input, shape index: {}]
  %s2 = inlined_call_operand.vmem [shape: f32[1,32], index: 2, kind: input, shape index: {}]
  %s3 = inlined_call_operand.vmem [shape: bf16[32,32], index: 3, kind: input, shape index: {}]
  %s4 = inlined_call_operand.vmem [shape: f32[1,32], index: 4, kind: input, shape index: {}]
  %s5 = inlined_call_operand.vmem [shape: bf16[16,32], index: 5, kind: output, shape index: {}]
  %s6 = sld [smem:[#allocation0]]
  $region30: #{transformer_forward.40} parent=0
    _
  %s8 = ssub.s32 1, %s6
  %s9 = scalar_select 0, %s8, %s6
  // Predicated region
  $region2: #{transformer_forward.40} parent=0 // pred_check
    _
  $region3: #{transformer_forward.40} parent=0 // pred_check_branch
    %11 = sbr.rel (0) target = $region5
  $region4: #{transformer_forward.40} parent=0 // pred_region
    _
  $region5: #{transformer_forward.40} parent=0 // pred_fallthru
    _
  // Predicated region
  $region6: #{transformer_forward.40} parent=0 // pred_check
    _
  $region7: #{transformer_forward.40} parent=0 // pred_check_branch
    %13 = sbr.rel (0) target = $region9
  $region8: #{transformer_forward.40} parent=0 // pred_region
    _
  $region9: #{transformer_forward.40} parent=0 // pred_fallthru
    _
  // Predicated region
  $region10: #{transformer_forward.40} parent=0 // pred_check
    _
  $region11: #{transformer_forward.40} parent=0 // pred_check_branch
    %15 = sbr.rel (0) target = $region13
  $region12: #{transformer_forward.40} parent=0 // pred_region
    _
  $region13: #{transformer_forward.40} parent=0 // pred_fallthru
    _
  // Predicated region
  $region14: #{transformer_forward.40} parent=0 // pred_check
    _
  $region15: #{transformer_forward.40} parent=0 // pred_check_branch
    %17 = sbr.rel (0) target = $region17
  $region16: #{transformer_forward.40} parent=0 // pred_region
    _
  $region17: #{transformer_forward.40} parent=0 // pred_fallthru
    _
  // Predicated region
  $region18: #{transformer_forward.40} parent=0 // pred_check
    _
  $region19: #{transformer_forward.40} parent=0 // pred_check_branch
    %19 = sbr.rel (0) target = $region21
  $region20: #{transformer_forward.40} parent=0 // pred_region
    _
  $region21: #{transformer_forward.40} parent=0 // pred_fallthru
    _
  %v21 = vld [vmem:[%s0] sm:$0xff]
  %v22 = vld [vmem:[%s0 + $0x8] sm:$0xff]
  %v23 = vld [vmem:[%s1] sm:$0x1]
  %v24 = vld [vmem:[%s2] sm:$0x1]
  %vm25 = vcmask 261120
  %v26 = vsel %vm25, %v21, 0.0
  %27 = vadd.xlane.f32.xlu0 %v26
  %v28 = vpop.xlane.xlu0 %27
  %v29 = vsel %vm25, %v22, 0.0
  %30 = vadd.xlane.f32.xlu0 %v29
  %v31 = vpop.xlane.xlu0 %30
  %v32 = vrcp.pop 32.0
  %v33 = vmul.f32 32.0, %v32
  %v34 = vsub.f32 1.0, %v33
  %v35 = vmul.f32 %v32, %v34
  %v36 = vadd.f32 %v32, %v35
  %vm37 = vweird.f32 %v32
  %v38 = vsel %vm37, %v32, %v36
  %v39 = vmul.f32 %v28, %v38
  %v40 = vmul.f32 %v31, %v38
  %v41 = vsub.f32 %v21, %v39
  %v42 = vsub.f32 %v22, %v40
  %v43 = vmul.f32 %v41, %v41
  %v44 = vmul.f32 %v42, %v42
  %v45 = vsel %vm25, %v43, 0.0
  %46 = vadd.xlane.f32.xlu0 %v45
  %v47 = vpop.xlane.xlu0 %46
  %v48 = vsel %vm25, %v44, 0.0
  %49 = vadd.xlane.f32.xlu0 %v48
  %v50 = vpop.xlane.xlu0 %49
  %v51 = vmul.f32 %v47, 0.032258064
  %v52 = vmul.f32 %v50, 0.032258064
  %v53 = vrsqrt.pop %v51
  %v54 = vmul.f32 %v53, %v51
  %v55 = vmul.f32 %v54, %v53
  %v56 = vmul.f32 0.5, %v55
  %v57 = vsub.f32 1.5, %v56
  %v58 = vmul.f32 %v53, %v57
  %v59 = vmul.f32 %v51, %v58
  %vm60 = vcmp.eq.f32.partialorder %v51, inf
  %v61 = vsel %vm60, %v51, %v59
  %vm62 = vcmp.eq.f32.partialorder %v51, 0.0
  %v63 = vand.u32 %v51, 2147483648
  %v64 = vsel %vm62, %v63, %v61
  %v65 = vrsqrt.pop %v52
  %v66 = vmul.f32 %v65, %v52
  %v67 = vmul.f32 %v66, %v65
  %v68 = vmul.f32 0.5, %v67
  %v69 = vsub.f32 1.5, %v68
  %v70 = vmul.f32 %v65, %v69
  %v71 = vmul.f32 %v52, %v70
  %vm72 = vcmp.eq.f32.partialorder %v52, inf
  %v73 = vsel %vm72, %v52, %v71
  %vm74 = vcmp.eq.f32.partialorder %v52, 0.0
  %v75 = vand.u32 %v52, 2147483648
  %v76 = vsel %vm74, %v75, %v73
  %v77 = vadd.f32 %v64, 1e-06
  %v78 = vadd.f32 %v76, 1e-06
  %v79 = vrcp.pop %v77
  %v80 = vrcp.pop %v78
  %v82 = vperm.slane %v23, 0
  %v84 = vmul.f32 %v82, %v41
  %v85 = vmul.f32 %v82, %v42
  %v86 = vmul.f32 %v84, %v79
  %v87 = vmul.f32 %v85, %v80
  %v89 = vperm.slane %v24, 0
  %v91 = vadd.f32 %v86, %v89
  %v92 = vadd.f32 %v87, %v89
  %v93 = vpack.c.bf16 %v92, %v91
  %v94 = vld [vmem:[%s3] sm:$0xf]
  %v95 = vld [vmem:[%s3 + $0x4] sm:$0xf]
  %v96 = vld [vmem:[%s3 + $0x8] sm:$0xf]
  %v97 = vld [vmem:[%s3 + $0xc] sm:$0xf]
  %v98 = vld [vmem:[%s4] sm:$0x1]
  %v100 = vperm.slane %v98, 0
  %v106 = vunpack.c.l.b16 %v94
  %v107 = vunpack.c.l.b16 %v95
  %v108 = vunpack.c.l.b16 %v96
  %v109 = vunpack.c.l.b16 %v97
  %v110 = vpack.c.b16 %v107, %v106
  %v111 = vpack.c.b16 %v109, %v108
  %v115 = vsel %vm25, %v93, 0
  %117 = vmatpush.bf16.msra.mxu0 0
  %118 = vmatpush.bf16.msra.mxu0 0
  %119 = vmatpush.bf16.msra.mxu0 0
  %120 = vmatpush.bf16.msra.mxu0 0
  %121 = vmatpush.bf16.msra.mxu0 0
  %122 = vmatpush.bf16.msra.mxu0 0
  %123 = vmatpush.bf16.msra.mxu0 %v111
  %124 = vmatpush.bf16.msra.mxu0 %v110
  %125 = vmatmul.bf16.gmra.mxu0 %v115
  %v126 = vpop.f32.mrf.mxu0
  %v127 = vadd.f32 %v100, %v126
  %v128 = vpop.f32.mrf.mxu0
  %v129 = vadd.f32 %v100, %v128
  %130 = vdwg.mxu0
  %v131 = vpack.c.bf16 %v127, %v127
  %v132 = vpack.c.bf16 %v129, %v129
  %vm133 = vcmask 257024
  %134 = vst.msk [vmem:[%s5] sm:$0xf] %vm133, %v131
  %135 = vst.msk [vmem:[%s5 + $0x4] sm:$0xf] %vm133, %v132
  // Predicated region
  $region22: #{transformer_forward.40} parent=0 // pred_check
    _
  $region23: #{transformer_forward.40} parent=0 // pred_check_branch
    %137 = sbr.rel (0) target = $region25
  $region24: #{transformer_forward.40} parent=0 // pred_region
    _
  $region25: #{transformer_forward.40} parent=0 // pred_fallthru
    _
  // Predicated region
  $region26: #{transformer_forward.40} parent=0 // pred_check
    _
  $region27: #{transformer_forward.40} parent=0 // pred_check_branch
    %139 = sbr.rel (0) target = $region29
  $region28: #{transformer_forward.40} parent=0 // pred_region
    _
  $region29: #{transformer_forward.40} parent=0 // pred_fallthru
    _

// kernel: transformer_forward.28
$region0: #{transformer_forward.28}
  #allocation0 [shape = 'u32[]', space=smem, size = 0x4, offset = 0x4, fixed_abs, tag = 'smem constant byte address 0x4 - core index']
  #allocation1 [shape = 'u32[72,128]{1,0:T(1,128)}', space=vmem, size = 0x9000, scoped, tag = 'internal scratch']
  #allocation2 [shape = 'f32[8,1]{1,0:T(8,128)}', space=vmem, size = 0x1000, scoped, tag = 'scratch operand']
  #allocation3 [shape = 'f32[8,1]{1,0:T(8,128)}', space=vmem, size = 0x1000, scoped, tag = 'scratch operand']
  #allocation4 [shape = 'f32[8,8]{1,0:T(8,128)}', space=vmem, size = 0x1000, scoped, tag = 'scratch operand']
  %s0 = inlined_call_operand.vmem [shape: bf16[3,2,4,8,8], index: 0, kind: input, shape index: {}, may-alias: {0,1,2}]
  %s1 = inlined_call_operand.vmem [shape: bf16[3,2,4,8,8], index: 1, kind: input, shape index: {}, may-alias: {0,1,2}]
  %s2 = inlined_call_operand.vmem [shape: bf16[3,2,4,8,8], index: 2, kind: input, shape index: {}, may-alias: {0,1,2}]
  %s3 = inlined_call_operand.vmem [shape: f32[2,1,8], index: 3, kind: input, shape index: {}]
  %s4 = inlined_call_operand.vmem [shape: bf16[2,4,8,8], index: 4, kind: output, shape index: {}]
  %s5 = sld [smem:[#allocation0]]
  $region57: #{transformer_forward.28} parent=0
    _
  %s7 = ssub.s32 1, %s5
  %s8 = scalar_select 0, %s7, %s5
  loop: start=0, step=1, limit=10
  $region2: #{transformer_forward.28} parent=0 // loop_pre_header
    _
  $region3: #{transformer_forward.28} parent=0 // loop_header
    %s10 = sphi 0, %s14
    %p11 = scmp.ge.s32.totalorder %s10, 10
    %s17 = sphi 0, %s43
    %s18 = sphi 0, %s39
    %s19 = sphi 0, %s35
    %s20 = sphi 0, %s31
    %s21 = sphi 0, %s17
    %s22 = sphi 0, %s18
    %s23 = sphi 0, %s19
    %s24 = sphi 0, %s20
    %s25 = sphi 0, %s21
    %s26 = sphi 0, %s22
    %s27 = sphi 0, %s23
    %s28 = sphi 0, %s24
    %s50 = sphi 0, %s52
    %s53 = sphi 0, %s50
    %s54 = sphi 0, %s53
    %s70 = sphi 0, %s54
    %s80 = sphi 0, %s82
    %s83 = sphi 0, %s80
    %s84 = sphi 0, %s83
    %s100 = sphi 0, %s84
    %s110 = sphi 0, %s112
    %s113 = sphi 0, %s110
    %s114 = sphi 0, %s113
    %s130 = sphi 0, %s114
    %s138 = sphi 0, %s140
    %s141 = sphi 0, %s138
    %s142 = sphi 0, %s141
    %s158 = sphi 0, %s142
    %s168 = sphi 0, %s170
    %s171 = sphi 0, %s168
    %s172 = sphi 0, %s171
    %s188 = sphi 0, %s172
  $region4: #{transformer_forward.28} parent=0 // loop_header_branch
    %13 = sbr.rel (%p11) target = $region8
  $region5: #{transformer_forward.28} parent=0 // loop_body
    %s15 = ssub.s32 %s10, 1
    %s16 = ssub.s32 %s10, 2
    %s29 = sadd.s32 1, %s20
    %p30 = scmp.ge.s32.totalorder %s29, 1
    %s31 = scalar_select %p30, 0, %s29
    %s32 = sadd.s32 1, %s19
    %s33 = scalar_select %p30, %s32, %s19
    %p34 = scmp.ge.s32.totalorder %s33, 1
    %s35 = scalar_select %p34, 0, %s33
    %s36 = sadd.s32 1, %s18
    %s37 = scalar_select %p34, %s36, %s18
    %p38 = scmp.ge.s32.totalorder %s37, 4
    %s39 = scalar_select %p38, 0, %s37
    %s40 = sadd.s32 1, %s17
    %s41 = scalar_select %p38, %s40, %s17
    %p42 = scmp.ge.s32.totalorder %s41, 2
    %s43 = scalar_select %p42, 0, %s41
    %s44 = ssub.s32 %s17, %s43
    %s45 = ssub.s32 %s18, %s39
    %s46 = sor.u32 %s44, %s45
    %s47 = ssub.s32 %s19, %s35
    %s48 = sor.u32 %s46, %s47
    %p49 = scmp.eq.s32.totalorder %s48, 0
    %s51 = sadd.s32 %s50, 1
    %s52 = scalar_select %p49, %s50, %s51
    %p55 = pneg %p49
    %p56 = scmp.eq.s32.totalorder %s10, 7
    %p57 = por %p55, %p56
    %p58 = scmp.ne.s32.totalorder %s50, %s53
    %p59 = scmp.eq.s32.totalorder %s10, 0
    %p60 = por %p58, %p59
    %p61 = scmp.ne.s32.totalorder %s50, %s53
    %p62 = scmp.eq.s32.totalorder %s15, 7
    %p63 = por %p61, %p62
    %p64 = scmp.ne.s32.totalorder %s53, %s54
    %p65 = scmp.eq.s32.totalorder %s15, 0
    %p66 = por %p64, %p65
    %p67 = scmp.ne.s32.totalorder %s53, %s54
    %p68 = scmp.eq.s32.totalorder %s16, 7
    %p69 = por %p67, %p68
    %p71 = scmp.ne.s32.totalorder %s54, %s70
    %p72 = scmp.eq.s32.totalorder %s16, 0
    %p73 = por %p71, %p72
    %s74 = ssub.s32 %s17, %s43
    %s75 = ssub.s32 %s18, %s39
    %s76 = sor.u32 %s74, %s75
    %s77 = ssub.s32 %s20, %s31
    %s78 = sor.u32 %s76, %s77
    %p79 = scmp.eq.s32.totalorder %s78, 0
    %s81 = sadd.s32 %s80, 1
    %s82 = scalar_select %p79, %s80, %s81
    %p85 = pneg %p79
    %p86 = scmp.eq.s32.totalorder %s10, 7
    %p87 = por %p85, %p86
    %p88 = scmp.ne.s32.totalorder %s80, %s83
    %p89 = scmp.eq.s32.totalorder %s10, 0
    %p90 = por %p88, %p89
    %p91 = scmp.ne.s32.totalorder %s80, %s83
    %p92 = scmp.eq.s32.totalorder %s15, 7
    %p93 = por %p91, %p92
    %p94 = scmp.ne.s32.totalorder %s83, %s84
    %p95 = scmp.eq.s32.totalorder %s15, 0
    %p96 = por %p94, %p95
    %p97 = scmp.ne.s32.totalorder %s83, %s84
    %p98 = scmp.eq.s32.totalorder %s16, 7
    %p99 = por %p97, %p98
    %p101 = scmp.ne.s32.totalorder %s84, %s100
    %p102 = scmp.eq.s32.totalorder %s16, 0
    %p103 = por %p101, %p102
    %s104 = ssub.s32 %s17, %s43
    %s105 = ssub.s32 %s18, %s39
    %s106 = sor.u32 %s104, %s105
    %s107 = ssub.s32 %s20, %s31
    %s108 = sor.u32 %s106, %s107
    %p109 = scmp.eq.s32.totalorder %s108, 0
    %s111 = sadd.s32 %s110, 1
    %s112 = scalar_select %p109, %s110, %s111
    %p115 = pneg %p109
    %p116 = scmp.eq.s32.totalorder %s10, 7
    %p117 = por %p115, %p116
    %p118 = scmp.ne.s32.totalorder %s110, %s113
    %p119 = scmp.eq.s32.totalorder %s10, 0
    %p120 = por %p118, %p119
    %p121 = scmp.ne.s32.totalorder %s110, %s113
    %p122 = scmp.eq.s32.totalorder %s15, 7
    %p123 = por %p121, %p122
    %p124 = scmp.ne.s32.totalorder %s113, %s114
    %p125 = scmp.eq.s32.totalorder %s15, 0
    %p126 = por %p124, %p125
    %p127 = scmp.ne.s32.totalorder %s113, %s114
    %p128 = scmp.eq.s32.totalorder %s16, 7
    %p129 = por %p127, %p128
    %p131 = scmp.ne.s32.totalorder %s114, %s130
    %p132 = scmp.eq.s32.totalorder %s16, 0
    %p133 = por %p131, %p132
    %s134 = ssub.s32 %s17, %s43
    %s135 = ssub.s32 %s20, %s31
    %s136 = sor.u32 %s134, %s135
    %p137 = scmp.eq.s32.totalorder %s136, 0
    %s139 = sadd.s32 %s138, 1
    %s140 = scalar_select %p137, %s138, %s139
    %p143 = pneg %p137
    %p144 = scmp.eq.s32.totalorder %s10, 7
    %p145 = por %p143, %p144
    %p146 = scmp.ne.s32.totalorder %s138, %s141
    %p147 = scmp.eq.s32.totalorder %s10, 0
    %p148 = por %p146, %p147
    %p149 = scmp.ne.s32.totalorder %s138, %s141
    %p150 = scmp.eq.s32.totalorder %s15, 7
    %p151 = por %p149, %p150
    %p152 = scmp.ne.s32.totalorder %s141, %s142
    %p153 = scmp.eq.s32.totalorder %s15, 0
    %p154 = por %p152, %p153
    %p155 = scmp.ne.s32.totalorder %s141, %s142
    %p156 = scmp.eq.s32.totalorder %s16, 7
    %p157 = por %p155, %p156
    %p159 = scmp.ne.s32.totalorder %s142, %s158
    %p160 = scmp.eq.s32.totalorder %s16, 0
    %p161 = por %p159, %p160
    %s162 = ssub.s32 %s17, %s43
    %s163 = ssub.s32 %s18, %s39
    %s164 = sor.u32 %s162, %s163
    %s165 = ssub.s32 %s19, %s35
    %s166 = sor.u32 %s164, %s165
    %p167 = scmp.eq.s32.totalorder %s166, 0
    %s169 = sadd.s32 %s168, 1
    %s170 = scalar_select %p167, %s168, %s169
    %p173 = pneg %p167
    %p174 = scmp.eq.s32.totalorder %s10, 7
    %p175 = por %p173, %p174
    %p176 = scmp.ne.s32.totalorder %s168, %s171
    %p177 = scmp.eq.s32.totalorder %s10, 0
    %p178 = por %p176, %p177
    %p179 = scmp.ne.s32.totalorder %s168, %s171
    %p180 = scmp.eq.s32.totalorder %s15, 7
    %p181 = por %p179, %p180
    %p182 = scmp.ne.s32.totalorder %s171, %s172
    %p183 = scmp.eq.s32.totalorder %s15, 0
    %p184 = por %p182, %p183
    %p185 = scmp.ne.s32.totalorder %s171, %s172
    %p186 = scmp.eq.s32.totalorder %s16, 7
    %p187 = por %p185, %p186
    %p189 = scmp.ne.s32.totalorder %s172, %s188
    %p190 = scmp.eq.s32.totalorder %s16, 0
    %p191 = por %p189, %p190
    %p192 = scmp.le.s32.totalorder 1, %s10
    %p193 = scmp.lt.s32.totalorder %s10, 9
    %p194 = pnand %p192, %p193
    %p195 = pneg %p194
    // Predicated region
    $region9: #{transformer_forward.28} parent=5 // pred_check
      _
    $region10: #{transformer_forward.28} parent=5 // pred_check_branch
      %197 = sbr.rel (%p194) target = $region12
    $region11: #{transformer_forward.28} parent=5 // pred_region
      %s198 = ssub.s32 %s10, 1
    $region12: #{transformer_forward.28} parent=5 // pred_fallthru
      _
    %p199 = scmp.lt.s32.totalorder %s10, 8
    // Predicated region
    $region13: #{transformer_forward.28} parent=5 // pred_check
      %p200 = pneg %p199
    $region14: #{transformer_forward.28} parent=5 // pred_check_branch
      %202 = sbr.rel (%p200) target = $region16
    $region15: #{transformer_forward.28} parent=5 // pred_region
      // Predicated region
      $region17: #{transformer_forward.28} parent=15 // pred_check
        %p203 = pneg %p60
      $region18: #{transformer_forward.28} parent=15 // pred_check_branch
        %205 = sbr.rel (%p203) target = $region20
      $region19: #{transformer_forward.28} parent=15 // pred_region
        %p206 = scmp.lt.s32.totalorder %s17, 1
        %s207 = scalar_select %p206, %s17, 1
        %p208 = scmp.lt.s32.totalorder %s18, 3
        %s209 = scalar_select %p208, %s18, 3
        %p210 = scmp.lt.s32.totalorder %s19, 0
        %s211 = scalar_select %p210, %s19, 0
        %s212 = sadd.s32 %s211, %s209
        %s213 = smul.addr %s207, 4
        %s214 = sadd.s32 %s212, %s213
        %s215 = smul.addr %s214, 4
        %s216 = scalar_lea.vmem %s0, %s215
      $region20: #{transformer_forward.28} parent=15 // pred_fallthru
        _
      // Predicated region
      $region21: #{transformer_forward.28} parent=15 // pred_check
        %p217 = pneg %p90
      $region22: #{transformer_forward.28} parent=15 // pred_check_branch
        %219 = sbr.rel (%p217) target = $region24
      $region23: #{transformer_forward.28} parent=15 // pred_region
        %p220 = scmp.lt.s32.totalorder %s17, 1
        %s221 = scalar_select %p220, %s17, 1
        %p222 = scmp.lt.s32.totalorder %s18, 3
        %s223 = scalar_select %p222, %s18, 3
        %p224 = scmp.lt.s32.totalorder %s20, 0
        %s225 = scalar_select %p224, %s20, 0
        %s226 = sadd.s32 %s225, %s223
        %s227 = smul.addr %s221, 4
        %s228 = sadd.s32 %s226, %s227
        %s229 = sadd.s32 %s228, 8
        %s230 = smul.addr %s229, 4
        %s231 = scalar_lea.vmem %s1, %s230
      $region24: #{transformer_forward.28} parent=15 // pred_fallthru
        _
      // Predicated region
      $region25: #{transformer_forward.28} parent=15 // pred_check
        %p232 = pneg %p120
      $region26: #{transformer_forward.28} parent=15 // pred_check_branch
        %234 = sbr.rel (%p232) target = $region28
      $region27: #{transformer_forward.28} parent=15 // pred_region
        %p235 = scmp.lt.s32.totalorder %s17, 1
        %s236 = scalar_select %p235, %s17, 1
        %p237 = scmp.lt.s32.totalorder %s18, 3
        %s238 = scalar_select %p237, %s18, 3
        %p239 = scmp.lt.s32.totalorder %s20, 0
        %s240 = scalar_select %p239, %s20, 0
        %s241 = sadd.s32 %s240, %s238
        %s242 = smul.addr %s236, 4
        %s243 = sadd.s32 %s241, %s242
        %s244 = sadd.s32 %s243, 16
        %s245 = smul.addr %s244, 4
        %s246 = scalar_lea.vmem %s2, %s245
      $region28: #{transformer_forward.28} parent=15 // pred_fallthru
        _
      // Predicated region
      $region29: #{transformer_forward.28} parent=15 // pred_check
        %p247 = pneg %p148
      $region30: #{transformer_forward.28} parent=15 // pred_check_branch
        %249 = sbr.rel (%p247) target = $region32
      $region31: #{transformer_forward.28} parent=15 // pred_region
        %p250 = scmp.lt.s32.totalorder %s17, 1
        %s251 = scalar_select %p250, %s17, 1
        %p252 = scmp.lt.s32.totalorder %s20, 0
        %s253 = scalar_select %p252, %s20, 0
        %s254 = sadd.s32 %s253, %s251
        %s255 = scalar_lea.vmem %s3, %s254
      $region32: #{transformer_forward.28} parent=15 // pred_fallthru
        _
    $region16: #{transformer_forward.28} parent=5 // pred_fallthru
      _
    %p256 = scmp.le.s32.totalorder 1, %s10
    %p257 = scmp.lt.s32.totalorder %s10, 9
    %p258 = pnand %p256, %p257
    %p259 = pneg %p258
    // Predicated region
    $region33: #{transformer_forward.28} parent=5 // pred_check
      _
    $region34: #{transformer_forward.28} parent=5 // pred_check_branch
      %261 = sbr.rel (%p258) target = $region36
    $region35: #{transformer_forward.28} parent=5 // pred_region
      %s262 = ssub.s32 %s10, 1
      %p263 = scmp.lt.s32.totalorder %s21, 1
      %s264 = scalar_select %p263, %s21, 1
      %p265 = scmp.lt.s32.totalorder %s22, 3
      %s266 = scalar_select %p265, %s22, 3
      %p267 = scmp.lt.s32.totalorder %s23, 0
      %s268 = scalar_select %p267, %s23, 0
      %s269 = sadd.s32 %s268, %s266
      %s270 = smul.addr %s264, 4
      %s271 = sadd.s32 %s269, %s270
      %s272 = smul.addr %s271, 4
      %s273 = scalar_lea.vmem %s0, %s272
      %p274 = pneg %p66
      %p275 = pneg %p63
      %p276 = scmp.lt.s32.totalorder %s21, 1
      %s277 = scalar_select %p276, %s21, 1
      %p278 = scmp.lt.s32.totalorder %s22, 3
      %s279 = scalar_select %p278, %s22, 3
      %p280 = scmp.lt.s32.totalorder %s24, 0
      %s281 = scalar_select %p280, %s24, 0
      %s282 = sadd.s32 %s281, %s279
      %s283 = smul.addr %s277, 4
      %s284 = sadd.s32 %s282, %s283
      %s285 = sadd.s32 %s284, 8
      %s286 = smul.addr %s285, 4
      %s287 = scalar_lea.vmem %s1, %s286
      %p288 = pneg %p96
      %p289 = pneg %p93
      %p290 = scmp.lt.s32.totalorder %s21, 1
      %s291 = scalar_select %p290, %s21, 1
      %p292 = scmp.lt.s32.totalorder %s22, 3
      %s293 = scalar_select %p292, %s22, 3
      %p294 = scmp.lt.s32.totalorder %s24, 0
      %s295 = scalar_select %p294, %s24, 0
      %s296 = sadd.s32 %s295, %s293
      %s297 = smul.addr %s291, 4
      %s298 = sadd.s32 %s296, %s297
      %s299 = sadd.s32 %s298, 16
      %s300 = smul.addr %s299, 4
      %s301 = scalar_lea.vmem %s2, %s300
      %p302 = pneg %p126
      %p303 = pneg %p123
      %p304 = scmp.lt.s32.totalorder %s21, 1
      %s305 = scalar_select %p304, %s21, 1
      %p306 = scmp.lt.s32.totalorder %s24, 0
      %s307 = scalar_select %p306, %s24, 0
      %s308 = sadd.s32 %s307, %s305
      %s309 = scalar_lea.vmem %s3, %s308
      %p310 = pneg %p154
      %p311 = pneg %p151
      %p312 = pneg %p184
      %p313 = pneg %p181
      %p314 = scmp.lt.s32.totalorder %s21, 1
      %s315 = scalar_select %p314, %s21, 1
      %p316 = scmp.lt.s32.totalorder %s22, 3
      %s317 = scalar_select %p316, %s22, 3
      %p318 = scmp.lt.s32.totalorder %s23, 0
      %s319 = scalar_select %p318, %s23, 0
      %s320 = sadd.s32 %s319, %s317
      %s321 = smul.addr %s315, 4
      %s322 = sadd.s32 %s320, %s321
      %s323 = smul.addr %s322, 4
      %s324 = scalar_lea.vmem %s4, %s323
      %p325 = scmp.lt.s32.totalorder %s21, 1
      %s326 = scalar_select %p325, %s21, 1
      %p327 = scmp.lt.s32.totalorder %s22, 3
      %s328 = scalar_select %p327, %s22, 3
      %p329 = scmp.lt.s32.totalorder %s23, 0
      %s330 = scalar_select %p329, %s23, 0
      %s331 = sadd.s32 %s330, %s328
      %s332 = smul.addr %s326, 4
      %s333 = sadd.s32 %s331, %s332
      %s334 = smul.addr %s333, 4
      %s335 = scalar_lea.vmem %s0, %s334
      %p336 = scmp.lt.s32.totalorder %s21, 1
      %s337 = scalar_select %p336, %s21, 1
      %p338 = scmp.lt.s32.totalorder %s22, 3
      %s339 = scalar_select %p338, %s22, 3
      %p340 = scmp.lt.s32.totalorder %s24, 0
      %s341 = scalar_select %p340, %s24, 0
      %s342 = sadd.s32 %s341, %s339
      %s343 = smul.addr %s337, 4
      %s344 = sadd.s32 %s342, %s343
      %s345 = sadd.s32 %s344, 8
      %s346 = smul.addr %s345, 4
      %s347 = scalar_lea.vmem %s1, %s346
      %p348 = scmp.lt.s32.totalorder %s21, 1
      %s349 = scalar_select %p348, %s21, 1
      %p350 = scmp.lt.s32.totalorder %s22, 3
      %s351 = scalar_select %p350, %s22, 3
      %p352 = scmp.lt.s32.totalorder %s24, 0
      %s353 = scalar_select %p352, %s24, 0
      %s354 = sadd.s32 %s353, %s351
      %s355 = smul.addr %s349, 4
      %s356 = sadd.s32 %s354, %s355
      %s357 = sadd.s32 %s356, 16
      %s358 = smul.addr %s357, 4
      %s359 = scalar_lea.vmem %s2, %s358
      %p360 = scmp.lt.s32.totalorder %s21, 1
      %s361 = scalar_select %p360, %s21, 1
      %p362 = scmp.lt.s32.totalorder %s24, 0
      %s363 = scalar_select %p362, %s24, 0
      %s364 = sadd.s32 %s363, %s361
      %s365 = scalar_lea.vmem %s3, %s364
      %p366 = scmp.lt.s32.totalorder %s21, 1
      %s367 = scalar_select %p366, %s21, 1
      %p368 = scmp.lt.s32.totalorder %s22, 3
      %s369 = scalar_select %p368, %s22, 3
      %p370 = scmp.lt.s32.totalorder %s23, 0
      %s371 = scalar_select %p370, %s23, 0
      %s372 = sadd.s32 %s371, %s369
      %s373 = smul.addr %s367, 4
      %s374 = sadd.s32 %s372, %s373
      %s375 = smul.addr %s374, 4
      %s376 = scalar_lea.vmem %s4, %s375
      %p378 = scmp.eq.s32.totalorder %s24, 0
      // Predicated region
      $region37: #{transformer_forward.28} parent=35 // pred_check
        %p379 = pneg %p378
      $region38: #{transformer_forward.28} parent=35 // pred_check_branch
        %381 = sbr.rel (%p379) target = $region40
      $region39: #{transformer_forward.28} parent=35 // pred_region
        %vm382 = vcmask 7168
        %383 = vst.msk [vmem:[#allocation2] sm:$0xff] %vm382, -inf
        %384 = vst.msk [vmem:[#allocation3] sm:$0xff] %vm382, 0.0
        %vm385 = vcmask 64512
        %386 = vst.msk [vmem:[#allocation4] sm:$0xff] %vm385, 0.0
      $region40: #{transformer_forward.28} parent=35 // pred_fallthru
        _
      %v387 = vld [vmem:[%s335] sm:$0xf]
      %v388 = vld [vmem:[%s347] sm:$0xf]
      %v389 = vld [vmem:[%s359] sm:$0xf]
      %v390 = vld [vmem:[%s365] sm:$0x1]
      %vm391 = vcmp.gt.f32.partialorder %v390, 0.5
      %v392 = vsel %vm391, 0.0, -1e+09
      %v394 = vperm.slane %v392, 0
      %vm396 = vcmask 64512
      %v398 = vsel %vm396, %v387, 0
      %v401 = vsel %vm396, %v388, 0
      %403 = vmatpush.bf16.xpose.msra.mxu0 0
      %404 = vmatpush.bf16.xpose.msra.mxu0 0
      %405 = vmatpush.bf16.xpose.msra.mxu0 0
      %406 = vmatpush.bf16.xpose.msra.mxu0 0
      %407 = vmatpush.bf16.xpose.msra.mxu0 0
      %408 = vmatpush.bf16.xpose.msra.mxu0 0
      %409 = vmatpush.bf16.xpose.msra.mxu0 0
      %410 = vmatpush.bf16.xpose.msra.mxu0 %v401
      %411 = vmatmul.bf16.gmra.mxu0 %v398
      %v412 = vpop.f32.mrf.mxu0
      %v413 = vadd.f32 %v394, %v412
      %v414 = vpop.f32.mrf.mxu0
      %415 = vdwg.mxu0
      %v416 = vld [vmem:[#allocation2] sm:$0xff]
      %v417 = vsel %vm396, %v413, -inf
      %418 = vmax.xlane.f32.xlu0 %v417
      %v419 = vpop.xlane.xlu0 %418
      %v420 = vmax.f32 %v416, %v419
      %v421 = vsub.f32 %v416, %v420
      %v422 = vmul.f32 %v421, 1.442695
      %v423 = vpow.pop %v422
      %425 = vset.pattern.permute.xlu0 0
      %426 = vperm.xlu0 %425, %v420
      %v427 = vpop.permute.xlu0 %426
      %v429 = vsub.f32 %v413, %v427
      %v430 = vmul.f32 %v429, 1.442695
      %v431 = vpow.pop %v430
      %v432 = vld [vmem:[#allocation3] sm:$0xff]
      %v433 = vmul.f32 %v423, %v432
      %v434 = vsel %vm396, %v431, 0.0
      %435 = vadd.xlane.f32.xlu0 %v434
      %v436 = vpop.xlane.xlu0 %435
      %v437 = vadd.f32 %v433, %v436
      %vm438 = vcmask 7168
      %439 = vst.msk [vmem:[#allocation3] sm:$0xff] %vm438, %v437
      %v440 = vld [vmem:[#allocation4] sm:$0xff]
      %442 = vset.pattern.permute.xlu0 0
      %443 = vperm.xlu0 %442, %v423
      %v444 = vpop.permute.xlu0 %443
      %v446 = vmul.f32 %v444, %v440
      %v447 = vpack.c.bf16 %v431, %v431
      %v449 = vsel %vm396, %v447, 0
      %vm451 = vcmask 1043456
      %v453 = vsel %vm451, %v389, 0
      %455 = vmatpush.bf16.msra.mxu0 0
      %456 = vmatpush.bf16.msra.mxu0 0
      %457 = vmatpush.bf16.msra.mxu0 0
      %458 = vmatpush.bf16.msra.mxu0 0
      %459 = vmatpush.bf16.msra.mxu0 0
      %460 = vmatpush.bf16.msra.mxu0 0
      %461 = vmatpush.bf16.msra.mxu0 0
      %462 = vmatpush.bf16.msra.mxu0 %v453
      %463 = vmatmul.bf16.gmra.mxu0 %v449
      %v464 = vpop.f32.mrf.mxu0
      %v465 = vadd.f32 0.0, %v464
      %v466 = vpop.f32.mrf.mxu0
      %467 = vdwg.mxu0
      %v468 = vadd.f32 %v446, %v465
      %469 = vst.msk [vmem:[#allocation4] sm:$0xff] %vm396, %v468
      %470 = vst.msk [vmem:[#allocation2] sm:$0xff] %vm438, %v420
      // Predicated region
      $region41: #{transformer_forward.28} parent=35 // pred_check
        %p471 = pneg %p378
      $region42: #{transformer_forward.28} parent=35 // pred_check_branch
        %473 = sbr.rel (%p471) target = $region44
      $region43: #{transformer_forward.28} parent=35 // pred_region
        %v474 = vld [vmem:[#allocation4] sm:$0xff]
        %v475 = vld [vmem:[#allocation3] sm:$0xff]
        %v476 = vrcp.pop %v475
        %478 = vset.pattern.permute.xlu0 0
        %479 = vperm.xlu0 %478, %v476
        %v480 = vpop.permute.xlu0 %479
        %v482 = vmul.f32 %v474, %v480
        %v483 = vpack.c.bf16 %v482, %v482
        %vm484 = vcmask 60416
        %485 = vst.msk [vmem:[%s376] sm:$0xf] %vm484, %v483
      $region44: #{transformer_forward.28} parent=35 // pred_fallthru
        _
      %p486 = scmp.lt.s32.totalorder %s21, 1
      %s487 = scalar_select %p486, %s21, 1
      %p488 = scmp.lt.s32.totalorder %s22, 3
      %s489 = scalar_select %p488, %s22, 3
      %p490 = scmp.lt.s32.totalorder %s23, 0
      %s491 = scalar_select %p490, %s23, 0
      %s492 = sadd.s32 %s491, %s489
      %s493 = smul.addr %s487, 4
      %s494 = sadd.s32 %s492, %s493
      %s495 = smul.addr %s494, 4
      %s496 = scalar_lea.vmem %s4, %s495
      // Predicated region
      $region45: #{transformer_forward.28} parent=35 // pred_check
        %p497 = pneg %p181
      $region46: #{transformer_forward.28} parent=35 // pred_check_branch
        %499 = sbr.rel (%p497) target = $region48
      $region47: #{transformer_forward.28} parent=35 // pred_region
        _
      $region48: #{transformer_forward.28} parent=35 // pred_fallthru
        _
    $region36: #{transformer_forward.28} parent=5 // pred_fallthru
      _
    %p500 = scmp.le.s32.totalorder 2, %s10
    // Predicated region
    $region49: #{transformer_forward.28} parent=5 // pred_check
      %p501 = pneg %p500
    $region50: #{transformer_forward.28} parent=5 // pred_check_branch
      %503 = sbr.rel (%p501) target = $region52
    $region51: #{transformer_forward.28} parent=5 // pred_region
      %s504 = ssub.s32 %s10, 2
      // Predicated region
      $region53: #{transformer_forward.28} parent=51 // pred_check
        %p505 = pneg %p187
      $region54: #{transformer_forward.28} parent=51 // pred_check_branch
        %507 = sbr.rel (%p505) target = $region56
      $region55: #{transformer_forward.28} parent=51 // pred_region
        %p508 = scmp.lt.s32.totalorder %s25, 1
        %s509 = scalar_select %p508, %s25, 1
        %p510 = scmp.lt.s32.totalorder %s26, 3
        %s511 = scalar_select %p510, %s26, 3
        %p512 = scmp.lt.s32.totalorder %s27, 0
        %s513 = scalar_select %p512, %s27, 0
        %s514 = sadd.s32 %s513, %s511
        %s515 = smul.addr %s509, 4
        %s516 = sadd.s32 %s514, %s515
        %s517 = smul.addr %s516, 4
        %s518 = scalar_lea.vmem %s4, %s517
      $region56: #{transformer_forward.28} parent=51 // pred_fallthru
        _
    $region52: #{transformer_forward.28} parent=5 // pred_fallthru
      _
  $region6: #{transformer_forward.28} parent=0 // loop_footer
    %s14 = sadd.s32 1, %s10
  $region7: #{transformer_forward.28} parent=0 // loop_footer_branch
    %9 = sbr.rel target = $region3
  $region8: #{transformer_forward.28} parent=0 // loop_exit
    _

// kernel: transformer_forward.39
$region0: #{transformer_forward.39}
  #allocation0 [shape = 'u32[]', space=smem, size = 0x4, offset = 0x4, fixed_abs, tag = 'smem constant byte address 0x4 - core index']
  #allocation1 [shape = 'u32[72,128]{1,0:T(1,128)}', space=vmem, size = 0x9000, scoped, tag = 'internal scratch']
  %s0 = inlined_call_operand.vmem [shape: bf16[16,32], index: 0, kind: input, shape index: {}]
  %s1 = inlined_call_operand.vmem [shape: bf16[32,64], index: 1, kind: input, shape index: {}]
  %s2 = inlined_call_operand.vmem [shape: f32[1,64], index: 2, kind: input, shape index: {}]
  %s3 = inlined_call_operand.vmem [shape: bf16[16,64], index: 3, kind: output, shape index: {}]
  %s4 = sld [smem:[#allocation0]]
  $region22: #{transformer_forward.39} parent=0
    _
  %s6 = ssub.s32 1, %s4
  %s7 = scalar_select 0, %s6, %s4
  // Predicated region
  $region2: #{transformer_forward.39} parent=0 // pred_check
    _
  $region3: #{transformer_forward.39} parent=0 // pred_check_branch
    %9 = sbr.rel (0) target = $region5
  $region4: #{transformer_forward.39} parent=0 // pred_region
    _
  $region5: #{transformer_forward.39} parent=0 // pred_fallthru
    _
  // Predicated region
  $region6: #{transformer_forward.39} parent=0 // pred_check
    _
  $region7: #{transformer_forward.39} parent=0 // pred_check_branch
    %11 = sbr.rel (0) target = $region9
  $region8: #{transformer_forward.39} parent=0 // pred_region
    _
  $region9: #{transformer_forward.39} parent=0 // pred_fallthru
    _
  // Predicated region
  $region10: #{transformer_forward.39} parent=0 // pred_check
    _
  $region11: #{transformer_forward.39} parent=0 // pred_check_branch
    %13 = sbr.rel (0) target = $region13
  $region12: #{transformer_forward.39} parent=0 // pred_region
    _
  $region13: #{transformer_forward.39} parent=0 // pred_fallthru
    _
  %v15 = vld [vmem:[%s0] sm:$0xf]
  %v16 = vld [vmem:[%s0 + $0x4] sm:$0xf]
  %v17 = vld [vmem:[%s1] sm:$0xf]
  %v18 = vld [vmem:[%s1 + $0x4] sm:$0xf]
  %v19 = vld [vmem:[%s1 + $0x8] sm:$0xf]
  %v20 = vld [vmem:[%s1 + $0xc] sm:$0xf]
  %v21 = vld [vmem:[%s2] sm:$0x1]
  %v23 = vperm.slane %v21, 0
  %v27 = vunpack.c.l.b16 %v15
  %v28 = vunpack.c.l.b16 %v16
  %v29 = vpack.c.b16 %v28, %v27
  %v34 = vunpack.c.l.b16 %v17
  %v35 = vunpack.c.l.b16 %v18
  %v36 = vunpack.c.l.b16 %v19
  %v37 = vunpack.c.l.b16 %v20
  %v38 = vpack.c.b16 %v35, %v34
  %v39 = vpack.c.b16 %v37, %v36
  %vm42 = vcmask 261120
  %v44 = vsel %vm42, %v29, 0
  %46 = vmatpush.bf16.msra.mxu0 0
  %47 = vmatpush.bf16.msra.mxu0 0
  %48 = vmatpush.bf16.msra.mxu0 0
  %49 = vmatpush.bf16.msra.mxu0 0
  %50 = vmatpush.bf16.msra.mxu0 0
  %51 = vmatpush.bf16.msra.mxu0 0
  %52 = vmatpush.bf16.msra.mxu0 %v39
  %53 = vmatpush.bf16.msra.mxu0 %v38
  %54 = vmatmul.bf16.gmra.mxu0 %v44
  %v55 = vpop.f32.mrf.mxu0
  %v56 = vadd.f32 %v23, %v55
  %v57 = vpop.f32.mrf.mxu0
  %v58 = vadd.f32 %v23, %v57
  %59 = vdwg.mxu0
  %v60 = vpack.c.bf16 %v56, %v56
  %v61 = vpack.c.bf16 %v58, %v58
  %vm62 = vcmask 519168
  %63 = vst.msk [vmem:[%s3] sm:$0xf] %vm62, %v60
  %64 = vst.msk [vmem:[%s3 + $0x4] sm:$0xf] %vm62, %v61
  // Predicated region
  $region14: #{transformer_forward.39} parent=0 // pred_check
    _
  $region15: #{transformer_forward.39} parent=0 // pred_check_branch
    %66 = sbr.rel (0) target = $region17
  $region16: #{transformer_forward.39} parent=0 // pred_region
    _
  $region17: #{transformer_forward.39} parent=0 // pred_fallthru
    _
  // Predicated region
  $region18: #{transformer_forward.39} parent=0 // pred_check
    _
  $region19: #{transformer_forward.39} parent=0 // pred_check_branch
    %68 = sbr.rel (0) target = $region21
  $region20: #{transformer_forward.39} parent=0 // pred_region
    _
  $region21: #{transformer_forward.39} parent=0 // pred_fallthru
    _

// kernel: transformer_forward.30
$region0: #{transformer_forward.30}
  #allocation0 [shape = 'u32[]', space=smem, size = 0x4, offset = 0x4, fixed_abs, tag = 'smem constant byte address 0x4 - core index']
  #allocation1 [shape = 'u32[72,128]{1,0:T(1,128)}', space=vmem, size = 0x9000, scoped, tag = 'internal scratch']
  %s0 = inlined_call_operand.vmem [shape: f32[16,32], index: 0, kind: input, shape index: {}]
  %s1 = inlined_call_operand.vmem [shape: f32[1,32], index: 1, kind: input, shape index: {}]
  %s2 = inlined_call_operand.vmem [shape: f32[1,32], index: 2, kind: input, shape index: {}]
  %s3 = inlined_call_operand.vmem [shape: bf16[32,64], index: 3, kind: input, shape index: {}]
  %s4 = inlined_call_operand.vmem [shape: f32[1,64], index: 4, kind: input, shape index: {}]
  %s5 = inlined_call_operand.vmem [shape: bf16[64,32], index: 5, kind: input, shape index: {}]
  %s6 = inlined_call_operand.vmem [shape: f32[1,32], index: 6, kind: input, shape index: {}]
  %s7 = inlined_call_operand.vmem [shape: f32[16,32], index: 7, kind: output, shape index: {}]
  %s8 = sld [smem:[#allocation0]]
  $region38: #{transformer_forward.30} parent=0
    _
  %s10 = ssub.s32 1, %s8
  %s11 = scalar_select 0, %s10, %s8
  // Predicated region
  $region2: #{transformer_forward.30} parent=0 // pred_check
    _
  $region3: #{transformer_forward.30} parent=0 // pred_check_branch
    %13 = sbr.rel (0) target = $region5
  $region4: #{transformer_forward.30} parent=0 // pred_region
    _
  $region5: #{transformer_forward.30} parent=0 // pred_fallthru
    _
  // Predicated region
  $region6: #{transformer_forward.30} parent=0 // pred_check
    _
  $region7: #{transformer_forward.30} parent=0 // pred_check_branch
    %15 = sbr.rel (0) target = $region9
  $region8: #{transformer_forward.30} parent=0 // pred_region
    _
  $region9: #{transformer_forward.30} parent=0 // pred_fallthru
    _
  // Predicated region
  $region10: #{transformer_forward.30} parent=0 // pred_check
    _
  $region11: #{transformer_forward.30} parent=0 // pred_check_branch
    %17 = sbr.rel (0) target = $region13
  $region12: #{transformer_forward.30} parent=0 // pred_region
    _
  $region13: #{transformer_forward.30} parent=0 // pred_fallthru
    _
  // Predicated region
  $region14: #{transformer_forward.30} parent=0 // pred_check
    _
  $region15: #{transformer_forward.30} parent=0 // pred_check_branch
    %19 = sbr.rel (0) target = $region17
  $region16: #{transformer_forward.30} parent=0 // pred_region
    _
  $region17: #{transformer_forward.30} parent=0 // pred_fallthru
    _
  // Predicated region
  $region18: #{transformer_forward.30} parent=0 // pred_check
    _
  $region19: #{transformer_forward.30} parent=0 // pred_check_branch
    %21 = sbr.rel (0) target = $region21
  $region20: #{transformer_forward.30} parent=0 // pred_region
    _
  $region21: #{transformer_forward.30} parent=0 // pred_fallthru
    _
  // Predicated region
  $region22: #{transformer_forward.30} parent=0 // pred_check
    _
  $region23: #{transformer_forward.30} parent=0 // pred_check_branch
    %23 = sbr.rel (0) target = $region25
  $region24: #{transformer_forward.30} parent=0 // pred_region
    _
  $region25: #{transformer_forward.30} parent=0 // pred_fallthru
    _
  // Predicated region
  $region26: #{transformer_forward.30} parent=0 // pred_check
    _
  $region27: #{transformer_forward.30} parent=0 // pred_check_branch
    %25 = sbr.rel (0) target = $region29
  $region28: #{transformer_forward.30} parent=0 // pred_region
    _
  $region29: #{transformer_forward.30} parent=0 // pred_fallthru
    _
  %v27 = vld [vmem:[%s0] sm:$0xff]
  %v28 = vld [vmem:[%s0 + $0x8] sm:$0xff]
  %v29 = vld [vmem:[%s1] sm:$0x1]
  %v30 = vld [vmem:[%s2] sm:$0x1]
  %vm31 = vcmask 261120
  %v32 = vsel %vm31, %v27, 0.0
  %33 = vadd.xlane.f32.xlu0 %v32
  %v34 = vpop.xlane.xlu0 %33
  %v35 = vsel %vm31, %v28, 0.0
  %36 = vadd.xlane.f32.xlu0 %v35
  %v37 = vpop.xlane.xlu0 %36
  %v38 = vrcp.pop 32.0
  %v39 = vmul.f32 32.0, %v38
  %v40 = vsub.f32 1.0, %v39
  %v41 = vmul.f32 %v38, %v40
  %v42 = vadd.f32 %v38, %v41
  %vm43 = vweird.f32 %v38
  %v44 = vsel %vm43, %v38, %v42
  %v45 = vmul.f32 %v34, %v44
  %v46 = vmul.f32 %v37, %v44
  %v47 = vsub.f32 %v27, %v45
  %v48 = vsub.f32 %v28, %v46
  %v49 = vmul.f32 %v47, %v47
  %v50 = vmul.f32 %v48, %v48
  %v51 = vsel %vm31, %v49, 0.0
  %52 = vadd.xlane.f32.xlu0 %v51
  %v53 = vpop.xlane.xlu0 %52
  %v54 = vsel %vm31, %v50, 0.0
  %55 = vadd.xlane.f32.xlu0 %v54
  %v56 = vpop.xlane.xlu0 %55
  %v57 = vmul.f32 %v53, 0.032258064
  %v58 = vmul.f32 %v56, 0.032258064
  %v59 = vrsqrt.pop %v57
  %v60 = vmul.f32 %v59, %v57
  %v61 = vmul.f32 %v60, %v59
  %v62 = vmul.f32 0.5, %v61
  %v63 = vsub.f32 1.5, %v62
  %v64 = vmul.f32 %v59, %v63
  %v65 = vmul.f32 %v57, %v64
  %vm66 = vcmp.eq.f32.partialorder %v57, inf
  %v67 = vsel %vm66, %v57, %v65
  %vm68 = vcmp.eq.f32.partialorder %v57, 0.0
  %v69 = vand.u32 %v57, 2147483648
  %v70 = vsel %vm68, %v69, %v67
  %v71 = vrsqrt.pop %v58
  %v72 = vmul.f32 %v71, %v58
  %v73 = vmul.f32 %v72, %v71
  %v74 = vmul.f32 0.5, %v73
  %v75 = vsub.f32 1.5, %v74
  %v76 = vmul.f32 %v71, %v75
  %v77 = vmul.f32 %v58, %v76
  %vm78 = vcmp.eq.f32.partialorder %v58, inf
  %v79 = vsel %vm78, %v58, %v77
  %vm80 = vcmp.eq.f32.partialorder %v58, 0.0
  %v81 = vand.u32 %v58, 2147483648
  %v82 = vsel %vm80, %v81, %v79
  %v83 = vadd.f32 %v70, 1e-06
  %v84 = vadd.f32 %v82, 1e-06
  %v85 = vrcp.pop %v83
  %v86 = vrcp.pop %v84
  %v88 = vperm.slane %v29, 0
  %v90 = vmul.f32 %v88, %v47
  %v91 = vmul.f32 %v88, %v48
  %v92 = vmul.f32 %v90, %v85
  %v93 = vmul.f32 %v91, %v86
  %v95 = vperm.slane %v30, 0
  %v97 = vadd.f32 %v92, %v95
  %v98 = vadd.f32 %v93, %v95
  %v99 = vpack.c.bf16 %v98, %v97
  %v100 = vld [vmem:[%s3] sm:$0xf]
  %v101 = vld [vmem:[%s3 + $0x4] sm:$0xf]
  %v102 = vld [vmem:[%s3 + $0x8] sm:$0xf]
  %v103 = vld [vmem:[%s3 + $0xc] sm:$0xf]
  %v104 = vld [vmem:[%s4] sm:$0x1]
  %v106 = vperm.slane %v104, 0
  %v112 = vunpack.c.l.b16 %v100
  %v113 = vunpack.c.l.b16 %v101
  %v114 = vunpack.c.l.b16 %v102
  %v115 = vunpack.c.l.b16 %v103
  %v116 = vpack.c.b16 %v113, %v112
  %v117 = vpack.c.b16 %v115, %v114
  %v121 = vsel %vm31, %v99, 0
  %123 = vmatpush.bf16.msra.mxu0 0
  %124 = vmatpush.bf16.msra.mxu0 0
  %125 = vmatpush.bf16.msra.mxu0 0
  %126 = vmatpush.bf16.msra.mxu0 0
  %127 = vmatpush.bf16.msra.mxu0 0
  %128 = vmatpush.bf16.msra.mxu0 0
  %129 = vmatpush.bf16.msra.mxu0 %v117
  %130 = vmatpush.bf16.msra.mxu0 %v116
  %131 = vmatmul.bf16.gmra.mxu0 %v121
  %v132 = vpop.f32.mrf.mxu0
  %v133 = vadd.f32 %v106, %v132
  %v134 = vpop.f32.mrf.mxu0
  %v135 = vadd.f32 %v106, %v134
  %136 = vdwg.mxu0
  %v137 = vmax.f32 %v133, 0.0
  %v138 = vmax.f32 %v135, 0.0
  %v139 = vpack.c.bf16 %v138, %v137
  %v140 = vld [vmem:[%s5] sm:$0xf]
  %v141 = vld [vmem:[%s5 + $0x4] sm:$0xf]
  %v142 = vld [vmem:[%s5 + $0x8] sm:$0xf]
  %v143 = vld [vmem:[%s5 + $0xc] sm:$0xf]
  %v144 = vld [vmem:[%s5 + $0x10] sm:$0xf]
  %v145 = vld [vmem:[%s5 + $0x14] sm:$0xf]
  %v146 = vld [vmem:[%s5 + $0x18] sm:$0xf]
  %v147 = vld [vmem:[%s5 + $0x1c] sm:$0xf]
  %v156 = vunpack.c.l.b16 %v140
  %v157 = vunpack.c.l.b16 %v141
  %v158 = vunpack.c.l.b16 %v142
  %v159 = vunpack.c.l.b16 %v143
  %v160 = vunpack.c.l.b16 %v144
  %v161 = vunpack.c.l.b16 %v145
  %v162 = vunpack.c.l.b16 %v146
  %v163 = vunpack.c.l.b16 %v147
  %v164 = vpack.c.b16 %v157, %v156
  %v165 = vpack.c.b16 %v159, %v158
  %v166 = vpack.c.b16 %v161, %v160
  %v167 = vpack.c.b16 %v163, %v162
  %vm172 = vcmask 523264
  %v174 = vsel %vm172, %v139, 0
  %176 = vmatpush.bf16.msra.mxu0 0
  %177 = vmatpush.bf16.msra.mxu0 0
  %178 = vmatpush.bf16.msra.mxu0 0
  %179 = vmatpush.bf16.msra.mxu0 0
  %180 = vmatpush.bf16.msra.mxu0 %v167
  %181 = vmatpush.bf16.msra.mxu0 %v166
  %182 = vmatpush.bf16.msra.mxu0 %v165
  %183 = vmatpush.bf16.msra.mxu0 %v164
  %184 = vmatmul.bf16.gmra.mxu0 %v174
  %v185 = vpop.f32.mrf.mxu0
  %v186 = vadd.f32 0.0, %v185
  %v187 = vpop.f32.mrf.mxu0
  %v188 = vadd.f32 0.0, %v187
  %189 = vdwg.mxu0
  %v190 = vadd.f32 %v27, %v186
  %v191 = vadd.f32 %v28, %v188
  %v192 = vld [vmem:[%s6] sm:$0x1]
  %v194 = vperm.slane %v192, 0
  %v196 = vadd.f32 %v190, %v194
  %v197 = vadd.f32 %v191, %v194
  %198 = vst.msk [vmem:[%s7] sm:$0xff] %vm31, %v196
  %199 = vst.msk [vmem:[%s7 + $0x8] sm:$0xff] %vm31, %v197
  // Predicated region
  $region30: #{transformer_forward.30} parent=0 // pred_check
    _
  $region31: #{transformer_forward.30} parent=0 // pred_check_branch
    %201 = sbr.rel (0) target = $region33
  $region32: #{transformer_forward.30} parent=0 // pred_region
    _
  $region33: #{transformer_forward.30} parent=0 // pred_fallthru
    _
  // Predicated region
  $region34: #{transformer_forward.30} parent=0 // pred_check
    _
  $region35: #{transformer_forward.30} parent=0 // pred_check_branch
    %203 = sbr.rel (0) target = $region37
  $region36: #{transformer_forward.30} parent=0 // pred_region
    _
  $region37: #{transformer_forward.30} parent=0 // pred_fallthru
    _

// kernel: transformer_forward.35
$region0: #{transformer_forward.35}
  #allocation0 [shape = 'u32[]', space=smem, size = 0x4, offset = 0x4, fixed_abs, tag = 'smem constant byte address 0x4 - core index']
  #allocation1 [shape = 'u32[72,128]{1,0:T(1,128)}', space=vmem, size = 0x9000, scoped, tag = 'internal scratch']
  %s0 = inlined_call_operand.vmem [shape: f32[16,32], index: 0, kind: input, shape index: {}]
  %s1 = inlined_call_operand.vmem [shape: f32[1,32], index: 1, kind: input, shape index: {}]
  %s2 = inlined_call_operand.vmem [shape: f32[1,32], index: 2, kind: input, shape index: {}]
  %s3 = inlined_call_operand.vmem [shape: bf16[16,32], index: 3, kind: output, shape index: {}]
  %s4 = sld [smem:[#allocation0]]
  $region22: #{transformer_forward.35} parent=0
    _
  %s6 = ssub.s32 1, %s4
  %s7 = scalar_select 0, %s6, %s4
  // Predicated region
  $region2: #{transformer_forward.35} parent=0 // pred_check
    _
  $region3: #{transformer_forward.35} parent=0 // pred_check_branch
    %9 = sbr.rel (0) target = $region5
  $region4: #{transformer_forward.35} parent=0 // pred_region
    _
  $region5: #{transformer_forward.35} parent=0 // pred_fallthru
    _
  // Predicated region
  $region6: #{transformer_forward.35} parent=0 // pred_check
    _
  $region7: #{transformer_forward.35} parent=0 // pred_check_branch
    %11 = sbr.rel (0) target = $region9
  $region8: #{transformer_forward.35} parent=0 // pred_region
    _
  $region9: #{transformer_forward.35} parent=0 // pred_fallthru
    _
  // Predicated region
  $region10: #{transformer_forward.35} parent=0 // pred_check
    _
  $region11: #{transformer_forward.35} parent=0 // pred_check_branch
    %13 = sbr.rel (0) target = $region13
  $region12: #{transformer_forward.35} parent=0 // pred_region
    _
  $region13: #{transformer_forward.35} parent=0 // pred_fallthru
    _
  %v14 = vld [vmem:[%s0] sm:$0xff]
  %v15 = vld [vmem:[%s0 + $0x8] sm:$0xff]
  %v16 = vld [vmem:[%s1] sm:$0x1]
  %v17 = vld [vmem:[%s2] sm:$0x1]
  %vm18 = vcmask 261120
  %v19 = vsel %vm18, %v14, 0.0
  %20 = vadd.xlane.f32.xlu0 %v19
  %v21 = vpop.xlane.xlu0 %20
  %v22 = vsel %vm18, %v15, 0.0
  %23 = vadd.xlane.f32.xlu0 %v22
  %v24 = vpop.xlane.xlu0 %23
  %v25 = vrcp.pop 32.0
  %v26 = vmul.f32 32.0, %v25
  %v27 = vsub.f32 1.0, %v26
  %v28 = vmul.f32 %v25, %v27
  %v29 = vadd.f32 %v25, %v28
  %vm30 = vweird.f32 %v25
  %v31 = vsel %vm30, %v25, %v29
  %v32 = vmul.f32 %v21, %v31
  %v33 = vmul.f32 %v24, %v31
  %v34 = vsub.f32 %v14, %v32
  %v35 = vsub.f32 %v15, %v33
  %v36 = vmul.f32 %v34, %v34
  %v37 = vmul.f32 %v35, %v35
  %v38 = vsel %vm18, %v36, 0.0
  %39 = vadd.xlane.f32.xlu0 %v38
  %v40 = vpop.xlane.xlu0 %39
  %v41 = vsel %vm18, %v37, 0.0
  %42 = vadd.xlane.f32.xlu0 %v41
  %v43 = vpop.xlane.xlu0 %42
  %v44 = vmul.f32 %v40, 0.032258064
  %v45 = vmul.f32 %v43, 0.032258064
  %v46 = vrsqrt.pop %v44
  %v47 = vmul.f32 %v46, %v44
  %v48 = vmul.f32 %v47, %v46
  %v49 = vmul.f32 0.5, %v48
  %v50 = vsub.f32 1.5, %v49
  %v51 = vmul.f32 %v46, %v50
  %v52 = vmul.f32 %v44, %v51
  %vm53 = vcmp.eq.f32.partialorder %v44, inf
  %v54 = vsel %vm53, %v44, %v52
  %vm55 = vcmp.eq.f32.partialorder %v44, 0.0
  %v56 = vand.u32 %v44, 2147483648
  %v57 = vsel %vm55, %v56, %v54
  %v58 = vrsqrt.pop %v45
  %v59 = vmul.f32 %v58, %v45
  %v60 = vmul.f32 %v59, %v58
  %v61 = vmul.f32 0.5, %v60
  %v62 = vsub.f32 1.5, %v61
  %v63 = vmul.f32 %v58, %v62
  %v64 = vmul.f32 %v45, %v63
  %vm65 = vcmp.eq.f32.partialorder %v45, inf
  %v66 = vsel %vm65, %v45, %v64
  %vm67 = vcmp.eq.f32.partialorder %v45, 0.0
  %v68 = vand.u32 %v45, 2147483648
  %v69 = vsel %vm67, %v68, %v66
  %v70 = vadd.f32 %v57, 1e-06
  %v71 = vadd.f32 %v69, 1e-06
  %v72 = vrcp.pop %v70
  %v73 = vrcp.pop %v71
  %v75 = vperm.slane %v16, 0
  %v77 = vmul.f32 %v75, %v34
  %v78 = vmul.f32 %v75, %v35
  %v79 = vmul.f32 %v77, %v72
  %v80 = vmul.f32 %v78, %v73
  %v82 = vperm.slane %v17, 0
  %v84 = vadd.f32 %v79, %v82
  %v85 = vadd.f32 %v80, %v82
  %v86 = vpack.c.bf16 %v84, %v84
  %v87 = vpack.c.bf16 %v85, %v85
  %vm88 = vcmask 257024
  %89 = vst.msk [vmem:[%s3] sm:$0xf] %vm88, %v86
  %90 = vst.msk [vmem:[%s3 + $0x4] sm:$0xf] %vm88, %v87
  // Predicated region
  $region14: #{transformer_forward.35} parent=0 // pred_check
    _
  $region15: #{transformer_forward.35} parent=0 // pred_check_branch
    %92 = sbr.rel (0) target = $region17
  $region16: #{transformer_forward.35} parent=0 // pred_region
    _
  $region17: #{transformer_forward.35} parent=0 // pred_fallthru
    _
  // Predicated region
  $region18: #{transformer_forward.35} parent=0 // pred_check
    _
  $region19: #{transformer_forward.35} parent=0 // pred_check_branch
    %94 = sbr.rel (0) target = $region21
  $region20: #{transformer_forward.35} parent=0 // pred_region
    _
  $region21: #{transformer_forward.35} parent=0 // pred_fallthru
    _

// kernel: transformer_forward.41
$region0: #{transformer_forward.41}
  #allocation0 [shape = 'u32[]', space=smem, size = 0x4, offset = 0x4, fixed_abs, tag = 'smem constant byte address 0x4 - core index']
  #allocation1 [shape = 'u32[72,128]{1,0:T(1,128)}', space=vmem, size = 0x9000, scoped, tag = 'internal scratch']
  #allocation2 [shape = 'f32[8,1]{1,0:T(8,128)}', space=vmem, size = 0x1000, scoped, tag = 'scratch operand']
  #allocation3 [shape = 'f32[8,1]{1,0:T(8,128)}', space=vmem, size = 0x1000, scoped, tag = 'scratch operand']
  #allocation4 [shape = 'f32[8,8]{1,0:T(8,128)}', space=vmem, size = 0x1000, scoped, tag = 'scratch operand']
  %s0 = inlined_call_operand.vmem [shape: bf16[2,4,8,8], index: 0, kind: input, shape index: {}]
  %s1 = inlined_call_operand.vmem [shape: bf16[2,2,4,8,8], index: 1, kind: input, shape index: {}, may-alias: {1,2}]
  %s2 = inlined_call_operand.vmem [shape: bf16[2,2,4,8,8], index: 2, kind: input, shape index: {}, may-alias: {1,2}]
  %s3 = inlined_call_operand.vmem [shape: f32[2,1,8], index: 3, kind: input, shape index: {}]
  %s4 = inlined_call_operand.vmem [shape: bf16[2,4,8,8], index: 4, kind: output, shape index: {}]
  %s5 = sld [smem:[#allocation0]]
  $region57: #{transformer_forward.41} parent=0
    _
  %s7 = ssub.s32 1, %s5
  %s8 = scalar_select 0, %s7, %s5
  loop: start=0, step=1, limit=10
  $region2: #{transformer_forward.41} parent=0 // loop_pre_header
    _
  $region3: #{transformer_forward.41} parent=0 // loop_header
    %s10 = sphi 0, %s14
    %p11 = scmp.ge.s32.totalorder %s10, 10
    %s17 = sphi 0, %s43
    %s18 = sphi 0, %s39
    %s19 = sphi 0, %s35
    %s20 = sphi 0, %s31
    %s21 = sphi 0, %s17
    %s22 = sphi 0, %s18
    %s23 = sphi 0, %s19
    %s24 = sphi 0, %s20
    %s25 = sphi 0, %s21
    %s26 = sphi 0, %s22
    %s27 = sphi 0, %s23
    %s28 = sphi 0, %s24
    %s50 = sphi 0, %s52
    %s53 = sphi 0, %s50
    %s54 = sphi 0, %s53
    %s70 = sphi 0, %s54
    %s80 = sphi 0, %s82
    %s83 = sphi 0, %s80
    %s84 = sphi 0, %s83
    %s100 = sphi 0, %s84
    %s110 = sphi 0, %s112
    %s113 = sphi 0, %s110
    %s114 = sphi 0, %s113
    %s130 = sphi 0, %s114
    %s138 = sphi 0, %s140
    %s141 = sphi 0, %s138
    %s142 = sphi 0, %s141
    %s158 = sphi 0, %s142
    %s168 = sphi 0, %s170
    %s171 = sphi 0, %s168
    %s172 = sphi 0, %s171
    %s188 = sphi 0, %s172
  $region4: #{transformer_forward.41} parent=0 // loop_header_branch
    %13 = sbr.rel (%p11) target = $region8
  $region5: #{transformer_forward.41} parent=0 // loop_body
    %s15 = ssub.s32 %s10, 1
    %s16 = ssub.s32 %s10, 2
    %s29 = sadd.s32 1, %s20
    %p30 = scmp.ge.s32.totalorder %s29, 1
    %s31 = scalar_select %p30, 0, %s29
    %s32 = sadd.s32 1, %s19
    %s33 = scalar_select %p30, %s32, %s19
    %p34 = scmp.ge.s32.totalorder %s33, 1
    %s35 = scalar_select %p34, 0, %s33
    %s36 = sadd.s32 1, %s18
    %s37 = scalar_select %p34, %s36, %s18
    %p38 = scmp.ge.s32.totalorder %s37, 4
    %s39 = scalar_select %p38, 0, %s37
    %s40 = sadd.s32 1, %s17
    %s41 = scalar_select %p38, %s40, %s17
    %p42 = scmp.ge.s32.totalorder %s41, 2
    %s43 = scalar_select %p42, 0, %s41
    %s44 = ssub.s32 %s17, %s43
    %s45 = ssub.s32 %s18, %s39
    %s46 = sor.u32 %s44, %s45
    %s47 = ssub.s32 %s19, %s35
    %s48 = sor.u32 %s46, %s47
    %p49 = scmp.eq.s32.totalorder %s48, 0
    %s51 = sadd.s32 %s50, 1
    %s52 = scalar_select %p49, %s50, %s51
    %p55 = pneg %p49
    %p56 = scmp.eq.s32.totalorder %s10, 7
    %p57 = por %p55, %p56
    %p58 = scmp.ne.s32.totalorder %s50, %s53
    %p59 = scmp.eq.s32.totalorder %s10, 0
    %p60 = por %p58, %p59
    %p61 = scmp.ne.s32.totalorder %s50, %s53
    %p62 = scmp.eq.s32.totalorder %s15, 7
    %p63 = por %p61, %p62
    %p64 = scmp.ne.s32.totalorder %s53, %s54
    %p65 = scmp.eq.s32.totalorder %s15, 0
    %p66 = por %p64, %p65
    %p67 = scmp.ne.s32.totalorder %s53, %s54
    %p68 = scmp.eq.s32.totalorder %s16, 7
    %p69 = por %p67, %p68
    %p71 = scmp.ne.s32.totalorder %s54, %s70
    %p72 = scmp.eq.s32.totalorder %s16, 0
    %p73 = por %p71, %p72
    %s74 = ssub.s32 %s17, %s43
    %s75 = ssub.s32 %s18, %s39
    %s76 = sor.u32 %s74, %s75
    %s77 = ssub.s32 %s20, %s31
    %s78 = sor.u32 %s76, %s77
    %p79 = scmp.eq.s32.totalorder %s78, 0
    %s81 = sadd.s32 %s80, 1
    %s82 = scalar_select %p79, %s80, %s81
    %p85 = pneg %p79
    %p86 = scmp.eq.s32.totalorder %s10, 7
    %p87 = por %p85, %p86
    %p88 = scmp.ne.s32.totalorder %s80, %s83
    %p89 = scmp.eq.s32.totalorder %s10, 0
    %p90 = por %p88, %p89
    %p91 = scmp.ne.s32.totalorder %s80, %s83
    %p92 = scmp.eq.s32.totalorder %s15, 7
    %p93 = por %p91, %p92
    %p94 = scmp.ne.s32.totalorder %s83, %s84
    %p95 = scmp.eq.s32.totalorder %s15, 0
    %p96 = por %p94, %p95
    %p97 = scmp.ne.s32.totalorder %s83, %s84
    %p98 = scmp.eq.s32.totalorder %s16, 7
    %p99 = por %p97, %p98
    %p101 = scmp.ne.s32.totalorder %s84, %s100
    %p102 = scmp.eq.s32.totalorder %s16, 0
    %p103 = por %p101, %p102
    %s104 = ssub.s32 %s17, %s43
    %s105 = ssub.s32 %s18, %s39
    %s106 = sor.u32 %s104, %s105
    %s107 = ssub.s32 %s20, %s31
    %s108 = sor.u32 %s106, %s107
    %p109 = scmp.eq.s32.totalorder %s108, 0
    %s111 = sadd.s32 %s110, 1
    %s112 = scalar_select %p109, %s110, %s111
    %p115 = pneg %p109
    %p116 = scmp.eq.s32.totalorder %s10, 7
    %p117 = por %p115, %p116
    %p118 = scmp.ne.s32.totalorder %s110, %s113
    %p119 = scmp.eq.s32.totalorder %s10, 0
    %p120 = por %p118, %p119
    %p121 = scmp.ne.s32.totalorder %s110, %s113
    %p122 = scmp.eq.s32.totalorder %s15, 7
    %p123 = por %p121, %p122
    %p124 = scmp.ne.s32.totalorder %s113, %s114
    %p125 = scmp.eq.s32.totalorder %s15, 0
    %p126 = por %p124, %p125
    %p127 = scmp.ne.s32.totalorder %s113, %s114
    %p128 = scmp.eq.s32.totalorder %s16, 7
    %p129 = por %p127, %p128
    %p131 = scmp.ne.s32.totalorder %s114, %s130
    %p132 = scmp.eq.s32.totalorder %s16, 0
    %p133 = por %p131, %p132
    %s134 = ssub.s32 %s17, %s43
    %s135 = ssub.s32 %s20, %s31
    %s136 = sor.u32 %s134, %s135
    %p137 = scmp.eq.s32.totalorder %s136, 0
    %s139 = sadd.s32 %s138, 1
    %s140 = scalar_select %p137, %s138, %s139
    %p143 = pneg %p137
    %p144 = scmp.eq.s32.totalorder %s10, 7
    %p145 = por %p143, %p144
    %p146 = scmp.ne.s32.totalorder %s138, %s141
    %p147 = scmp.eq.s32.totalorder %s10, 0
    %p148 = por %p146, %p147
    %p149 = scmp.ne.s32.totalorder %s138, %s141
    %p150 = scmp.eq.s32.totalorder %s15, 7
    %p151 = por %p149, %p150
    %p152 = scmp.ne.s32.totalorder %s141, %s142
    %p153 = scmp.eq.s32.totalorder %s15, 0
    %p154 = por %p152, %p153
    %p155 = scmp.ne.s32.totalorder %s141, %s142
    %p156 = scmp.eq.s32.totalorder %s16, 7
    %p157 = por %p155, %p156
    %p159 = scmp.ne.s32.totalorder %s142, %s158
    %p160 = scmp.eq.s32.totalorder %s16, 0
    %p161 = por %p159, %p160
    %s162 = ssub.s32 %s17, %s43
    %s163 = ssub.s32 %s18, %s39
    %s164 = sor.u32 %s162, %s163
    %s165 = ssub.s32 %s19, %s35
    %s166 = sor.u32 %s164, %s165
    %p167 = scmp.eq.s32.totalorder %s166, 0
    %s169 = sadd.s32 %s168, 1
    %s170 = scalar_select %p167, %s168, %s169
    %p173 = pneg %p167
    %p174 = scmp.eq.s32.totalorder %s10, 7
    %p175 = por %p173, %p174
    %p176 = scmp.ne.s32.totalorder %s168, %s171
    %p177 = scmp.eq.s32.totalorder %s10, 0
    %p178 = por %p176, %p177
    %p179 = scmp.ne.s32.totalorder %s168, %s171
    %p180 = scmp.eq.s32.totalorder %s15, 7
    %p181 = por %p179, %p180
    %p182 = scmp.ne.s32.totalorder %s171, %s172
    %p183 = scmp.eq.s32.totalorder %s15, 0
    %p184 = por %p182, %p183
    %p185 = scmp.ne.s32.totalorder %s171, %s172
    %p186 = scmp.eq.s32.totalorder %s16, 7
    %p187 = por %p185, %p186
    %p189 = scmp.ne.s32.totalorder %s172, %s188
    %p190 = scmp.eq.s32.totalorder %s16, 0
    %p191 = por %p189, %p190
    %p192 = scmp.le.s32.totalorder 1, %s10
    %p193 = scmp.lt.s32.totalorder %s10, 9
    %p194 = pnand %p192, %p193
    %p195 = pneg %p194
    // Predicated region
    $region9: #{transformer_forward.41} parent=5 // pred_check
      _
    $region10: #{transformer_forward.41} parent=5 // pred_check_branch
      %197 = sbr.rel (%p194) target = $region12
    $region11: #{transformer_forward.41} parent=5 // pred_region
      %s198 = ssub.s32 %s10, 1
    $region12: #{transformer_forward.41} parent=5 // pred_fallthru
      _
    %p199 = scmp.lt.s32.totalorder %s10, 8
    // Predicated region
    $region13: #{transformer_forward.41} parent=5 // pred_check
      %p200 = pneg %p199
    $region14: #{transformer_forward.41} parent=5 // pred_check_branch
      %202 = sbr.rel (%p200) target = $region16
    $region15: #{transformer_forward.41} parent=5 // pred_region
      // Predicated region
      $region17: #{transformer_forward.41} parent=15 // pred_check
        %p203 = pneg %p60
      $region18: #{transformer_forward.41} parent=15 // pred_check_branch
        %205 = sbr.rel (%p203) target = $region20
      $region19: #{transformer_forward.41} parent=15 // pred_region
        %p206 = scmp.lt.s32.totalorder %s17, 1
        %s207 = scalar_select %p206, %s17, 1
        %p208 = scmp.lt.s32.totalorder %s18, 3
        %s209 = scalar_select %p208, %s18, 3
        %p210 = scmp.lt.s32.totalorder %s19, 0
        %s211 = scalar_select %p210, %s19, 0
        %s212 = sadd.s32 %s211, %s209
        %s213 = smul.addr %s207, 4
        %s214 = sadd.s32 %s212, %s213
        %s215 = smul.addr %s214, 4
        %s216 = scalar_lea.vmem %s0, %s215
      $region20: #{transformer_forward.41} parent=15 // pred_fallthru
        _
      // Predicated region
      $region21: #{transformer_forward.41} parent=15 // pred_check
        %p217 = pneg %p90
      $region22: #{transformer_forward.41} parent=15 // pred_check_branch
        %219 = sbr.rel (%p217) target = $region24
      $region23: #{transformer_forward.41} parent=15 // pred_region
        %p220 = scmp.lt.s32.totalorder %s17, 1
        %s221 = scalar_select %p220, %s17, 1
        %p222 = scmp.lt.s32.totalorder %s18, 3
        %s223 = scalar_select %p222, %s18, 3
        %p224 = scmp.lt.s32.totalorder %s20, 0
        %s225 = scalar_select %p224, %s20, 0
        %s226 = sadd.s32 %s225, %s223
        %s227 = smul.addr %s221, 4
        %s228 = sadd.s32 %s226, %s227
        %s229 = smul.addr %s228, 4
        %s230 = scalar_lea.vmem %s1, %s229
      $region24: #{transformer_forward.41} parent=15 // pred_fallthru
        _
      // Predicated region
      $region25: #{transformer_forward.41} parent=15 // pred_check
        %p231 = pneg %p120
      $region26: #{transformer_forward.41} parent=15 // pred_check_branch
        %233 = sbr.rel (%p231) target = $region28
      $region27: #{transformer_forward.41} parent=15 // pred_region
        %p234 = scmp.lt.s32.totalorder %s17, 1
        %s235 = scalar_select %p234, %s17, 1
        %p236 = scmp.lt.s32.totalorder %s18, 3
        %s237 = scalar_select %p236, %s18, 3
        %p238 = scmp.lt.s32.totalorder %s20, 0
        %s239 = scalar_select %p238, %s20, 0
        %s240 = sadd.s32 %s239, %s237
        %s241 = smul.addr %s235, 4
        %s242 = sadd.s32 %s240, %s241
        %s243 = sadd.s32 %s242, 8
        %s244 = smul.addr %s243, 4
        %s245 = scalar_lea.vmem %s2, %s244
      $region28: #{transformer_forward.41} parent=15 // pred_fallthru
        _
      // Predicated region
      $region29: #{transformer_forward.41} parent=15 // pred_check
        %p246 = pneg %p148
      $region30: #{transformer_forward.41} parent=15 // pred_check_branch
        %248 = sbr.rel (%p246) target = $region32
      $region31: #{transformer_forward.41} parent=15 // pred_region
        %p249 = scmp.lt.s32.totalorder %s17, 1
        %s250 = scalar_select %p249, %s17, 1
        %p251 = scmp.lt.s32.totalorder %s20, 0
        %s252 = scalar_select %p251, %s20, 0
        %s253 = sadd.s32 %s252, %s250
        %s254 = scalar_lea.vmem %s3, %s253
      $region32: #{transformer_forward.41} parent=15 // pred_fallthru
        _
    $region16: #{transformer_forward.41} parent=5 // pred_fallthru
      _
    %p255 = scmp.le.s32.totalorder 1, %s10
    %p256 = scmp.lt.s32.totalorder %s10, 9
    %p257 = pnand %p255, %p256
    %p258 = pneg %p257
    // Predicated region
    $region33: #{transformer_forward.41} parent=5 // pred_check
      _
    $region34: #{transformer_forward.41} parent=5 // pred_check_branch
      %260 = sbr.rel (%p257) target = $region36
    $region35: #{transformer_forward.41} parent=5 // pred_region
      %s261 = ssub.s32 %s10, 1
      %p262 = scmp.lt.s32.totalorder %s21, 1
      %s263 = scalar_select %p262, %s21, 1
      %p264 = scmp.lt.s32.totalorder %s22, 3
      %s265 = scalar_select %p264, %s22, 3
      %p266 = scmp.lt.s32.totalorder %s23, 0
      %s267 = scalar_select %p266, %s23, 0
      %s268 = sadd.s32 %s267, %s265
      %s269 = smul.addr %s263, 4
      %s270 = sadd.s32 %s268, %s269
      %s271 = smul.addr %s270, 4
      %s272 = scalar_lea.vmem %s0, %s271
      %p273 = pneg %p66
      %p274 = pneg %p63
      %p275 = scmp.lt.s32.totalorder %s21, 1
      %s276 = scalar_select %p275, %s21, 1
      %p277 = scmp.lt.s32.totalorder %s22, 3
      %s278 = scalar_select %p277, %s22, 3
      %p279 = scmp.lt.s32.totalorder %s24, 0
      %s280 = scalar_select %p279, %s24, 0
      %s281 = sadd.s32 %s280, %s278
      %s282 = smul.addr %s276, 4
      %s283 = sadd.s32 %s281, %s282
      %s284 = smul.addr %s283, 4
      %s285 = scalar_lea.vmem %s1, %s284
      %p286 = pneg %p96
      %p287 = pneg %p93
      %p288 = scmp.lt.s32.totalorder %s21, 1
      %s289 = scalar_select %p288, %s21, 1
      %p290 = scmp.lt.s32.totalorder %s22, 3
      %s291 = scalar_select %p290, %s22, 3
      %p292 = scmp.lt.s32.totalorder %s24, 0
      %s293 = scalar_select %p292, %s24, 0
      %s294 = sadd.s32 %s293, %s291
      %s295 = smul.addr %s289, 4
      %s296 = sadd.s32 %s294, %s295
      %s297 = sadd.s32 %s296, 8
      %s298 = smul.addr %s297, 4
      %s299 = scalar_lea.vmem %s2, %s298
      %p300 = pneg %p126
      %p301 = pneg %p123
      %p302 = scmp.lt.s32.totalorder %s21, 1
      %s303 = scalar_select %p302, %s21, 1
      %p304 = scmp.lt.s32.totalorder %s24, 0
      %s305 = scalar_select %p304, %s24, 0
      %s306 = sadd.s32 %s305, %s303
      %s307 = scalar_lea.vmem %s3, %s306
      %p308 = pneg %p154
      %p309 = pneg %p151
      %p310 = pneg %p184
      %p311 = pneg %p181
      %p312 = scmp.lt.s32.totalorder %s21, 1
      %s313 = scalar_select %p312, %s21, 1
      %p314 = scmp.lt.s32.totalorder %s22, 3
      %s315 = scalar_select %p314, %s22, 3
      %p316 = scmp.lt.s32.totalorder %s23, 0
      %s317 = scalar_select %p316, %s23, 0
      %s318 = sadd.s32 %s317, %s315
      %s319 = smul.addr %s313, 4
      %s320 = sadd.s32 %s318, %s319
      %s321 = smul.addr %s320, 4
      %s322 = scalar_lea.vmem %s4, %s321
      %p323 = scmp.lt.s32.totalorder %s21, 1
      %s324 = scalar_select %p323, %s21, 1
      %p325 = scmp.lt.s32.totalorder %s22, 3
      %s326 = scalar_select %p325, %s22, 3
      %p327 = scmp.lt.s32.totalorder %s23, 0
      %s328 = scalar_select %p327, %s23, 0
      %s329 = sadd.s32 %s328, %s326
      %s330 = smul.addr %s324, 4
      %s331 = sadd.s32 %s329, %s330
      %s332 = smul.addr %s331, 4
      %s333 = scalar_lea.vmem %s0, %s332
      %p334 = scmp.lt.s32.totalorder %s21, 1
      %s335 = scalar_select %p334, %s21, 1
      %p336 = scmp.lt.s32.totalorder %s22, 3
      %s337 = scalar_select %p336, %s22, 3
      %p338 = scmp.lt.s32.totalorder %s24, 0
      %s339 = scalar_select %p338, %s24, 0
      %s340 = sadd.s32 %s339, %s337
      %s341 = smul.addr %s335, 4
      %s342 = sadd.s32 %s340, %s341
      %s343 = smul.addr %s342, 4
      %s344 = scalar_lea.vmem %s1, %s343
      %p345 = scmp.lt.s32.totalorder %s21, 1
      %s346 = scalar_select %p345, %s21, 1
      %p347 = scmp.lt.s32.totalorder %s22, 3
      %s348 = scalar_select %p347, %s22, 3
      %p349 = scmp.lt.s32.totalorder %s24, 0
      %s350 = scalar_select %p349, %s24, 0
      %s351 = sadd.s32 %s350, %s348
      %s352 = smul.addr %s346, 4
      %s353 = sadd.s32 %s351, %s352
      %s354 = sadd.s32 %s353, 8
      %s355 = smul.addr %s354, 4
      %s356 = scalar_lea.vmem %s2, %s355
      %p357 = scmp.lt.s32.totalorder %s21, 1
      %s358 = scalar_select %p357, %s21, 1
      %p359 = scmp.lt.s32.totalorder %s24, 0
      %s360 = scalar_select %p359, %s24, 0
      %s361 = sadd.s32 %s360, %s358
      %s362 = scalar_lea.vmem %s3, %s361
      %p363 = scmp.lt.s32.totalorder %s21, 1
      %s364 = scalar_select %p363, %s21, 1
      %p365 = scmp.lt.s32.totalorder %s22, 3
      %s366 = scalar_select %p365, %s22, 3
      %p367 = scmp.lt.s32.totalorder %s23, 0
      %s368 = scalar_select %p367, %s23, 0
      %s369 = sadd.s32 %s368, %s366
      %s370 = smul.addr %s364, 4
      %s371 = sadd.s32 %s369, %s370
      %s372 = smul.addr %s371, 4
      %s373 = scalar_lea.vmem %s4, %s372
      %p375 = scmp.eq.s32.totalorder %s24, 0
      // Predicated region
      $region37: #{transformer_forward.41} parent=35 // pred_check
        %p376 = pneg %p375
      $region38: #{transformer_forward.41} parent=35 // pred_check_branch
        %378 = sbr.rel (%p376) target = $region40
      $region39: #{transformer_forward.41} parent=35 // pred_region
        %vm379 = vcmask 7168
        %380 = vst.msk [vmem:[#allocation2] sm:$0xff] %vm379, -inf
        %381 = vst.msk [vmem:[#allocation3] sm:$0xff] %vm379, 0.0
        %vm382 = vcmask 64512
        %383 = vst.msk [vmem:[#allocation4] sm:$0xff] %vm382, 0.0
      $region40: #{transformer_forward.41} parent=35 // pred_fallthru
        _
      %v384 = vld [vmem:[%s333] sm:$0xf]
      %v385 = vld [vmem:[%s344] sm:$0xf]
      %v386 = vld [vmem:[%s356] sm:$0xf]
      %v387 = vld [vmem:[%s362] sm:$0x1]
      %vm388 = vcmp.gt.f32.partialorder %v387, 0.5
      %v389 = vsel %vm388, 0.0, -1e+09
      %v391 = vperm.slane %v389, 0
      %vm393 = vcmask 64512
      %v395 = vsel %vm393, %v384, 0
      %v398 = vsel %vm393, %v385, 0
      %400 = vmatpush.bf16.xpose.msra.mxu0 0
      %401 = vmatpush.bf16.xpose.msra.mxu0 0
      %402 = vmatpush.bf16.xpose.msra.mxu0 0
      %403 = vmatpush.bf16.xpose.msra.mxu0 0
      %404 = vmatpush.bf16.xpose.msra.mxu0 0
      %405 = vmatpush.bf16.xpose.msra.mxu0 0
      %406 = vmatpush.bf16.xpose.msra.mxu0 0
      %407 = vmatpush.bf16.xpose.msra.mxu0 %v398
      %408 = vmatmul.bf16.gmra.mxu0 %v395
      %v409 = vpop.f32.mrf.mxu0
      %v410 = vadd.f32 %v391, %v409
      %v411 = vpop.f32.mrf.mxu0
      %412 = vdwg.mxu0
      %v413 = vld [vmem:[#allocation2] sm:$0xff]
      %v414 = vsel %vm393, %v410, -inf
      %415 = vmax.xlane.f32.xlu0 %v414
      %v416 = vpop.xlane.xlu0 %415
      %v417 = vmax.f32 %v413, %v416
      %v418 = vsub.f32 %v413, %v417
      %v419 = vmul.f32 %v418, 1.442695
      %v420 = vpow.pop %v419
      %422 = vset.pattern.permute.xlu0 0
      %423 = vperm.xlu0 %422, %v417
      %v424 = vpop.permute.xlu0 %423
      %v426 = vsub.f32 %v410, %v424
      %v427 = vmul.f32 %v426, 1.442695
      %v428 = vpow.pop %v427
      %v429 = vld [vmem:[#allocation3] sm:$0xff]
      %v430 = vmul.f32 %v420, %v429
      %v431 = vsel %vm393, %v428, 0.0
      %432 = vadd.xlane.f32.xlu0 %v431
      %v433 = vpop.xlane.xlu0 %432
      %v434 = vadd.f32 %v430, %v433
      %vm435 = vcmask 7168
      %436 = vst.msk [vmem:[#allocation3] sm:$0xff] %vm435, %v434
      %v437 = vld [vmem:[#allocation4] sm:$0xff]
      %439 = vset.pattern.permute.xlu0 0
      %440 = vperm.xlu0 %439, %v420
      %v441 = vpop.permute.xlu0 %440
      %v443 = vmul.f32 %v441, %v437
      %v444 = vpack.c.bf16 %v428, %v428
      %v446 = vsel %vm393, %v444, 0
      %vm448 = vcmask 1043456
      %v450 = vsel %vm448, %v386, 0
      %452 = vmatpush.bf16.msra.mxu0 0
      %453 = vmatpush.bf16.msra.mxu0 0
      %454 = vmatpush.bf16.msra.mxu0 0
      %455 = vmatpush.bf16.msra.mxu0 0
      %456 = vmatpush.bf16.msra.mxu0 0
      %457 = vmatpush.bf16.msra.mxu0 0
      %458 = vmatpush.bf16.msra.mxu0 0
      %459 = vmatpush.bf16.msra.mxu0 %v450
      %460 = vmatmul.bf16.gmra.mxu0 %v446
      %v461 = vpop.f32.mrf.mxu0
      %v462 = vadd.f32 0.0, %v461
      %v463 = vpop.f32.mrf.mxu0
      %464 = vdwg.mxu0
      %v465 = vadd.f32 %v443, %v462
      %466 = vst.msk [vmem:[#allocation4] sm:$0xff] %vm393, %v465
      %467 = vst.msk [vmem:[#allocation2] sm:$0xff] %vm435, %v417
      // Predicated region
      $region41: #{transformer_forward.41} parent=35 // pred_check
        %p468 = pneg %p375
      $region42: #{transformer_forward.41} parent=35 // pred_check_branch
        %470 = sbr.rel (%p468) target = $region44
      $region43: #{transformer_forward.41} parent=35 // pred_region
        %v471 = vld [vmem:[#allocation4] sm:$0xff]
        %v472 = vld [vmem:[#allocation3] sm:$0xff]
        %v473 = vrcp.pop %v472
        %475 = vset.pattern.permute.xlu0 0
        %476 = vperm.xlu0 %475, %v473
        %v477 = vpop.permute.xlu0 %476
        %v479 = vmul.f32 %v471, %v477
        %v480 = vpack.c.bf16 %v479, %v479
        %vm481 = vcmask 60416
        %482 = vst.msk [vmem:[%s373] sm:$0xf] %vm481, %v480
      $region44: #{transformer_forward.41} parent=35 // pred_fallthru
        _
      %p483 = scmp.lt.s32.totalorder %s21, 1
      %s484 = scalar_select %p483, %s21, 1
      %p485 = scmp.lt.s32.totalorder %s22, 3
      %s486 = scalar_select %p485, %s22, 3
      %p487 = scmp.lt.s32.totalorder %s23, 0
      %s488 = scalar_select %p487, %s23, 0
      %s489 = sadd.s32 %s488, %s486
      %s490 = smul.addr %s484, 4
      %s491 = sadd.s32 %s489, %s490
      %s492 = smul.addr %s491, 4
      %s493 = scalar_lea.vmem %s4, %s492
      // Predicated region
      $region45: #{transformer_forward.41} parent=35 // pred_check
        %p494 = pneg %p181
      $region46: #{transformer_forward.41} parent=35 // pred_check_branch
        %496 = sbr.rel (%p494) target = $region48
      $region47: #{transformer_forward.41} parent=35 // pred_region
        _
      $region48: #{transformer_forward.41} parent=35 // pred_fallthru
        _
    $region36: #{transformer_forward.41} parent=5 // pred_fallthru
      _
    %p497 = scmp.le.s32.totalorder 2, %s10
    // Predicated region
    $region49: #{transformer_forward.41} parent=5 // pred_check
      %p498 = pneg %p497
    $region50: #{transformer_forward.41} parent=5 // pred_check_branch
      %500 = sbr.rel (%p498) target = $region52
    $region51: #{transformer_forward.41} parent=5 // pred_region
      %s501 = ssub.s32 %s10, 2
      // Predicated region
      $region53: #{transformer_forward.41} parent=51 // pred_check
        %p502 = pneg %p187
      $region54: #{transformer_forward.41} parent=51 // pred_check_branch
        %504 = sbr.rel (%p502) target = $region56
      $region55: #{transformer_forward.41} parent=51 // pred_region
        %p505 = scmp.lt.s32.totalorder %s25, 1
        %s506 = scalar_select %p505, %s25, 1
        %p507 = scmp.lt.s32.totalorder %s26, 3
        %s508 = scalar_select %p507, %s26, 3
        %p509 = scmp.lt.s32.totalorder %s27, 0
        %s510 = scalar_select %p509, %s27, 0
        %s511 = sadd.s32 %s510, %s508
        %s512 = smul.addr %s506, 4
        %s513 = sadd.s32 %s511, %s512
        %s514 = smul.addr %s513, 4
        %s515 = scalar_lea.vmem %s4, %s514
      $region56: #{transformer_forward.41} parent=51 // pred_fallthru
        _
    $region52: #{transformer_forward.41} parent=5 // pred_fallthru
      _
  $region6: #{transformer_forward.41} parent=0 // loop_footer
    %s14 = sadd.s32 1, %s10
  $region7: #{transformer_forward.41} parent=0 // loop_footer_branch
    %9 = sbr.rel target = $region3
  $region8: #{transformer_forward.41} parent=0 // loop_exit
    _

// kernel: transformer_forward.53
$region0: #{transformer_forward.53}
  #allocation0 [shape = 'u32[]', space=smem, size = 0x4, offset = 0x4, fixed_abs, tag = 'smem constant byte address 0x4 - core index']
  #allocation1 [shape = 'u32[72,128]{1,0:T(1,128)}', space=vmem, size = 0x9000, scoped, tag = 'internal scratch']
  #allocation2 [shape = 'f32[16,128]{1,0:T(8,128)}', space=vmem, size = 0x2000, scoped, tag = 'scratch operand']
  %s0 = inlined_call_operand.vmem [shape: bf16[16,128], index: 0, kind: input, shape index: {}]
  %s1 = inlined_call_operand.vmem [shape: bf16[128,128], index: 1, kind: input, shape index: {}]
  %s2 = inlined_call_operand.vmem [shape: f32[1,128], index: 2, kind: input, shape index: {}]
  %s3 = inlined_call_operand.vmem [shape: f32[16,128], index: 3, kind: output, shape index: {}]
  %s4 = sld [smem:[#allocation0]]
  $region30: #{transformer_forward.53} parent=0
    _
  %s6 = ssub.s32 1, %s4
  %s7 = scalar_select 0, %s6, %s4
  // Predicated region
  $region2: #{transformer_forward.53} parent=0 // pred_check
    _
  $region3: #{transformer_forward.53} parent=0 // pred_check_branch
    %9 = sbr.rel (0) target = $region5
  $region4: #{transformer_forward.53} parent=0 // pred_region
    _
  $region5: #{transformer_forward.53} parent=0 // pred_fallthru
    _
  // Predicated region
  $region6: #{transformer_forward.53} parent=0 // pred_check
    _
  $region7: #{transformer_forward.53} parent=0 // pred_check_branch
    %11 = sbr.rel (0) target = $region9
  $region8: #{transformer_forward.53} parent=0 // pred_region
    _
  $region9: #{transformer_forward.53} parent=0 // pred_fallthru
    _
  // Predicated region
  $region10: #{transformer_forward.53} parent=0 // pred_check
    _
  $region11: #{transformer_forward.53} parent=0 // pred_check_branch
    %13 = sbr.rel (0) target = $region13
  $region12: #{transformer_forward.53} parent=0 // pred_region
    _
  $region13: #{transformer_forward.53} parent=0 // pred_fallthru
    _
  %p14 = scmp.eq.s32.totalorder 0, 0
  // Predicated region
  $region14: #{transformer_forward.53} parent=0 // pred_check
    %p15 = pneg %p14
  $region15: #{transformer_forward.53} parent=0 // pred_check_branch
    %17 = sbr.rel (%p15) target = $region17
  $region16: #{transformer_forward.53} parent=0 // pred_region
    %18 = vst [vmem:[#allocation2] sm:$0xff] 0.0
    %19 = vst [vmem:[#allocation2 + $0x8] sm:$0xff] 0.0
  $region17: #{transformer_forward.53} parent=0 // pred_fallthru
    _
  %v20 = vld [vmem:[#allocation2] sm:$0xff]
  %v21 = vld [vmem:[#allocation2 + $0x8] sm:$0xff]
  %v22 = vld [vmem:[%s0] sm:$0xf]
  %v23 = vld [vmem:[%s0 + $0x4] sm:$0xf]
  %v24 = vld [vmem:[%s1] sm:$0xf]
  %v25 = vld [vmem:[%s1 + $0x4] sm:$0xf]
  %v26 = vld [vmem:[%s1 + $0x8] sm:$0xf]
  %v27 = vld [vmem:[%s1 + $0xc] sm:$0xf]
  %v28 = vld [vmem:[%s1 + $0x10] sm:$0xf]
  %v29 = vld [vmem:[%s1 + $0x14] sm:$0xf]
  %v30 = vld [vmem:[%s1 + $0x18] sm:$0xf]
  %v31 = vld [vmem:[%s1 + $0x1c] sm:$0xf]
  %v32 = vld [vmem:[%s1 + $0x20] sm:$0xf]
  %v33 = vld [vmem:[%s1 + $0x24] sm:$0xf]
  %v34 = vld [vmem:[%s1 + $0x28] sm:$0xf]
  %v35 = vld [vmem:[%s1 + $0x2c] sm:$0xf]
  %v36 = vld [vmem:[%s1 + $0x30] sm:$0xf]
  %v37 = vld [vmem:[%s1 + $0x34] sm:$0xf]
  %v38 = vld [vmem:[%s1 + $0x38] sm:$0xf]
  %v39 = vld [vmem:[%s1 + $0x3c] sm:$0xf]
  %v42 = vunpack.c.l.b16 %v22
  %v43 = vunpack.c.l.b16 %v23
  %v44 = vpack.c.b16 %v43, %v42
  %v62 = vunpack.c.l.b16 %v24
  %v63 = vunpack.c.l.b16 %v25
  %v64 = vunpack.c.l.b16 %v26
  %v65 = vunpack.c.l.b16 %v27
  %v66 = vunpack.c.l.b16 %v28
  %v67 = vunpack.c.l.b16 %v29
  %v68 = vunpack.c.l.b16 %v30
  %v69 = vunpack.c.l.b16 %v31
  %v70 = vunpack.c.l.b16 %v32
  %v71 = vunpack.c.l.b16 %v33
  %v72 = vunpack.c.l.b16 %v34
  %v73 = vunpack.c.l.b16 %v35
  %v74 = vunpack.c.l.b16 %v36
  %v75 = vunpack.c.l.b16 %v37
  %v76 = vunpack.c.l.b16 %v38
  %v77 = vunpack.c.l.b16 %v39
  %v78 = vpack.c.b16 %v63, %v62
  %v79 = vpack.c.b16 %v65, %v64
  %v80 = vpack.c.b16 %v67, %v66
  %v81 = vpack.c.b16 %v69, %v68
  %v82 = vpack.c.b16 %v71, %v70
  %v83 = vpack.c.b16 %v73, %v72
  %v84 = vpack.c.b16 %v75, %v74
  %v85 = vpack.c.b16 %v77, %v76
  %94 = vmatpush.bf16.msra.mxu0 %v85
  %95 = vmatpush.bf16.msra.mxu0 %v84
  %96 = vmatpush.bf16.msra.mxu0 %v83
  %97 = vmatpush.bf16.msra.mxu0 %v82
  %98 = vmatpush.bf16.msra.mxu0 %v81
  %99 = vmatpush.bf16.msra.mxu0 %v80
  %100 = vmatpush.bf16.msra.mxu0 %v79
  %101 = vmatpush.bf16.msra.mxu0 %v78
  %102 = vmatmul.bf16.gmra.mxu0 %v44
  %v103 = vpop.f32.mrf.mxu0
  %v104 = vadd.f32 0.0, %v103
  %v105 = vpop.f32.mrf.mxu0
  %v106 = vadd.f32 0.0, %v105
  %107 = vdwg.mxu0
  %v108 = vadd.f32 %v20, %v104
  %v109 = vadd.f32 %v21, %v106
  %110 = vst [vmem:[#allocation2] sm:$0xff] %v108
  %111 = vst [vmem:[#allocation2 + $0x8] sm:$0xff] %v109
  // Predicated region
  $region18: #{transformer_forward.53} parent=0 // pred_check
    %p112 = pneg %p14
  $region19: #{transformer_forward.53} parent=0 // pred_check_branch
    %114 = sbr.rel (%p112) target = $region21
  $region20: #{transformer_forward.53} parent=0 // pred_region
    %v115 = vld [vmem:[#allocation2] sm:$0xff]
    %v116 = vld [vmem:[#allocation2 + $0x8] sm:$0xff]
    %v117 = vld [vmem:[%s2] sm:$0x1]
    %v119 = vperm.slane %v117, 0
    %v121 = vadd.f32 %v115, %v119
    %v122 = vadd.f32 %v116, %v119
    %123 = vst [vmem:[%s3] sm:$0xff] %v121
    %124 = vst [vmem:[%s3 + $0x8] sm:$0xff] %v122
  $region21: #{transformer_forward.53} parent=0 // pred_fallthru
    _
  // Predicated region
  $region22: #{transformer_forward.53} parent=0 // pred_check
    _
  $region23: #{transformer_forward.53} parent=0 // pred_check_branch
    %126 = sbr.rel (0) target = $region25
  $region24: #{transformer_forward.53} parent=0 // pred_region
    _
  $region25: #{transformer_forward.53} parent=0 // pred_fallthru
    _
  // Predicated region
  $region26: #{transformer_forward.53} parent=0 // pred_check
    _
  $region27: #{transformer_forward.53} parent=0 // pred_check_branch
    %128 = sbr.rel (0) target = $region29
  $region28: #{transformer_forward.53} parent=0 // pred_region
    _
  $region29: #{transformer_forward.53} parent=0 // pred_fallthru
    _

</llo_original>
